<compile_context>
chip_gen: v7x
topology: tpu7x:2x2x1
jax: 0.10.0
libtpu: 0.0.40
codegen_flags: <defaults>
</compile_context>

<pallas_src>
import math
import functools

import jax
import jax.numpy as jnp
from jax.experimental import pallas as pl
from jax.experimental.pallas import tpu as pltpu


_DEF_VMEM_FALLBACK = 64 * 1024 * 1024


def _vmem_limit_bytes():
    """Per-generation scoped-VMEM limit: ~3/4 of physical VMEM, defensively queried."""
    try:
        cap = int(getattr(pltpu.get_tpu_info(), "vmem_capacity_bytes", 0)) or _DEF_VMEM_FALLBACK
    except Exception:  # interpret mode / old runtime
        cap = _DEF_VMEM_FALLBACK
    return max(32 * 1024 * 1024, min(cap * 3 // 4, 112 * 1024 * 1024))


# ------------------------------ helpers ------------------------------

def _layernorm(x, g, b, eps):
    x = x.astype(jnp.float32)
    mu = jnp.mean(x, axis=-1, keepdims=True)
    xc = x - mu
    var = jnp.mean(xc * xc, axis=-1, keepdims=True)
    return xc * jax.lax.rsqrt(var + eps) * g + b


def _new_gelu(x):
    # GPT-2 "NewGELU": 0.5*x*(1+tanh(sqrt(2/pi)*(x + 0.044715*x^3)))
    c = math.sqrt(2.0 / math.pi)
    return 0.5 * x * (1.0 + jnp.tanh(c * (x + 0.044715 * x * x * x)))


def _pick_tile(n, candidates):
    for c in candidates:
        if c <= n and n % c == 0:
            return c
    return n


# ------------------------------ kernels ------------------------------

def _ln_qkv_kernel(x_ref, g_ref, b_ref, w_ref, bias_ref, q_ref, k_ref, v_ref,
                   *, eps, num_heads, head_size, mm_dtype):
    # h = LN1(x_tile); qkv = h @ Wqkv + bqkv   (bf16 operands, f32 accumulate)
    # Q/K/V are written straight into head-major (nh, ts, hs) layout via static lane slices,
    # eliminating the standalone XLA transpose/HBM round trip of the previous version.
    x = x_ref[0]                                              # (ts, H) f32
    h = _layernorm(x, g_ref[...], b_ref[...], eps)
    qkv = jnp.dot(h.astype(mm_dtype), w_ref[...],
                  preferred_element_type=jnp.float32) + bias_ref[...]
    qkv = qkv.astype(mm_dtype)                                # (ts, 3H)
    H = num_heads * head_size
    for hd in range(num_heads):                               # static data-staging loop only
        lo = hd * head_size
        q_ref[0, hd] = qkv[:, lo:lo + head_size]
        k_ref[0, hd] = qkv[:, H + lo:H + lo + head_size]
        v_ref[0, hd] = qkv[:, 2 * H + lo:2 * H + lo + head_size]


def _flash_attn_kernel(x_ref, q_ref, k_ref, v_ref, wo_ref, bo_ref, x1_ref,
                       m_sc, l_sc, acc_sc, *, sm_scale, num_heads, mm_dtype):
    # Online-softmax causal attention over KV tiles, all heads batched in one einsum.
    # tq == tk is enforced by the wrapper, so ki > qi tiles are fully in the causal future
    # (skipped; their K/V DMA is also clamped away in the BlockSpec), ki < qi tiles need no
    # mask, and only ki == qi (diagonal) tiles apply the triangular mask.
    qi = pl.program_id(1)
    ki = pl.program_id(2)
    nk = pl.num_programs(2)

    @pl.when(ki == 0)
    def _init():
        m_sc[...] = jnp.full(m_sc.shape, -jnp.inf, jnp.float32)
        l_sc[...] = jnp.zeros(l_sc.shape, jnp.float32)
        acc_sc[...] = jnp.zeros(acc_sc.shape, jnp.float32)

    def _update(masked):
        q = q_ref[0]                                          # (nh, tq, hs) bf16
        k = k_ref[0]                                          # (nh, tk, hs) bf16
        v = v_ref[0]                                          # (nh, tk, hs) bf16
        s = jnp.einsum("hqd,hkd->hqk", q, k,
                       preferred_element_type=jnp.float32) * sm_scale
        if masked:
            # Diagonal tile: local row/col indices coincide with global ones (q_start==k_start),
            # so a single 2D lower-triangular mask broadcast over heads suffices.
            tq, tk = s.shape[1], s.shape[2]
            rows = jax.lax.broadcasted_iota(jnp.int32, (tq, tk), 0)
            cols = jax.lax.broadcasted_iota(jnp.int32, (tq, tk), 1)
            s = jnp.where((cols <= rows)[None, :, :], s, -1e30)

        m_prev = m_sc[...]
        m_new = jnp.maximum(m_prev, jnp.max(s, axis=-1, keepdims=True))
        alpha = jnp.exp(m_prev - m_new)
        p = jnp.exp(s - m_new)
        l_sc[...] = alpha * l_sc[...] + jnp.sum(p, axis=-1, keepdims=True)
        acc_sc[...] = alpha * acc_sc[...] + jnp.einsum(
            "hqk,hkd->hqd", p.astype(mm_dtype), v,
            preferred_element_type=jnp.float32)
        m_sc[...] = m_new

    @pl.when(ki < qi)        # strictly below the diagonal: no mask needed
    def _unmasked():
        _update(False)

    @pl.when(ki == qi)       # diagonal tile: apply causal mask
    def _diag():
        _update(True)

    @pl.when(ki == nk - 1)
    def _finalize():
        inv = 1.0 / l_sc[...]                                 # exact divide (parity w/ reference)
        ctx = acc_sc[...] * inv                               # (nh, tq, hs) f32
        # Head merge as a lane concatenation, then ONE dense (tq,H)x(H,H) output projection
        # (full H-deep MXU contraction) fused with the first residual.
        ctx_cat = jnp.concatenate([ctx[h] for h in range(num_heads)], axis=-1)  # (tq, H)
        attn = jnp.dot(ctx_cat.astype(mm_dtype), wo_ref[...],
                       preferred_element_type=jnp.float32) + bo_ref[...]
        x1_ref[0] = x_ref[0] + attn


def _mlp_kernel(x1_ref, g_ref, b_ref, w1_ref, b1_ref, w2_ref, b2_ref, out_ref,
                h3_sc, acc_sc, *, eps, mm_dtype):
    # out = x1 + (NewGELU(LN3(x1) @ W1 + b1) @ W2 + b2), with the 4H dim tiled/accumulated.
    fi = pl.program_id(2)
    nf = pl.num_programs(2)

    @pl.when(fi == 0)
    def _init():
        h3 = _layernorm(x1_ref[0], g_ref[...], b_ref[...], eps)
        h3_sc[...] = h3.astype(mm_dtype)
        acc_sc[...] = jnp.zeros(acc_sc.shape, jnp.float32)

    t = jnp.dot(h3_sc[...], w1_ref[...],
                preferred_element_type=jnp.float32) + b1_ref[...]   # (ts, tf) f32
    t = _new_gelu(t)                                                # f32 elementwise
    acc_sc[...] += jnp.dot(t.astype(mm_dtype), w2_ref[...],
                           preferred_element_type=jnp.float32)

    @pl.when(fi == nf - 1)
    def _finalize():
        out_ref[0] = x1_ref[0] + acc_sc[...] + b2_ref[...]


def _enc_kv_kernel(enc_ref, w_ref, b_ref, k_ref, v_ref, *, hidden, mm_dtype):
    # Encoder K/V cache projections (independent of the decoder path), lane-dense stores.
    enc = enc_ref[0]                                          # (te, H) f32
    kv = jnp.dot(enc.astype(mm_dtype), w_ref[...],
                 preferred_element_type=jnp.float32) + b_ref[...]   # (te, 2H) f32
    k_ref[0] = kv[:, :hidden]
    v_ref[0] = kv[:, hidden:]


# ------------------------------ wrapper ------------------------------

def init_params(key, hidden_size, num_heads):
    H = hidden_size
    keys = jax.random.split(key, 20)

    def lin(k, fi, fo):
        kw, kb = jax.random.split(k)
        w = 0.02 * jax.random.normal(kw, (fi, fo), jnp.float32)
        b = 0.02 * jax.random.normal(kb, (1, fo), jnp.float32)
        return w, b

    p = {}
    p["ln1_g"] = jnp.ones((1, H), jnp.float32)
    p["ln1_b"] = jnp.zeros((1, H), jnp.float32)
    p["wqkv"], p["bqkv"] = lin(keys[0], H, 3 * H)
    p["wo"], p["bo"] = lin(keys[1], H, H)
    # ln2 / wq_c / wo_c exist in the PyTorch module but are dead in its forward
    # (the cross-attention output is discarded) -> never passed to any kernel.
    p["ln2_g"] = jnp.ones((1, H), jnp.float32)
    p["ln2_b"] = jnp.zeros((1, H), jnp.float32)
    p["wq_c"], p["bq_c"] = lin(keys[2], H, H)
    p["wk_c"], p["bk_c"] = lin(keys[3], H, H)
    p["wv_c"], p["bv_c"] = lin(keys[4], H, H)
    p["wo_c"], p["bo_c"] = lin(keys[5], H, H)
    p["ln3_g"] = jnp.ones((1, H), jnp.float32)
    p["ln3_b"] = jnp.zeros((1, H), jnp.float32)
    p["w1"], p["b1"] = lin(keys[6], H, 4 * H)
    p["w2"], p["b2"] = lin(keys[7], 4 * H, H)
    return p


def enc_dec_transformer_block(x, encoder_outputs, params, *, num_heads, eps=1e-5,
                              mm_dtype=jnp.bfloat16,
                              seq_tile=None, attn_tile=None, ff_tile=None, enc_tile=None):
    B, S, H = x.shape
    S_enc = encoder_outputs.shape[1]
    assert H % num_heads == 0
    hs = H // num_heads
    F = 4 * H
    f32 = jnp.float32

    # Tile candidates favour 256/512-wide blocks (v6e/v7x MXU is 2x256x256); on v5e pass
    # seq_tile/attn_tile=128 explicitly (its MXU is 4x128x128, 256 gives no extra MXU win).
    ts = seq_tile or _pick_tile(S, (512, 256, 128, 64, 32, 16, 8))
    ta = attn_tile or _pick_tile(S, (256, 128, 64, 32, 16, 8))
    tf = ff_tile or _pick_tile(F, (2048, 1024, 512, 256, 128))
    te = enc_tile or _pick_tile(S_enc, (512, 256, 128, 64, 32, 16, 8))
    assert S % ts == 0 and S % ta == 0 and F % tf == 0 and S_enc % te == 0

    # ---- parameters actually used by the forward (bf16 for matmul operands) ----
    ln1_g, ln1_b = params["ln1_g"], params["ln1_b"]
    ln3_g, ln3_b = params["ln3_g"], params["ln3_b"]
    wqkv = params["wqkv"].astype(mm_dtype)
    bqkv = params["bqkv"].astype(f32)
    wo = params["wo"].astype(mm_dtype)                 # kept dense (H, H): fused output proj
    bo = params["bo"].astype(f32)
    w1 = params["w1"].astype(mm_dtype)
    b1 = params["b1"].astype(f32)
    w2 = params["w2"].astype(mm_dtype)
    b2 = params["b2"].astype(f32)
    wkv_c = jnp.concatenate([params["wk_c"], params["wv_c"]], axis=1).astype(mm_dtype)
    bkv_c = jnp.concatenate([params["bk_c"], params["bv_c"]], axis=1).astype(f32)

    vmem_limit = _vmem_limit_bytes()

    def cparams(sem):
        return pltpu.CompilerParams(dimension_semantics=sem,
                                    vmem_limit_bytes=vmem_limit)

    # ---------- pass 1: LN1 + fused QKV projection, head-major Q/K/V outputs ----------
    q, k, v = pl.pallas_call(
        functools.partial(_ln_qkv_kernel, eps=eps, num_heads=num_heads,
                          head_size=hs, mm_dtype=mm_dtype),
        grid=(B, S // ts),
        in_specs=[
            pl.BlockSpec((1, ts, H), lambda b, s: (b, s, 0)),
            pl.BlockSpec((1, H), lambda b, s: (0, 0)),
            pl.BlockSpec((1, H), lambda b, s: (0, 0)),
            pl.BlockSpec((H, 3 * H), lambda b, s: (0, 0)),
            pl.BlockSpec((1, 3 * H), lambda b, s: (0, 0)),
        ],
        out_specs=(
            pl.BlockSpec((1, num_heads, ts, hs), lambda b, s: (b, 0, s, 0)),
            pl.BlockSpec((1, num_heads, ts, hs), lambda b, s: (b, 0, s, 0)),
            pl.BlockSpec((1, num_heads, ts, hs), lambda b, s: (b, 0, s, 0)),
        ),
        out_shape=(
            jax.ShapeDtypeStruct((B, num_heads, S, hs), mm_dtype),
            jax.ShapeDtypeStruct((B, num_heads, S, hs), mm_dtype),
            jax.ShapeDtypeStruct((B, num_heads, S, hs), mm_dtype),
        ),
        compiler_params=cparams(("parallel", "parallel")),
    )(x, ln1_g, ln1_b, wqkv, bqkv)

    # ---------- pass 2: flash causal attention + fused Wo projection + residual ----------
    # K/V index maps are clamped to min(ki, qi): fully-masked future KV tiles are never
    # DMA'd (the resident block is reused); their compute is skipped inside the kernel.
    x1 = pl.pallas_call(
        functools.partial(_flash_attn_kernel, sm_scale=1.0 / math.sqrt(hs),
                          num_heads=num_heads, mm_dtype=mm_dtype),
        grid=(B, S // ta, S // ta),
        in_specs=[
            pl.BlockSpec((1, ta, H), lambda b, qi, ki: (b, qi, 0)),                 # x (residual)
            pl.BlockSpec((1, num_heads, ta, hs), lambda b, qi, ki: (b, 0, qi, 0)),  # q
            pl.BlockSpec((1, num_heads, ta, hs),
                         lambda b, qi, ki: (b, 0, jnp.minimum(ki, qi), 0)),         # k (clamped)
            pl.BlockSpec((1, num_heads, ta, hs),
                         lambda b, qi, ki: (b, 0, jnp.minimum(ki, qi), 0)),         # v (clamped)
            pl.BlockSpec((H, H), lambda b, qi, ki: (0, 0)),                         # Wo (dense)
            pl.BlockSpec((1, H), lambda b, qi, ki: (0, 0)),                         # bo
        ],
        out_specs=pl.BlockSpec((1, ta, H), lambda b, qi, ki: (b, qi, 0)),
        out_shape=jax.ShapeDtypeStruct((B, S, H), f32),
        scratch_shapes=[
            pltpu.VMEM((num_heads, ta, 1), f32),    # running max
            pltpu.VMEM((num_heads, ta, 1), f32),    # running denom
            pltpu.VMEM((num_heads, ta, hs), f32),   # running context
        ],
        compiler_params=cparams(("parallel", "parallel", "arbitrary")),
    )(x, q, k, v, wo, bo)

    # ---------- pass 3: LN3 + MLP (4H dim tiled) + residual ----------
    out = pl.pallas_call(
        functools.partial(_mlp_kernel, eps=eps, mm_dtype=mm_dtype),
        grid=(B, S // ts, F // tf),
        in_specs=[
            pl.BlockSpec((1, ts, H), lambda b, s, f: (b, s, 0)),
            pl.BlockSpec((1, H), lambda b, s, f: (0, 0)),
            pl.BlockSpec((1, H), lambda b, s, f: (0, 0)),
            pl.BlockSpec((H, tf), lambda b, s, f: (0, f)),
            pl.BlockSpec((1, tf), lambda b, s, f: (0, f)),
            pl.BlockSpec((tf, H), lambda b, s, f: (f, 0)),
            pl.BlockSpec((1, H), lambda b, s, f: (0, 0)),
        ],
        out_specs=pl.BlockSpec((1, ts, H), lambda b, s, f: (b, s, 0)),
        out_shape=jax.ShapeDtypeStruct((B, S, H), f32),
        scratch_shapes=[
            pltpu.VMEM((ts, H), mm_dtype),  # LN3(x1) reused across ff tiles
            pltpu.VMEM((ts, H), f32),       # MLP accumulator
        ],
        compiler_params=cparams(("parallel", "parallel", "arbitrary")),
    )(x1, ln3_g, ln3_b, w1, b1, w2, b2)

    # ---------- pass 4: encoder K/V cache (independent of the decoder path) ----------
    k_cache, v_cache = pl.pallas_call(
        functools.partial(_enc_kv_kernel, hidden=H, mm_dtype=mm_dtype),
        grid=(B, S_enc // te),
        in_specs=[
            pl.BlockSpec((1, te, H), lambda b, s: (b, s, 0)),
            pl.BlockSpec((H, 2 * H), lambda b, s: (0, 0)),
            pl.BlockSpec((1, 2 * H), lambda b, s: (0, 0)),
        ],
        out_specs=(pl.BlockSpec((1, te, H), lambda b, s: (b, s, 0)),
                   pl.BlockSpec((1, te, H), lambda b, s: (b, s, 0))),
        out_shape=(jax.ShapeDtypeStruct((B, S_enc, H), f32),
                   jax.ShapeDtypeStruct((B, S_enc, H), f32)),
        compiler_params=cparams(("parallel", "parallel")),
    )(encoder_outputs, wkv_c, bkv_c)

    return out, (k_cache, v_cache)


# ------------------------------ pure-JAX reference (f32) ------------------------------

def _reference_forward(x, enc, p, *, num_heads, eps):
    B, S, H = x.shape
    hs = H // num_heads

    def ln(v, g, b):
        mu = v.mean(-1, keepdims=True)
        var = ((v - mu) ** 2).mean(-1, keepdims=True)
        return (v - mu) / jnp.sqrt(var + eps) * g + b

    h = ln(x, p["ln1_g"], p["ln1_b"])
    qkv = h @ p["wqkv"] + p["bqkv"]
    q, k, v = jnp.split(qkv, 3, axis=-1)

    def heads(t):
        return t.reshape(B, S, num_heads, hs).transpose(0, 2, 1, 3)

    q, k, v = heads(q), heads(k), heads(v)
    s = jnp.einsum("bhqd,bhkd->bhqk", q, k) / math.sqrt(hs)
    mask = jnp.tril(jnp.ones((S, S), bool))
    s = jnp.where(mask, s, -jnp.inf)
    a = jax.nn.softmax(s, axis=-1)
    ctx = jnp.einsum("bhqk,bhkd->bhqd", a, v)
    ctx = ctx.transpose(0, 2, 1, 3).reshape(B, S, H)
    x1 = x + ctx @ p["wo"] + p["bo"]

    h3 = ln(x1, p["ln3_g"], p["ln3_b"])
    t = h3 @ p["w1"] + p["b1"]
    t = _new_gelu(t)
    out = x1 + t @ p["w2"] + p["b2"]

    k_cache = enc @ p["wk_c"] + p["bk_c"]
    v_cache = enc @ p["wv_c"] + p["bv_c"]
    return out, k_cache, v_cache


if __name__ == "__main__":
    # Small but multi-tile config: exercises the below-diagonal (unmasked), diagonal (masked)
    # and skipped/clamped KV-tile paths of the flash kernel, the tiled-4H MLP accumulation,
    # and multiple parallel grid steps per kernel.
    B, S, S_ENC, H, NH = 2, 256, 128, 128, 4

    key = jax.random.PRNGKey(0)
    kx, kenc, kp = jax.random.split(key, 3)
    x = jax.random.normal(kx, (B, S, H), jnp.float32)
    encoder_outputs = jax.random.normal(kenc, (B, S_ENC, H), jnp.float32)
    params = init_params(kp, H, NH)

    out, (k_cache, v_cache) = enc_dec_transformer_block(
        x, encoder_outputs, params, num_heads=NH, eps=1e-5,
        seq_tile=128, attn_tile=128, ff_tile=256)
    jax.block_until_ready((out, k_cache, v_cache))

    assert out.shape == (B, S, H) and out.dtype == jnp.float32
    assert k_cache.shape == (B, S_ENC, H) and v_cache.shape == (B, S_ENC, H)
    assert not bool(jnp.any(jnp.isnan(out)))
    assert not bool(jnp.any(jnp.isnan(k_cache))) and not bool(jnp.any(jnp.isnan(v_cache)))

    # Correctness check vs a pure-f32 JAX reference (kernel uses bf16 matmul operands,
    # so compare with a generous mixed-precision tolerance).
    out_ref, kc_ref, vc_ref = _reference_forward(
        x, encoder_outputs, params, num_heads=NH, eps=1e-5)
    err_out = float(jnp.max(jnp.abs(out - out_ref)))
    err_k = float(jnp.max(jnp.abs(k_cache - kc_ref)))
    err_v = float(jnp.max(jnp.abs(v_cache - vc_ref)))
    assert err_out < 5e-2 and err_k < 5e-2 and err_v < 5e-2, (err_out, err_k, err_v)

    print("KERNEL_OK")
</pallas_src>

<mosaic_0001>
module attributes {stable_mosaic.version = 11 : i64} {
  func.func @_ln_qkv_kernel(%arg0: i32, %arg1: i32, %arg2: memref<1x128x128xf32, #tpu.memory_space<vmem>>, %arg3: memref<1x128xf32, #tpu.memory_space<vmem>>, %arg4: memref<1x128xf32, #tpu.memory_space<vmem>>, %arg5: memref<128x384xbf16, #tpu.memory_space<vmem>>, %arg6: memref<1x384xf32, #tpu.memory_space<vmem>>, %arg7: memref<1x4x128x32xbf16, #tpu.memory_space<vmem>>, %arg8: memref<1x4x128x32xbf16, #tpu.memory_space<vmem>>, %arg9: memref<1x4x128x32xbf16, #tpu.memory_space<vmem>>) attributes {dimension_semantics = [#tpu.dimension_semantics<parallel>, #tpu.dimension_semantics<parallel>], iteration_bounds = array<i64: 2, 2>, scalar_prefetch = 0 : i64, scratch_operands = 0 : i64, tpu.core_type = #tpu.core_type<tc>, window_params = [{transform_indices = @transform_0, window_bounds = array<i64: 1, 128, 128>}, {pipeline_mode = #tpu.pipeline_mode<synchronous>, transform_indices = @transform_1, window_bounds = array<i64: 1, 128>}, {pipeline_mode = #tpu.pipeline_mode<synchronous>, transform_indices = @transform_2, window_bounds = array<i64: 1, 128>}, {pipeline_mode = #tpu.pipeline_mode<synchronous>, transform_indices = @transform_3, window_bounds = array<i64: 128, 384>}, {pipeline_mode = #tpu.pipeline_mode<synchronous>, transform_indices = @transform_4, window_bounds = array<i64: 1, 384>}, {transform_indices = @transform_5, window_bounds = array<i64: 1, 4, 128, 32>}, {transform_indices = @transform_6, window_bounds = array<i64: 1, 4, 128, 32>}, {transform_indices = @transform_7, window_bounds = array<i64: 1, 4, 128, 32>}]} {
    %c0 = arith.constant 0 : index
    %c0_0 = arith.constant 0 : index
    %c0_1 = arith.constant 0 : index
    %0 = vector.load %arg2[%c0, %c0_0, %c0_1] : memref<1x128x128xf32, #tpu.memory_space<vmem>>, vector<1x128x128xf32>
    %1 = vector.shape_cast %0 : vector<1x128x128xf32> to vector<128x128xf32>
    %c0_2 = arith.constant 0 : index
    %c0_3 = arith.constant 0 : index
    %2 = vector.load %arg3[%c0_2, %c0_3] : memref<1x128xf32, #tpu.memory_space<vmem>>, vector<1x128xf32>
    %c0_4 = arith.constant 0 : index
    %c0_5 = arith.constant 0 : index
    %3 = vector.load %arg4[%c0_4, %c0_5] : memref<1x128xf32, #tpu.memory_space<vmem>>, vector<1x128xf32>
    %cst = arith.constant dense<0.000000e+00> : vector<128xf32>
    %4 = vector.multi_reduction <add>, %1, %cst [1] : vector<128x128xf32> to vector<128xf32>
    %5 = vector.shape_cast %4 : vector<128xf32> to vector<128x1xf32>
    %cst_6 = arith.constant 1.280000e+02 : f32
    %6 = vector.broadcast %cst_6 : f32 to vector<128x1xf32>
    %7 = arith.divf %5, %6 : vector<128x1xf32>
    %8 = vector.broadcast %7 : vector<128x1xf32> to vector<128x128xf32>
    %9 = arith.subf %1, %8 : vector<128x128xf32>
    %10 = arith.mulf %9, %9 : vector<128x128xf32>
    %cst_7 = arith.constant dense<0.000000e+00> : vector<128xf32>
    %11 = vector.multi_reduction <add>, %10, %cst_7 [1] : vector<128x128xf32> to vector<128xf32>
    %12 = vector.shape_cast %11 : vector<128xf32> to vector<128x1xf32>
    %cst_8 = arith.constant 1.280000e+02 : f32
    %13 = vector.broadcast %cst_8 : f32 to vector<128x1xf32>
    %14 = arith.divf %12, %13 : vector<128x1xf32>
    %cst_9 = arith.constant 9.99999974E-6 : f32
    %15 = vector.broadcast %cst_9 : f32 to vector<128x1xf32>
    %16 = arith.addf %14, %15 : vector<128x1xf32>
    %17 = math.rsqrt %16 : vector<128x1xf32>
    %18 = vector.broadcast %17 : vector<128x1xf32> to vector<128x128xf32>
    %19 = arith.mulf %9, %18 : vector<128x128xf32>
    %20 = vector.broadcast %2 : vector<1x128xf32> to vector<128x128xf32>
    %21 = arith.mulf %19, %20 : vector<128x128xf32>
    %22 = vector.broadcast %3 : vector<1x128xf32> to vector<128x128xf32>
    %23 = arith.addf %21, %22 : vector<128x128xf32>
    %24 = arith.truncf %23 : vector<128x128xf32> to vector<128x128xbf16>
    %c0_10 = arith.constant 0 : index
    %c0_11 = arith.constant 0 : index
    %25 = vector.load %arg5[%c0_10, %c0_11] : memref<128x384xbf16, #tpu.memory_space<vmem>>, vector<128x384xbf16>
    %cst_12 = arith.constant dense<0.000000e+00> : vector<128x384xf32>
    %26 = tpu.matmul %24, %25, %cst_12 {dimension_numbers = #tpu.dot_dimension_numbers<[1], [0], [0], [1], [0, 0, 1, 1], [], []>} : vector<128x128xbf16>, vector<128x384xbf16>, vector<128x384xf32> -> vector<128x384xf32>
    %c0_13 = arith.constant 0 : index
    %c0_14 = arith.constant 0 : index
    %27 = vector.load %arg6[%c0_13, %c0_14] : memref<1x384xf32, #tpu.memory_space<vmem>>, vector<1x384xf32>
    %28 = vector.broadcast %27 : vector<1x384xf32> to vector<128x384xf32>
    %29 = arith.addf %26, %28 : vector<128x384xf32>
    %30 = arith.truncf %29 : vector<128x384xf32> to vector<128x384xbf16>
    %31 = vector.extract_strided_slice %30 {offsets = [0, 0], sizes = [128, 32], strides = [1, 1]} : vector<128x384xbf16> to vector<128x32xbf16>
    %c0_15 = arith.constant 0 : index
    %c0_16 = arith.constant 0 : index
    %c0_17 = arith.constant 0 : index
    %c0_18 = arith.constant 0 : index
    %32 = vector.load %arg7[%c0_15, %c0_16, %c0_17, %c0_18] : memref<1x4x128x32xbf16, #tpu.memory_space<vmem>>, vector<1x1x128x32xbf16>
    %33 = vector.shape_cast %32 : vector<1x1x128x32xbf16> to vector<128x32xbf16>
    %34 = vector.shape_cast %31 : vector<128x32xbf16> to vector<1x1x128x32xbf16>
    tpu.vector_store %arg7[%c0_15, %c0_16, %c0_17, %c0_18], %34 {strides = array<i32>} : memref<1x4x128x32xbf16, #tpu.memory_space<vmem>>, vector<1x1x128x32xbf16>,
    %35 = vector.extract_strided_slice %30 {offsets = [0, 128], sizes = [128, 32], strides = [1, 1]} : vector<128x384xbf16> to vector<128x32xbf16>
    %c0_19 = arith.constant 0 : index
    %c0_20 = arith.constant 0 : index
    %c0_21 = arith.constant 0 : index
    %c0_22 = arith.constant 0 : index
    %36 = vector.load %arg8[%c0_19, %c0_20, %c0_21, %c0_22] : memref<1x4x128x32xbf16, #tpu.memory_space<vmem>>, vector<1x1x128x32xbf16>
    %37 = vector.shape_cast %36 : vector<1x1x128x32xbf16> to vector<128x32xbf16>
    %38 = vector.shape_cast %35 : vector<128x32xbf16> to vector<1x1x128x32xbf16>
    tpu.vector_store %arg8[%c0_19, %c0_20, %c0_21, %c0_22], %38 {strides = array<i32>} : memref<1x4x128x32xbf16, #tpu.memory_space<vmem>>, vector<1x1x128x32xbf16>,
    %39 = vector.extract_strided_slice %30 {offsets = [0, 256], sizes = [128, 32], strides = [1, 1]} : vector<128x384xbf16> to vector<128x32xbf16>
    %c0_23 = arith.constant 0 : index
    %c0_24 = arith.constant 0 : index
    %c0_25 = arith.constant 0 : index
    %c0_26 = arith.constant 0 : index
    %40 = vector.load %arg9[%c0_23, %c0_24, %c0_25, %c0_26] : memref<1x4x128x32xbf16, #tpu.memory_space<vmem>>, vector<1x1x128x32xbf16>
    %41 = vector.shape_cast %40 : vector<1x1x128x32xbf16> to vector<128x32xbf16>
    %42 = vector.shape_cast %39 : vector<128x32xbf16> to vector<1x1x128x32xbf16>
    tpu.vector_store %arg9[%c0_23, %c0_24, %c0_25, %c0_26], %42 {strides = array<i32>} : memref<1x4x128x32xbf16, #tpu.memory_space<vmem>>, vector<1x1x128x32xbf16>,
    %43 = vector.extract_strided_slice %30 {offsets = [0, 32], sizes = [128, 32], strides = [1, 1]} : vector<128x384xbf16> to vector<128x32xbf16>
    %c0_27 = arith.constant 0 : index
    %c1 = arith.constant 1 : index
    %c0_28 = arith.constant 0 : index
    %c0_29 = arith.constant 0 : index
    %44 = vector.load %arg7[%c0_27, %c1, %c0_28, %c0_29] : memref<1x4x128x32xbf16, #tpu.memory_space<vmem>>, vector<1x1x128x32xbf16>
    %45 = vector.shape_cast %44 : vector<1x1x128x32xbf16> to vector<128x32xbf16>
    %46 = vector.shape_cast %43 : vector<128x32xbf16> to vector<1x1x128x32xbf16>
    tpu.vector_store %arg7[%c0_27, %c1, %c0_28, %c0_29], %46 {strides = array<i32>} : memref<1x4x128x32xbf16, #tpu.memory_space<vmem>>, vector<1x1x128x32xbf16>,
    %47 = vector.extract_strided_slice %30 {offsets = [0, 160], sizes = [128, 32], strides = [1, 1]} : vector<128x384xbf16> to vector<128x32xbf16>
    %c0_30 = arith.constant 0 : index
    %c1_31 = arith.constant 1 : index
    %c0_32 = arith.constant 0 : index
    %c0_33 = arith.constant 0 : index
    %48 = vector.load %arg8[%c0_30, %c1_31, %c0_32, %c0_33] : memref<1x4x128x32xbf16, #tpu.memory_space<vmem>>, vector<1x1x128x32xbf16>
    %49 = vector.shape_cast %48 : vector<1x1x128x32xbf16> to vector<128x32xbf16>
    %50 = vector.shape_cast %47 : vector<128x32xbf16> to vector<1x1x128x32xbf16>
    tpu.vector_store %arg8[%c0_30, %c1_31, %c0_32, %c0_33], %50 {strides = array<i32>} : memref<1x4x128x32xbf16, #tpu.memory_space<vmem>>, vector<1x1x128x32xbf16>,
    %51 = vector.extract_strided_slice %30 {offsets = [0, 288], sizes = [128, 32], strides = [1, 1]} : vector<128x384xbf16> to vector<128x32xbf16>
    %c0_34 = arith.constant 0 : index
    %c1_35 = arith.constant 1 : index
    %c0_36 = arith.constant 0 : index
    %c0_37 = arith.constant 0 : index
    %52 = vector.load %arg9[%c0_34, %c1_35, %c0_36, %c0_37] : memref<1x4x128x32xbf16, #tpu.memory_space<vmem>>, vector<1x1x128x32xbf16>
    %53 = vector.shape_cast %52 : vector<1x1x128x32xbf16> to vector<128x32xbf16>
    %54 = vector.shape_cast %51 : vector<128x32xbf16> to vector<1x1x128x32xbf16>
    tpu.vector_store %arg9[%c0_34, %c1_35, %c0_36, %c0_37], %54 {strides = array<i32>} : memref<1x4x128x32xbf16, #tpu.memory_space<vmem>>, vector<1x1x128x32xbf16>,
    %55 = vector.extract_strided_slice %30 {offsets = [0, 64], sizes = [128, 32], strides = [1, 1]} : vector<128x384xbf16> to vector<128x32xbf16>
    %c0_38 = arith.constant 0 : index
    %c2 = arith.constant 2 : index
    %c0_39 = arith.constant 0 : index
    %c0_40 = arith.constant 0 : index
    %56 = vector.load %arg7[%c0_38, %c2, %c0_39, %c0_40] : memref<1x4x128x32xbf16, #tpu.memory_space<vmem>>, vector<1x1x128x32xbf16>
    %57 = vector.shape_cast %56 : vector<1x1x128x32xbf16> to vector<128x32xbf16>
    %58 = vector.shape_cast %55 : vector<128x32xbf16> to vector<1x1x128x32xbf16>
    tpu.vector_store %arg7[%c0_38, %c2, %c0_39, %c0_40], %58 {strides = array<i32>} : memref<1x4x128x32xbf16, #tpu.memory_space<vmem>>, vector<1x1x128x32xbf16>,
    %59 = vector.extract_strided_slice %30 {offsets = [0, 192], sizes = [128, 32], strides = [1, 1]} : vector<128x384xbf16> to vector<128x32xbf16>
    %c0_41 = arith.constant 0 : index
    %c2_42 = arith.constant 2 : index
    %c0_43 = arith.constant 0 : index
    %c0_44 = arith.constant 0 : index
    %60 = vector.load %arg8[%c0_41, %c2_42, %c0_43, %c0_44] : memref<1x4x128x32xbf16, #tpu.memory_space<vmem>>, vector<1x1x128x32xbf16>
    %61 = vector.shape_cast %60 : vector<1x1x128x32xbf16> to vector<128x32xbf16>
    %62 = vector.shape_cast %59 : vector<128x32xbf16> to vector<1x1x128x32xbf16>
    tpu.vector_store %arg8[%c0_41, %c2_42, %c0_43, %c0_44], %62 {strides = array<i32>} : memref<1x4x128x32xbf16, #tpu.memory_space<vmem>>, vector<1x1x128x32xbf16>,
    %63 = vector.extract_strided_slice %30 {offsets = [0, 320], sizes = [128, 32], strides = [1, 1]} : vector<128x384xbf16> to vector<128x32xbf16>
    %c0_45 = arith.constant 0 : index
    %c2_46 = arith.constant 2 : index
    %c0_47 = arith.constant 0 : index
    %c0_48 = arith.constant 0 : index
    %64 = vector.load %arg9[%c0_45, %c2_46, %c0_47, %c0_48] : memref<1x4x128x32xbf16, #tpu.memory_space<vmem>>, vector<1x1x128x32xbf16>
    %65 = vector.shape_cast %64 : vector<1x1x128x32xbf16> to vector<128x32xbf16>
    %66 = vector.shape_cast %63 : vector<128x32xbf16> to vector<1x1x128x32xbf16>
    tpu.vector_store %arg9[%c0_45, %c2_46, %c0_47, %c0_48], %66 {strides = array<i32>} : memref<1x4x128x32xbf16, #tpu.memory_space<vmem>>, vector<1x1x128x32xbf16>,
    %67 = vector.extract_strided_slice %30 {offsets = [0, 96], sizes = [128, 32], strides = [1, 1]} : vector<128x384xbf16> to vector<128x32xbf16>
    %c0_49 = arith.constant 0 : index
    %c3 = arith.constant 3 : index
    %c0_50 = arith.constant 0 : index
    %c0_51 = arith.constant 0 : index
    %68 = vector.load %arg7[%c0_49, %c3, %c0_50, %c0_51] : memref<1x4x128x32xbf16, #tpu.memory_space<vmem>>, vector<1x1x128x32xbf16>
    %69 = vector.shape_cast %68 : vector<1x1x128x32xbf16> to vector<128x32xbf16>
    %70 = vector.shape_cast %67 : vector<128x32xbf16> to vector<1x1x128x32xbf16>
    tpu.vector_store %arg7[%c0_49, %c3, %c0_50, %c0_51], %70 {strides = array<i32>} : memref<1x4x128x32xbf16, #tpu.memory_space<vmem>>, vector<1x1x128x32xbf16>,
    %71 = vector.extract_strided_slice %30 {offsets = [0, 224], sizes = [128, 32], strides = [1, 1]} : vector<128x384xbf16> to vector<128x32xbf16>
    %c0_52 = arith.constant 0 : index
    %c3_53 = arith.constant 3 : index
    %c0_54 = arith.constant 0 : index
    %c0_55 = arith.constant 0 : index
    %72 = vector.load %arg8[%c0_52, %c3_53, %c0_54, %c0_55] : memref<1x4x128x32xbf16, #tpu.memory_space<vmem>>, vector<1x1x128x32xbf16>
    %73 = vector.shape_cast %72 : vector<1x1x128x32xbf16> to vector<128x32xbf16>
    %74 = vector.shape_cast %71 : vector<128x32xbf16> to vector<1x1x128x32xbf16>
    tpu.vector_store %arg8[%c0_52, %c3_53, %c0_54, %c0_55], %74 {strides = array<i32>} : memref<1x4x128x32xbf16, #tpu.memory_space<vmem>>, vector<1x1x128x32xbf16>,
    %75 = vector.extract_strided_slice %30 {offsets = [0, 352], sizes = [128, 32], strides = [1, 1]} : vector<128x384xbf16> to vector<128x32xbf16>
    %c0_56 = arith.constant 0 : index
    %c3_57 = arith.constant 3 : index
    %c0_58 = arith.constant 0 : index
    %c0_59 = arith.constant 0 : index
    %76 = vector.load %arg9[%c0_56, %c3_57, %c0_58, %c0_59] : memref<1x4x128x32xbf16, #tpu.memory_space<vmem>>, vector<1x1x128x32xbf16>
    %77 = vector.shape_cast %76 : vector<1x1x128x32xbf16> to vector<128x32xbf16>
    %78 = vector.shape_cast %75 : vector<128x32xbf16> to vector<1x1x128x32xbf16>
    tpu.vector_store %arg9[%c0_56, %c3_57, %c0_58, %c0_59], %78 {strides = array<i32>} : memref<1x4x128x32xbf16, #tpu.memory_space<vmem>>, vector<1x1x128x32xbf16>,
    return
  }
  func.func @transform_0(%arg0: i32, %arg1: i32) -> (i32, i32, i32) {
    %c0_i32 = arith.constant 0 : i32
    %c0_i32_0 = arith.constant 0 : i32
    return %arg0, %arg1, %c0_i32 : i32, i32, i32
  }
  func.func @transform_1(%arg0: i32, %arg1: i32) -> (i32, i32) {
    %c0_i32 = arith.constant 0 : i32
    %c0_i32_0 = arith.constant 0 : i32
    %c0_i32_1 = arith.constant 0 : i32
    return %c0_i32, %c0_i32_0 : i32, i32
  }
  func.func @transform_2(%arg0: i32, %arg1: i32) -> (i32, i32) {
    %c0_i32 = arith.constant 0 : i32
    %c0_i32_0 = arith.constant 0 : i32
    %c0_i32_1 = arith.constant 0 : i32
    return %c0_i32, %c0_i32_0 : i32, i32
  }
  func.func @transform_3(%arg0: i32, %arg1: i32) -> (i32, i32) {
    %c0_i32 = arith.constant 0 : i32
    %c0_i32_0 = arith.constant 0 : i32
    %c0_i32_1 = arith.constant 0 : i32
    return %c0_i32, %c0_i32_0 : i32, i32
  }
  func.func @transform_4(%arg0: i32, %arg1: i32) -> (i32, i32) {
    %c0_i32 = arith.constant 0 : i32
    %c0_i32_0 = arith.constant 0 : i32
    %c0_i32_1 = arith.constant 0 : i32
    return %c0_i32, %c0_i32_0 : i32, i32
  }
  func.func @transform_5(%arg0: i32, %arg1: i32) -> (i32, i32, i32, i32) {
    %c0_i32 = arith.constant 0 : i32
    %c0_i32_0 = arith.constant 0 : i32
    %c0_i32_1 = arith.constant 0 : i32
    return %arg0, %c0_i32, %arg1, %c0_i32_0 : i32, i32, i32, i32
  }
  func.func @transform_6(%arg0: i32, %arg1: i32) -> (i32, i32, i32, i32) {
    %c0_i32 = arith.constant 0 : i32
    %c0_i32_0 = arith.constant 0 : i32
    %c0_i32_1 = arith.constant 0 : i32
    return %arg0, %c0_i32, %arg1, %c0_i32_0 : i32, i32, i32, i32
  }
  func.func @transform_7(%arg0: i32, %arg1: i32) -> (i32, i32, i32, i32) {
    %c0_i32 = arith.constant 0 : i32
    %c0_i32_0 = arith.constant 0 : i32
    %c0_i32_1 = arith.constant 0 : i32
    return %arg0, %c0_i32, %arg1, %c0_i32_0 : i32, i32, i32, i32
  }
}

</mosaic_0001>

<llo_original>
// kernel: tpu_custom_call.1
$region0: #{tpu_custom_call.1}
  #allocation0 [shape = 'u32[]', space=smem, size = 0x4, offset = 0x4, fixed_abs, tag = 'smem constant byte address 0x4 - core index']
  #allocation1 [shape = 'u32[144,128]{1,0:T(1,128)}', space=vmem, size = 0x12000, scoped, tag = 'internal scratch']
  %s0 = inlined_call_operand.hbm [shape: f32[2,256,128], index: 0, kind: input, shape index: {}]
  %s1 = inlined_call_operand.vmem [shape: f32[1,128], index: 1, kind: input, shape index: {}]
  %s2 = inlined_call_operand.vmem [shape: f32[1,128], index: 2, kind: input, shape index: {}]
  %s3 = inlined_call_operand.hbm [shape: bf16[128,384], index: 3, kind: input, shape index: {}]
  %s4 = inlined_call_operand.vmem [shape: f32[1,384], index: 4, kind: input, shape index: {}]
  %s5 = inlined_call_operand.vmem [shape: bf16[2,4,256,32], index: 5, kind: output, shape index: {0}]
  %s6 = inlined_call_operand.vmem [shape: bf16[2,4,256,32], index: 6, kind: output, shape index: {1}]
  %s7 = inlined_call_operand.vmem [shape: bf16[2,4,256,32], index: 7, kind: output, shape index: {2}]
  %8 = xla_tuple %s5, %s6, %s7
  %s9 = sld [smem:[#allocation0]]
  $region188: #{tpu_custom_call.1} parent=0
    _
  %s11 = ssub.s32 1, %s9
  %s12 = scalar_select 0, %s11, %s9
  $region1: #{tpu_custom_call.1} parent=0
    #allocation2 [shape = 'u8[131072]{0}', space=vmem, size = 0x20000, scoped, tag = 'input window, operand 0']
    #allocation3 [shape = 's32[2]{0}', space=sflag, size = 0x8, scoped, tag = 'scoped memory for tpu_custom_call.1']
    #allocation4 [shape = 'u8[98304]{0}', space=vmem, size = 0x18000, scoped, tag = 'input window, operand 3, single buffered']
    #allocation5 [shape = 's32[1]{0}', space=sflag, size = 0x4, scoped, tag = 'scoped memory for tpu_custom_call.1']
    #allocation6 [shape = 'u8[262144]{0}', space=vmem, size = 0x40000, scoped, tag = 'output window, operand 0']
    #allocation7 [shape = 'u8[262144]{0}', space=vmem, size = 0x40000, scoped, tag = 'output window, operand 1']
    #allocation8 [shape = 'u8[262144]{0}', space=vmem, size = 0x40000, scoped, tag = 'output window, operand 2']
    %13 = vsyncpa [#allocation3], 0
    %s14 = scalar_lea.sflag [#allocation3], 1
    %15 = vsyncpa %s14, 0
    %16 = vsyncpa [#allocation5], 0
    loop: start=0, step=1, limit=6
    $region2: #{tpu_custom_call.1} parent=1 // loop_pre_header
      _
    $region3: #{tpu_custom_call.1} parent=1 // loop_header
      %s18 = sphi 0, %s22
      %p19 = scmp.ge.s32.totalorder %s18, 6
      %s25 = sphi 0, %s37
      %s26 = sphi 0, %s33
      %s27 = sphi 0, %s25
      %s28 = sphi 0, %s26
      %s29 = sphi 0, %s27
      %s30 = sphi 0, %s28
      %s42 = sphi 0, %s44
      %s45 = sphi 0, %s42
      %s46 = sphi 0, %s45
      %s62 = sphi 0, %s46
      %s66 = sphi 0, %s66
      %s68 = sphi 0, %s66
      %s69 = sphi 0, %s68
      %s83 = sphi 0, %s69
      %s87 = sphi 0, %s87
      %s89 = sphi 0, %s87
      %s90 = sphi 0, %s89
      %s104 = sphi 0, %s90
      %s108 = sphi 0, %s108
      %s110 = sphi 0, %s108
      %s111 = sphi 0, %s110
      %s125 = sphi 0, %s111
      %s129 = sphi 0, %s129
      %s131 = sphi 0, %s129
      %s132 = sphi 0, %s131
      %s146 = sphi 0, %s132
      %s154 = sphi 0, %s156
      %s157 = sphi 0, %s154
      %s158 = sphi 0, %s157
      %s174 = sphi 0, %s158
      %s182 = sphi 0, %s184
      %s185 = sphi 0, %s182
      %s186 = sphi 0, %s185
      %s202 = sphi 0, %s186
      %s210 = sphi 0, %s212
      %s213 = sphi 0, %s210
      %s214 = sphi 0, %s213
      %s230 = sphi 0, %s214
    $region4: #{tpu_custom_call.1} parent=1 // loop_header_branch
      %21 = sbr.rel (%p19) target = $region8
    $region5: #{tpu_custom_call.1} parent=1 // loop_body
      %s23 = ssub.s32 %s18, 1
      %s24 = ssub.s32 %s18, 2
      %s31 = sadd.s32 1, %s26
      %p32 = scmp.ge.s32.totalorder %s31, 2
      %s33 = scalar_select %p32, 0, %s31
      %s34 = sadd.s32 1, %s25
      %s35 = scalar_select %p32, %s34, %s25
      %p36 = scmp.ge.s32.totalorder %s35, 2
      %s37 = scalar_select %p36, 0, %s35
      %s38 = ssub.s32 %s25, %s37
      %s39 = ssub.s32 %s26, %s33
      %s40 = sor.u32 %s38, %s39
      %p41 = scmp.eq.s32.totalorder %s40, 0
      %s43 = sadd.s32 %s42, 1
      %s44 = scalar_select %p41, %s42, %s43
      %p47 = pneg %p41
      %p48 = scmp.eq.s32.totalorder %s18, 3
      %p49 = por %p47, %p48
      %p50 = scmp.ne.s32.totalorder %s42, %s45
      %p51 = scmp.eq.s32.totalorder %s18, 0
      %p52 = por %p50, %p51
      %p53 = scmp.ne.s32.totalorder %s42, %s45
      %p54 = scmp.eq.s32.totalorder %s23, 3
      %p55 = por %p53, %p54
      %p56 = scmp.ne.s32.totalorder %s45, %s46
      %p57 = scmp.eq.s32.totalorder %s23, 0
      %p58 = por %p56, %p57
      %p59 = scmp.ne.s32.totalorder %s45, %s46
      %p60 = scmp.eq.s32.totalorder %s24, 3
      %p61 = por %p59, %p60
      %p63 = scmp.ne.s32.totalorder %s46, %s62
      %p64 = scmp.eq.s32.totalorder %s24, 0
      %p65 = por %p63, %p64
      %s67 = sadd.s32 %s66, 1
      %p70 = scmp.eq.s32.totalorder %s18, 3
      %p71 = scmp.ne.s32.totalorder %s66, %s68
      %p72 = scmp.eq.s32.totalorder %s18, 0
      %p73 = por %p71, %p72
      %p74 = scmp.ne.s32.totalorder %s66, %s68
      %p75 = scmp.eq.s32.totalorder %s23, 3
      %p76 = por %p74, %p75
      %p77 = scmp.ne.s32.totalorder %s68, %s69
      %p78 = scmp.eq.s32.totalorder %s23, 0
      %p79 = por %p77, %p78
      %p80 = scmp.ne.s32.totalorder %s68, %s69
      %p81 = scmp.eq.s32.totalorder %s24, 3
      %p82 = por %p80, %p81
      %p84 = scmp.ne.s32.totalorder %s69, %s83
      %p85 = scmp.eq.s32.totalorder %s24, 0
      %p86 = por %p84, %p85
      %s88 = sadd.s32 %s87, 1
      %p91 = scmp.eq.s32.totalorder %s18, 3
      %p92 = scmp.ne.s32.totalorder %s87, %s89
      %p93 = scmp.eq.s32.totalorder %s18, 0
      %p94 = por %p92, %p93
      %p95 = scmp.ne.s32.totalorder %s87, %s89
      %p96 = scmp.eq.s32.totalorder %s23, 3
      %p97 = por %p95, %p96
      %p98 = scmp.ne.s32.totalorder %s89, %s90
      %p99 = scmp.eq.s32.totalorder %s23, 0
      %p100 = por %p98, %p99
      %p101 = scmp.ne.s32.totalorder %s89, %s90
      %p102 = scmp.eq.s32.totalorder %s24, 3
      %p103 = por %p101, %p102
      %p105 = scmp.ne.s32.totalorder %s90, %s104
      %p106 = scmp.eq.s32.totalorder %s24, 0
      %p107 = por %p105, %p106
      %s109 = sadd.s32 %s108, 1
      %p112 = scmp.eq.s32.totalorder %s18, 3
      %p113 = scmp.ne.s32.totalorder %s108, %s110
      %p114 = scmp.eq.s32.totalorder %s18, 0
      %p115 = por %p113, %p114
      %p116 = scmp.ne.s32.totalorder %s108, %s110
      %p117 = scmp.eq.s32.totalorder %s23, 3
      %p118 = por %p116, %p117
      %p119 = scmp.ne.s32.totalorder %s110, %s111
      %p120 = scmp.eq.s32.totalorder %s23, 0
      %p121 = por %p119, %p120
      %p122 = scmp.ne.s32.totalorder %s110, %s111
      %p123 = scmp.eq.s32.totalorder %s24, 3
      %p124 = por %p122, %p123
      %p126 = scmp.ne.s32.totalorder %s111, %s125
      %p127 = scmp.eq.s32.totalorder %s24, 0
      %p128 = por %p126, %p127
      %s130 = sadd.s32 %s129, 1
      %p133 = scmp.eq.s32.totalorder %s18, 3
      %p134 = scmp.ne.s32.totalorder %s129, %s131
      %p135 = scmp.eq.s32.totalorder %s18, 0
      %p136 = por %p134, %p135
      %p137 = scmp.ne.s32.totalorder %s129, %s131
      %p138 = scmp.eq.s32.totalorder %s23, 3
      %p139 = por %p137, %p138
      %p140 = scmp.ne.s32.totalorder %s131, %s132
      %p141 = scmp.eq.s32.totalorder %s23, 0
      %p142 = por %p140, %p141
      %p143 = scmp.ne.s32.totalorder %s131, %s132
      %p144 = scmp.eq.s32.totalorder %s24, 3
      %p145 = por %p143, %p144
      %p147 = scmp.ne.s32.totalorder %s132, %s146
      %p148 = scmp.eq.s32.totalorder %s24, 0
      %p149 = por %p147, %p148
      %s150 = ssub.s32 %s25, %s37
      %s151 = ssub.s32 %s26, %s33
      %s152 = sor.u32 %s150, %s151
      %p153 = scmp.eq.s32.totalorder %s152, 0
      %s155 = sadd.s32 %s154, 1
      %s156 = scalar_select %p153, %s154, %s155
      %p159 = pneg %p153
      %p160 = scmp.eq.s32.totalorder %s18, 3
      %p161 = por %p159, %p160
      %p162 = scmp.ne.s32.totalorder %s154, %s157
      %p163 = scmp.eq.s32.totalorder %s18, 0
      %p164 = por %p162, %p163
      %p165 = scmp.ne.s32.totalorder %s154, %s157
      %p166 = scmp.eq.s32.totalorder %s23, 3
      %p167 = por %p165, %p166
      %p168 = scmp.ne.s32.totalorder %s157, %s158
      %p169 = scmp.eq.s32.totalorder %s23, 0
      %p170 = por %p168, %p169
      %p171 = scmp.ne.s32.totalorder %s157, %s158
      %p172 = scmp.eq.s32.totalorder %s24, 3
      %p173 = por %p171, %p172
      %p175 = scmp.ne.s32.totalorder %s158, %s174
      %p176 = scmp.eq.s32.totalorder %s24, 0
      %p177 = por %p175, %p176
      %s178 = ssub.s32 %s25, %s37
      %s179 = ssub.s32 %s26, %s33
      %s180 = sor.u32 %s178, %s179
      %p181 = scmp.eq.s32.totalorder %s180, 0
      %s183 = sadd.s32 %s182, 1
      %s184 = scalar_select %p181, %s182, %s183
      %p187 = pneg %p181
      %p188 = scmp.eq.s32.totalorder %s18, 3
      %p189 = por %p187, %p188
      %p190 = scmp.ne.s32.totalorder %s182, %s185
      %p191 = scmp.eq.s32.totalorder %s18, 0
      %p192 = por %p190, %p191
      %p193 = scmp.ne.s32.totalorder %s182, %s185
      %p194 = scmp.eq.s32.totalorder %s23, 3
      %p195 = por %p193, %p194
      %p196 = scmp.ne.s32.totalorder %s185, %s186
      %p197 = scmp.eq.s32.totalorder %s23, 0
      %p198 = por %p196, %p197
      %p199 = scmp.ne.s32.totalorder %s185, %s186
      %p200 = scmp.eq.s32.totalorder %s24, 3
      %p201 = por %p199, %p200
      %p203 = scmp.ne.s32.totalorder %s186, %s202
      %p204 = scmp.eq.s32.totalorder %s24, 0
      %p205 = por %p203, %p204
      %s206 = ssub.s32 %s25, %s37
      %s207 = ssub.s32 %s26, %s33
      %s208 = sor.u32 %s206, %s207
      %p209 = scmp.eq.s32.totalorder %s208, 0
      %s211 = sadd.s32 %s210, 1
      %s212 = scalar_select %p209, %s210, %s211
      %p215 = pneg %p209
      %p216 = scmp.eq.s32.totalorder %s18, 3
      %p217 = por %p215, %p216
      %p218 = scmp.ne.s32.totalorder %s210, %s213
      %p219 = scmp.eq.s32.totalorder %s18, 0
      %p220 = por %p218, %p219
      %p221 = scmp.ne.s32.totalorder %s210, %s213
      %p222 = scmp.eq.s32.totalorder %s23, 3
      %p223 = por %p221, %p222
      %p224 = scmp.ne.s32.totalorder %s213, %s214
      %p225 = scmp.eq.s32.totalorder %s23, 0
      %p226 = por %p224, %p225
      %p227 = scmp.ne.s32.totalorder %s213, %s214
      %p228 = scmp.eq.s32.totalorder %s24, 3
      %p229 = por %p227, %p228
      %p231 = scmp.ne.s32.totalorder %s214, %s230
      %p232 = scmp.eq.s32.totalorder %s24, 0
      %p233 = por %p231, %p232
      %p234 = scmp.le.s32.totalorder 1, %s18
      %p235 = scmp.lt.s32.totalorder %s18, 5
      %p236 = pnand %p234, %p235
      %p237 = pneg %p236
      // Predicated region
      $region9: #{tpu_custom_call.1} parent=5 // pred_check
        _
      $region10: #{tpu_custom_call.1} parent=5 // pred_check_branch
        %239 = sbr.rel (%p236) target = $region12
      $region11: #{tpu_custom_call.1} parent=5 // pred_region
        %s240 = ssub.s32 %s18, 1
        // Predicated region
        $region13: #{tpu_custom_call.1} parent=11 // pred_check
          %p241 = pneg %p79
        $region14: #{tpu_custom_call.1} parent=11 // pred_check_branch
          %243 = sbr.rel (%p241) target = $region16
        $region15: #{tpu_custom_call.1} parent=11 // pred_region
          _
        $region16: #{tpu_custom_call.1} parent=11 // pred_fallthru
          _
        // Predicated region
        $region17: #{tpu_custom_call.1} parent=11 // pred_check
          %p244 = pneg %p100
        $region18: #{tpu_custom_call.1} parent=11 // pred_check_branch
          %246 = sbr.rel (%p244) target = $region20
        $region19: #{tpu_custom_call.1} parent=11 // pred_region
          _
        $region20: #{tpu_custom_call.1} parent=11 // pred_fallthru
          _
        // Predicated region
        $region21: #{tpu_custom_call.1} parent=11 // pred_check
          %p247 = pneg %p121
        $region22: #{tpu_custom_call.1} parent=11 // pred_check_branch
          %249 = sbr.rel (%p247) target = $region24
        $region23: #{tpu_custom_call.1} parent=11 // pred_region
          %s251 = ssub.s32 3072, 3072
          %252 = vsyncadd [#allocation5], %s251
          %s253 = sshll.u32 [#allocation4], 4
          %s254 = int_to_ptr.vmem [resolvable:$true] %s253
          %259 = dma.hbm_to_vmem [thread:$0]  %s3, 3072, %s254, [#allocation5], 192, 192, 12
        $region24: #{tpu_custom_call.1} parent=11 // pred_fallthru
          _
        // Predicated region
        $region25: #{tpu_custom_call.1} parent=11 // pred_check
          %p260 = pneg %p142
        $region26: #{tpu_custom_call.1} parent=11 // pred_check_branch
          %262 = sbr.rel (%p260) target = $region28
        $region27: #{tpu_custom_call.1} parent=11 // pred_region
          _
        $region28: #{tpu_custom_call.1} parent=11 // pred_fallthru
          _
      $region12: #{tpu_custom_call.1} parent=5 // pred_fallthru
        _
      %p263 = scmp.lt.s32.totalorder %s18, 4
      // Predicated region
      $region29: #{tpu_custom_call.1} parent=5 // pred_check
        %p264 = pneg %p263
      $region30: #{tpu_custom_call.1} parent=5 // pred_check_branch
        %266 = sbr.rel (%p264) target = $region32
      $region31: #{tpu_custom_call.1} parent=5 // pred_region
        // Predicated region
        $region33: #{tpu_custom_call.1} parent=31 // pred_check
          %p267 = pneg %p52
        $region34: #{tpu_custom_call.1} parent=31 // pred_check_branch
          %269 = sbr.rel (%p267) target = $region36
        $region35: #{tpu_custom_call.1} parent=31 // pred_region
          %s270 = sand.u32 %s42, 1
          %s271 = scalar_lea.sflag [#allocation3], %s270
          %s272 = sand.u32 %s42, 1
          %s273 = smul.addr %s272, 128
          %s274 = scalar_lea.vmem [#allocation2], %s273
          %s275 = smul.u32 16, %s26
          %s277 = ssub.s32 2048, 2048
          %278 = vsyncadd %s271, %s277
          %s279 = smul.addr %s25, 32
          %s280 = sadd.s32 %s275, %s279
          %s281 = smul.addr %s280, 128
          %s282 = scalar_lea.hbm %s0, %s281
          %s283 = sshll.u32 %s274, 4
          %s284 = int_to_ptr.vmem [resolvable:$true] %s283
          %289 = dma.hbm_to_vmem [thread:$0]  %s282, 2048, %s284, %s271, 128, 128, 8
        $region36: #{tpu_custom_call.1} parent=31 // pred_fallthru
          _
      $region32: #{tpu_custom_call.1} parent=5 // pred_fallthru
        _
      %p290 = scmp.le.s32.totalorder 1, %s18
      %p291 = scmp.lt.s32.totalorder %s18, 5
      %p292 = pnand %p290, %p291
      %p293 = pneg %p292
      // Predicated region
      $region37: #{tpu_custom_call.1} parent=5 // pred_check
        _
      $region38: #{tpu_custom_call.1} parent=5 // pred_check_branch
        %295 = sbr.rel (%p292) target = $region40
      $region39: #{tpu_custom_call.1} parent=5 // pred_region
        %s296 = ssub.s32 %s18, 1
        %s297 = sand.u32 %s45, 1
        %s298 = scalar_lea.sflag [#allocation3], %s297
        %s299 = sand.u32 %s45, 1
        %s300 = smul.addr %s299, 128
        %s301 = scalar_lea.vmem [#allocation2], %s300
        // Predicated region
        $region41: #{tpu_custom_call.1} parent=39 // pred_check
          %p302 = pneg %p58
        $region42: #{tpu_custom_call.1} parent=39 // pred_check_branch
          %304 = sbr.rel (%p302) target = $region44
        $region43: #{tpu_custom_call.1} parent=39 // pred_region
          %305 = dma.done %s298, 2048
        $region44: #{tpu_custom_call.1} parent=39 // pred_fallthru
          _
        // Predicated region
        $region45: #{tpu_custom_call.1} parent=39 // pred_check
          %p306 = pneg %p121
        $region46: #{tpu_custom_call.1} parent=39 // pred_check_branch
          %308 = sbr.rel (%p306) target = $region48
        $region47: #{tpu_custom_call.1} parent=39 // pred_region
          %309 = dma.done [#allocation5], 3072
        $region48: #{tpu_custom_call.1} parent=39 // pred_fallthru
          _
        %s310 = sand.u32 %s45, 1
        %s311 = scalar_lea.sflag [#allocation3], %s310
        %s312 = sand.u32 %s45, 1
        %s313 = smul.addr %s312, 128
        %s314 = scalar_lea.vmem [#allocation2], %s313
        %p315 = pneg %p58
        %p316 = pneg %p55
        %p317 = pneg %p79
        %p318 = pneg %p76
        %p319 = pneg %p100
        %p320 = pneg %p97
        %p321 = pneg %p121
        %p322 = pneg %p118
        %p323 = pneg %p142
        %p324 = pneg %p139
        %p325 = pneg %p170
        %p326 = pneg %p167
        %s327 = sand.u32 %s157, 1
        %s328 = sand.u32 %s157, 1
        %s329 = smul.addr %s328, 256
        %s330 = scalar_lea.vmem [#allocation6], %s329
        %p331 = pneg %p198
        %p332 = pneg %p195
        %s333 = sand.u32 %s185, 1
        %s334 = sand.u32 %s185, 1
        %s335 = smul.addr %s334, 256
        %s336 = scalar_lea.vmem [#allocation7], %s335
        %p337 = pneg %p226
        %p338 = pneg %p223
        %s339 = sand.u32 %s213, 1
        %s340 = sand.u32 %s213, 1
        %s341 = smul.addr %s340, 256
        %s342 = scalar_lea.vmem [#allocation8], %s341
        %s343 = smul.u32 16, %s28
        %s344 = smul.u32 16, %s28
        %s345 = smul.u32 16, %s28
        %s346 = smul.u32 16, %s28
        %v348 = vld [vmem:[%s301] sm:$0xff]
        %v349 = vld [vmem:[%s301 + $0x8] sm:$0xff]
        %v350 = vld [vmem:[%s301 + $0x10] sm:$0xff]
        %v351 = vld [vmem:[%s301 + $0x18] sm:$0xff]
        %v352 = vld [vmem:[%s301 + $0x20] sm:$0xff]
        %v353 = vld [vmem:[%s301 + $0x28] sm:$0xff]
        %v354 = vld [vmem:[%s301 + $0x30] sm:$0xff]
        %v355 = vld [vmem:[%s301 + $0x38] sm:$0xff]
        %v356 = vld [vmem:[%s301 + $0x40] sm:$0xff]
        %v357 = vld [vmem:[%s301 + $0x48] sm:$0xff]
        %v358 = vld [vmem:[%s301 + $0x50] sm:$0xff]
        %v359 = vld [vmem:[%s301 + $0x58] sm:$0xff]
        %v360 = vld [vmem:[%s301 + $0x60] sm:$0xff]
        %v361 = vld [vmem:[%s301 + $0x68] sm:$0xff]
        %v362 = vld [vmem:[%s301 + $0x70] sm:$0xff]
        %v363 = vld [vmem:[%s301 + $0x78] sm:$0xff]
        %v364 = vld [vmem:[%s1] sm:$0x1]
        %v365 = vld [vmem:[%s2] sm:$0x1]
        %366 = vadd.xlane.f32.xlu0 %v348
        %v367 = vpop.xlane.xlu0 %366
        %368 = vadd.xlane.f32.xlu0 %v349
        %v369 = vpop.xlane.xlu0 %368
        %370 = vadd.xlane.f32.xlu0 %v350
        %v371 = vpop.xlane.xlu0 %370
        %372 = vadd.xlane.f32.xlu0 %v351
        %v373 = vpop.xlane.xlu0 %372
        %374 = vadd.xlane.f32.xlu0 %v352
        %v375 = vpop.xlane.xlu0 %374
        %376 = vadd.xlane.f32.xlu0 %v353
        %v377 = vpop.xlane.xlu0 %376
        %378 = vadd.xlane.f32.xlu0 %v354
        %v379 = vpop.xlane.xlu0 %378
        %380 = vadd.xlane.f32.xlu0 %v355
        %v381 = vpop.xlane.xlu0 %380
        %382 = vadd.xlane.f32.xlu0 %v356
        %v383 = vpop.xlane.xlu0 %382
        %384 = vadd.xlane.f32.xlu0 %v357
        %v385 = vpop.xlane.xlu0 %384
        %386 = vadd.xlane.f32.xlu0 %v358
        %v387 = vpop.xlane.xlu0 %386
        %388 = vadd.xlane.f32.xlu0 %v359
        %v389 = vpop.xlane.xlu0 %388
        %390 = vadd.xlane.f32.xlu0 %v360
        %v391 = vpop.xlane.xlu0 %390
        %392 = vadd.xlane.f32.xlu0 %v361
        %v393 = vpop.xlane.xlu0 %392
        %394 = vadd.xlane.f32.xlu0 %v362
        %v395 = vpop.xlane.xlu0 %394
        %396 = vadd.xlane.f32.xlu0 %v363
        %v397 = vpop.xlane.xlu0 %396
        %v398 = vrcp.pop 128.0
        %v399 = vmul.f32 %v367, %v398
        %v400 = vmul.f32 %v369, %v398
        %v401 = vmul.f32 %v371, %v398
        %v402 = vmul.f32 %v373, %v398
        %v403 = vmul.f32 %v375, %v398
        %v404 = vmul.f32 %v377, %v398
        %v405 = vmul.f32 %v379, %v398
        %v406 = vmul.f32 %v381, %v398
        %v407 = vmul.f32 %v383, %v398
        %v408 = vmul.f32 %v385, %v398
        %v409 = vmul.f32 %v387, %v398
        %v410 = vmul.f32 %v389, %v398
        %v411 = vmul.f32 %v391, %v398
        %v412 = vmul.f32 %v393, %v398
        %v413 = vmul.f32 %v395, %v398
        %v414 = vmul.f32 %v397, %v398
        %v415 = vsub.f32 %v348, %v399
        %v416 = vsub.f32 %v349, %v400
        %v417 = vsub.f32 %v350, %v401
        %v418 = vsub.f32 %v351, %v402
        %v419 = vsub.f32 %v352, %v403
        %v420 = vsub.f32 %v353, %v404
        %v421 = vsub.f32 %v354, %v405
        %v422 = vsub.f32 %v355, %v406
        %v423 = vsub.f32 %v356, %v407
        %v424 = vsub.f32 %v357, %v408
        %v425 = vsub.f32 %v358, %v409
        %v426 = vsub.f32 %v359, %v410
        %v427 = vsub.f32 %v360, %v411
        %v428 = vsub.f32 %v361, %v412
        %v429 = vsub.f32 %v362, %v413
        %v430 = vsub.f32 %v363, %v414
        %v431 = vmul.f32 %v415, %v415
        %v432 = vmul.f32 %v416, %v416
        %v433 = vmul.f32 %v417, %v417
        %v434 = vmul.f32 %v418, %v418
        %v435 = vmul.f32 %v419, %v419
        %v436 = vmul.f32 %v420, %v420
        %v437 = vmul.f32 %v421, %v421
        %v438 = vmul.f32 %v422, %v422
        %v439 = vmul.f32 %v423, %v423
        %v440 = vmul.f32 %v424, %v424
        %v441 = vmul.f32 %v425, %v425
        %v442 = vmul.f32 %v426, %v426
        %v443 = vmul.f32 %v427, %v427
        %v444 = vmul.f32 %v428, %v428
        %v445 = vmul.f32 %v429, %v429
        %v446 = vmul.f32 %v430, %v430
        %447 = vadd.xlane.f32.xlu0 %v431
        %v448 = vpop.xlane.xlu0 %447
        %449 = vadd.xlane.f32.xlu0 %v432
        %v450 = vpop.xlane.xlu0 %449
        %451 = vadd.xlane.f32.xlu0 %v433
        %v452 = vpop.xlane.xlu0 %451
        %453 = vadd.xlane.f32.xlu0 %v434
        %v454 = vpop.xlane.xlu0 %453
        %455 = vadd.xlane.f32.xlu0 %v435
        %v456 = vpop.xlane.xlu0 %455
        %457 = vadd.xlane.f32.xlu0 %v436
        %v458 = vpop.xlane.xlu0 %457
        %459 = vadd.xlane.f32.xlu0 %v437
        %v460 = vpop.xlane.xlu0 %459
        %461 = vadd.xlane.f32.xlu0 %v438
        %v462 = vpop.xlane.xlu0 %461
        %463 = vadd.xlane.f32.xlu0 %v439
        %v464 = vpop.xlane.xlu0 %463
        %465 = vadd.xlane.f32.xlu0 %v440
        %v466 = vpop.xlane.xlu0 %465
        %467 = vadd.xlane.f32.xlu0 %v441
        %v468 = vpop.xlane.xlu0 %467
        %469 = vadd.xlane.f32.xlu0 %v442
        %v470 = vpop.xlane.xlu0 %469
        %471 = vadd.xlane.f32.xlu0 %v443
        %v472 = vpop.xlane.xlu0 %471
        %473 = vadd.xlane.f32.xlu0 %v444
        %v474 = vpop.xlane.xlu0 %473
        %475 = vadd.xlane.f32.xlu0 %v445
        %v476 = vpop.xlane.xlu0 %475
        %477 = vadd.xlane.f32.xlu0 %v446
        %v478 = vpop.xlane.xlu0 %477
        %v479 = vmul.f32 %v448, %v398
        %v480 = vmul.f32 %v450, %v398
        %v481 = vmul.f32 %v452, %v398
        %v482 = vmul.f32 %v454, %v398
        %v483 = vmul.f32 %v456, %v398
        %v484 = vmul.f32 %v458, %v398
        %v485 = vmul.f32 %v460, %v398
        %v486 = vmul.f32 %v462, %v398
        %v487 = vmul.f32 %v464, %v398
        %v488 = vmul.f32 %v466, %v398
        %v489 = vmul.f32 %v468, %v398
        %v490 = vmul.f32 %v470, %v398
        %v491 = vmul.f32 %v472, %v398
        %v492 = vmul.f32 %v474, %v398
        %v493 = vmul.f32 %v476, %v398
        %v494 = vmul.f32 %v478, %v398
        %v495 = vadd.f32 %v479, 1e-05
        %v496 = vadd.f32 %v480, 1e-05
        %v497 = vadd.f32 %v481, 1e-05
        %v498 = vadd.f32 %v482, 1e-05
        %v499 = vadd.f32 %v483, 1e-05
        %v500 = vadd.f32 %v484, 1e-05
        %v501 = vadd.f32 %v485, 1e-05
        %v502 = vadd.f32 %v486, 1e-05
        %v503 = vadd.f32 %v487, 1e-05
        %v504 = vadd.f32 %v488, 1e-05
        %v505 = vadd.f32 %v489, 1e-05
        %v506 = vadd.f32 %v490, 1e-05
        %v507 = vadd.f32 %v491, 1e-05
        %v508 = vadd.f32 %v492, 1e-05
        %v509 = vadd.f32 %v493, 1e-05
        %v510 = vadd.f32 %v494, 1e-05
        %v511 = vrsqrt.pop %v495
        %v512 = vrsqrt.pop %v496
        %v513 = vrsqrt.pop %v497
        %v514 = vrsqrt.pop %v498
        %v515 = vrsqrt.pop %v499
        %v516 = vrsqrt.pop %v500
        %v517 = vrsqrt.pop %v501
        %v518 = vrsqrt.pop %v502
        %v519 = vrsqrt.pop %v503
        %v520 = vrsqrt.pop %v504
        %v521 = vrsqrt.pop %v505
        %v522 = vrsqrt.pop %v506
        %v523 = vrsqrt.pop %v507
        %v524 = vrsqrt.pop %v508
        %v525 = vrsqrt.pop %v509
        %v526 = vrsqrt.pop %v510
        %v527 = vmul.f32 %v415, %v511
        %v528 = vmul.f32 %v416, %v512
        %v529 = vmul.f32 %v417, %v513
        %v530 = vmul.f32 %v418, %v514
        %v531 = vmul.f32 %v419, %v515
        %v532 = vmul.f32 %v420, %v516
        %v533 = vmul.f32 %v421, %v517
        %v534 = vmul.f32 %v422, %v518
        %v535 = vmul.f32 %v423, %v519
        %v536 = vmul.f32 %v424, %v520
        %v537 = vmul.f32 %v425, %v521
        %v538 = vmul.f32 %v426, %v522
        %v539 = vmul.f32 %v427, %v523
        %v540 = vmul.f32 %v428, %v524
        %v541 = vmul.f32 %v429, %v525
        %v542 = vmul.f32 %v430, %v526
        %v544 = vlaneseq
        %v545 = vshrl.u32 %v544, 7
        %v546 = vsub.s32 0, %v545
        %v547 = vrot.slane %v364, %v546
        %v549 = vmul.f32 %v527, %v547
        %v550 = vmul.f32 %v528, %v547
        %v551 = vmul.f32 %v529, %v547
        %v552 = vmul.f32 %v530, %v547
        %v553 = vmul.f32 %v531, %v547
        %v554 = vmul.f32 %v532, %v547
        %v555 = vmul.f32 %v533, %v547
        %v556 = vmul.f32 %v534, %v547
        %v557 = vmul.f32 %v535, %v547
        %v558 = vmul.f32 %v536, %v547
        %v559 = vmul.f32 %v537, %v547
        %v560 = vmul.f32 %v538, %v547
        %v561 = vmul.f32 %v539, %v547
        %v562 = vmul.f32 %v540, %v547
        %v563 = vmul.f32 %v541, %v547
        %v564 = vmul.f32 %v542, %v547
        %v566 = vlaneseq
        %v567 = vshrl.u32 %v566, 7
        %v568 = vsub.s32 0, %v567
        %v569 = vrot.slane %v365, %v568
        %v571 = vadd.f32 %v549, %v569
        %v572 = vadd.f32 %v550, %v569
        %v573 = vadd.f32 %v551, %v569
        %v574 = vadd.f32 %v552, %v569
        %v575 = vadd.f32 %v553, %v569
        %v576 = vadd.f32 %v554, %v569
        %v577 = vadd.f32 %v555, %v569
        %v578 = vadd.f32 %v556, %v569
        %v579 = vadd.f32 %v557, %v569
        %v580 = vadd.f32 %v558, %v569
        %v581 = vadd.f32 %v559, %v569
        %v582 = vadd.f32 %v560, %v569
        %v583 = vadd.f32 %v561, %v569
        %v584 = vadd.f32 %v562, %v569
        %v585 = vadd.f32 %v563, %v569
        %v586 = vadd.f32 %v564, %v569
        %v587 = vpack.c.bf16 %v572, %v571
        %v588 = vpack.c.bf16 %v574, %v573
        %v589 = vpack.c.bf16 %v576, %v575
        %v590 = vpack.c.bf16 %v578, %v577
        %v591 = vpack.c.bf16 %v580, %v579
        %v592 = vpack.c.bf16 %v582, %v581
        %v593 = vpack.c.bf16 %v584, %v583
        %v594 = vpack.c.bf16 %v586, %v585
        %v595 = vld [vmem:[#allocation4] sm:$0xff]
        %v596 = vld [vmem:[#allocation4 + $0x8] sm:$0xf]
        %v597 = vld [vmem:[#allocation4 + $0xc] sm:$0xff]
        %v598 = vld [vmem:[#allocation4 + $0x14] sm:$0xf]
        %v599 = vld [vmem:[#allocation4 + $0x18] sm:$0xff]
        %v600 = vld [vmem:[#allocation4 + $0x20] sm:$0xf]
        %v601 = vld [vmem:[#allocation4 + $0x24] sm:$0xff]
        %v602 = vld [vmem:[#allocation4 + $0x2c] sm:$0xf]
        %v603 = vld [vmem:[#allocation4 + $0x30] sm:$0xff]
        %v604 = vld [vmem:[#allocation4 + $0x38] sm:$0xf]
        %v605 = vld [vmem:[#allocation4 + $0x3c] sm:$0xff]
        %v606 = vld [vmem:[#allocation4 + $0x44] sm:$0xf]
        %v607 = vld [vmem:[#allocation4 + $0x48] sm:$0xff]
        %v608 = vld [vmem:[#allocation4 + $0x50] sm:$0xf]
        %v609 = vld [vmem:[#allocation4 + $0x54] sm:$0xff]
        %v610 = vld [vmem:[#allocation4 + $0x5c] sm:$0xf]
        %v611 = vld [vmem:[#allocation4 + $0x60] sm:$0xff]
        %v612 = vld [vmem:[#allocation4 + $0x68] sm:$0xf]
        %v613 = vld [vmem:[#allocation4 + $0x6c] sm:$0xff]
        %v614 = vld [vmem:[#allocation4 + $0x74] sm:$0xf]
        %v615 = vld [vmem:[#allocation4 + $0x78] sm:$0xff]
        %v616 = vld [vmem:[#allocation4 + $0x80] sm:$0xf]
        %v617 = vld [vmem:[#allocation4 + $0x84] sm:$0xff]
        %v618 = vld [vmem:[#allocation4 + $0x8c] sm:$0xf]
        %v619 = vld [vmem:[#allocation4 + $0x90] sm:$0xff]
        %v620 = vld [vmem:[#allocation4 + $0x98] sm:$0xf]
        %v621 = vld [vmem:[#allocation4 + $0x9c] sm:$0xff]
        %v622 = vld [vmem:[#allocation4 + $0xa4] sm:$0xf]
        %v623 = vld [vmem:[#allocation4 + $0xa8] sm:$0xff]
        %v624 = vld [vmem:[#allocation4 + $0xb0] sm:$0xf]
        %v625 = vld [vmem:[#allocation4 + $0xb4] sm:$0xff]
        %v626 = vld [vmem:[#allocation4 + $0xbc] sm:$0xf]
        %v627 = vld [vmem:[%s4] sm:$0x7]
        %v629 = vlaneseq
        %v630 = vshrl.u32 %v629, 7
        %v631 = vsub.s32 0, %v630
        %v632 = vrot.slane %v627, %v631
        %v633 = vlaneseq
        %v634 = vshrl.u32 %v633, 7
        %v635 = vsub.s32 1, %v634
        %v636 = vrot.slane %v627, %v635
        %v637 = vlaneseq
        %v638 = vshrl.u32 %v637, 7
        %v639 = vsub.s32 2, %v638
        %v640 = vrot.slane %v627, %v639
        %v676 = vunpack.c.l.b16 %v595
        %v677 = vunpack.c.h.b16 %v595
        %v678 = vunpack.c.l.b16 %v596
        %v679 = vunpack.c.l.b16 %v597
        %v680 = vunpack.c.h.b16 %v597
        %v681 = vunpack.c.l.b16 %v598
        %v682 = vunpack.c.l.b16 %v599
        %v683 = vunpack.c.h.b16 %v599
        %v684 = vunpack.c.l.b16 %v600
        %v685 = vunpack.c.l.b16 %v601
        %v686 = vunpack.c.h.b16 %v601
        %v687 = vunpack.c.l.b16 %v602
        %v688 = vunpack.c.l.b16 %v603
        %v689 = vunpack.c.h.b16 %v603
        %v690 = vunpack.c.l.b16 %v604
        %v691 = vunpack.c.l.b16 %v605
        %v692 = vunpack.c.h.b16 %v605
        %v693 = vunpack.c.l.b16 %v606
        %v694 = vunpack.c.l.b16 %v607
        %v695 = vunpack.c.h.b16 %v607
        %v696 = vunpack.c.l.b16 %v608
        %v697 = vunpack.c.l.b16 %v609
        %v698 = vunpack.c.h.b16 %v609
        %v699 = vunpack.c.l.b16 %v610
        %v700 = vunpack.c.l.b16 %v611
        %v701 = vunpack.c.h.b16 %v611
        %v702 = vunpack.c.l.b16 %v612
        %v703 = vunpack.c.l.b16 %v613
        %v704 = vunpack.c.h.b16 %v613
        %v705 = vunpack.c.l.b16 %v614
        %v706 = vunpack.c.l.b16 %v615
        %v707 = vunpack.c.h.b16 %v615
        %v708 = vunpack.c.l.b16 %v616
        %v709 = vunpack.c.l.b16 %v617
        %v710 = vunpack.c.h.b16 %v617
        %v711 = vunpack.c.l.b16 %v618
        %v712 = vunpack.c.l.b16 %v619
        %v713 = vunpack.c.h.b16 %v619
        %v714 = vunpack.c.l.b16 %v620
        %v715 = vunpack.c.l.b16 %v621
        %v716 = vunpack.c.h.b16 %v621
        %v717 = vunpack.c.l.b16 %v622
        %v718 = vunpack.c.l.b16 %v623
        %v719 = vunpack.c.h.b16 %v623
        %v720 = vunpack.c.l.b16 %v624
        %v721 = vunpack.c.l.b16 %v625
        %v722 = vunpack.c.h.b16 %v625
        %v723 = vunpack.c.l.b16 %v626
        %v724 = vpack.c.b16 %v679, %v676
        %v725 = vpack.c.b16 %v680, %v677
        %v726 = vpack.c.b16 %v681, %v678
        %v727 = vpack.c.b16 %v685, %v682
        %v728 = vpack.c.b16 %v686, %v683
        %v729 = vpack.c.b16 %v687, %v684
        %v730 = vpack.c.b16 %v691, %v688
        %v731 = vpack.c.b16 %v692, %v689
        %v732 = vpack.c.b16 %v693, %v690
        %v733 = vpack.c.b16 %v697, %v694
        %v734 = vpack.c.b16 %v698, %v695
        %v735 = vpack.c.b16 %v699, %v696
        %v736 = vpack.c.b16 %v703, %v700
        %v737 = vpack.c.b16 %v704, %v701
        %v738 = vpack.c.b16 %v705, %v702
        %v739 = vpack.c.b16 %v709, %v706
        %v740 = vpack.c.b16 %v710, %v707
        %v741 = vpack.c.b16 %v711, %v708
        %v742 = vpack.c.b16 %v715, %v712
        %v743 = vpack.c.b16 %v716, %v713
        %v744 = vpack.c.b16 %v717, %v714
        %v745 = vpack.c.b16 %v721, %v718
        %v746 = vpack.c.b16 %v722, %v719
        %v747 = vpack.c.b16 %v723, %v720
        %772 = vmatprep.subr.bf16.mxu0 %v725
        %773 = vmatpush1.bf16.msra.mxu0 %v724
        %774 = vmatprep.subr.bf16.mxu0 %v728
        %775 = vmatpush1.bf16.msra.mxu0 %v727
        %776 = vmatprep.subr.bf16.mxu0 %v731
        %777 = vmatpush1.bf16.msra.mxu0 %v730
        %778 = vmatprep.subr.bf16.mxu0 %v734
        %779 = vmatpush1.bf16.msra.mxu0 %v733
        %780 = vmatprep.subr.bf16.mxu0 %v737
        %781 = vmatpush1.bf16.msra.mxu0 %v736
        %782 = vmatprep.subr.bf16.mxu0 %v740
        %783 = vmatpush1.bf16.msra.mxu0 %v739
        %784 = vmatprep.subr.bf16.mxu0 %v743
        %785 = vmatpush1.bf16.msra.mxu0 %v742
        %786 = vmatprep.subr.bf16.mxu0 %v746
        %787 = vmatpush1.bf16.msra.mxu0 %v745
        %788 = vmatprep.subr.bf16.mxu0 0
        %789 = vmatpush1.bf16.msra.mxu0 0
        %790 = vmatprep.subr.bf16.mxu0 0
        %791 = vmatpush1.bf16.msra.mxu0 0
        %792 = vmatprep.subr.bf16.mxu0 0
        %793 = vmatpush1.bf16.msra.mxu0 0
        %794 = vmatprep.subr.bf16.mxu0 0
        %795 = vmatpush1.bf16.msra.mxu0 0
        %796 = vmatprep.subr.bf16.mxu0 0
        %797 = vmatpush1.bf16.msra.mxu0 0
        %798 = vmatprep.subr.bf16.mxu0 0
        %799 = vmatpush1.bf16.msra.mxu0 0
        %800 = vmatprep.subr.bf16.mxu0 0
        %801 = vmatpush1.bf16.msra.mxu0 0
        %802 = vmatprep.subr.bf16.mxu0 0
        %803 = vmatpush1.bf16.msra.mxu0 0
        %804 = vmatprep.mubr.bf16.mxu0 0
        %805 = vmatmul.mubr.bf16.gmra.mrb[0].mxu0 %v587
        %v806 = vpop.f32.mrb[0].mxu0
        %v807 = vadd.f32 %v632, %v806
        %v808 = vpop.f32.mrb[0].mxu0
        %v809 = vadd.f32 %v636, %v808
        %v810 = vpop.f32.mrb[0].mxu0
        %v811 = vadd.f32 %v632, %v810
        %v812 = vpop.f32.mrb[0].mxu0
        %v813 = vadd.f32 %v636, %v812
        %814 = vmatprep.mubr.bf16.mxu0 0
        %815 = vmatmul.mubr.bf16.gmra.mrb[0].mxu0 %v588
        %v816 = vpop.f32.mrb[0].mxu0
        %v817 = vadd.f32 %v632, %v816
        %v818 = vpop.f32.mrb[0].mxu0
        %v819 = vadd.f32 %v636, %v818
        %v820 = vpop.f32.mrb[0].mxu0
        %v821 = vadd.f32 %v632, %v820
        %v822 = vpop.f32.mrb[0].mxu0
        %v823 = vadd.f32 %v636, %v822
        %824 = vmatprep.mubr.bf16.mxu0 0
        %825 = vmatmul.mubr.bf16.gmra.mrb[0].mxu0 %v589
        %v826 = vpop.f32.mrb[0].mxu0
        %v827 = vadd.f32 %v632, %v826
        %v828 = vpop.f32.mrb[0].mxu0
        %v829 = vadd.f32 %v636, %v828
        %v830 = vpop.f32.mrb[0].mxu0
        %v831 = vadd.f32 %v632, %v830
        %v832 = vpop.f32.mrb[0].mxu0
        %v833 = vadd.f32 %v636, %v832
        %834 = vmatprep.mubr.bf16.mxu0 0
        %835 = vmatmul.mubr.bf16.gmra.mrb[0].mxu0 %v590
        %v836 = vpop.f32.mrb[0].mxu0
        %v837 = vadd.f32 %v632, %v836
        %v838 = vpop.f32.mrb[0].mxu0
        %v839 = vadd.f32 %v636, %v838
        %v840 = vpop.f32.mrb[0].mxu0
        %v841 = vadd.f32 %v632, %v840
        %v842 = vpop.f32.mrb[0].mxu0
        %v843 = vadd.f32 %v636, %v842
        %844 = vmatprep.mubr.bf16.mxu0 0
        %845 = vmatmul.mubr.bf16.gmra.mrb[0].mxu0 %v591
        %v846 = vpop.f32.mrb[0].mxu0
        %v847 = vadd.f32 %v632, %v846
        %v848 = vpop.f32.mrb[0].mxu0
        %v849 = vadd.f32 %v636, %v848
        %v850 = vpop.f32.mrb[0].mxu0
        %v851 = vadd.f32 %v632, %v850
        %v852 = vpop.f32.mrb[0].mxu0
        %v853 = vadd.f32 %v636, %v852
        %854 = vmatprep.mubr.bf16.mxu0 0
        %855 = vmatmul.mubr.bf16.gmra.mrb[0].mxu0 %v592
        %v856 = vpop.f32.mrb[0].mxu0
        %v857 = vadd.f32 %v632, %v856
        %v858 = vpop.f32.mrb[0].mxu0
        %v859 = vadd.f32 %v636, %v858
        %v860 = vpop.f32.mrb[0].mxu0
        %v861 = vadd.f32 %v632, %v860
        %v862 = vpop.f32.mrb[0].mxu0
        %v863 = vadd.f32 %v636, %v862
        %864 = vmatprep.mubr.bf16.mxu0 0
        %865 = vmatmul.mubr.bf16.gmra.mrb[0].mxu0 %v593
        %v866 = vpop.f32.mrb[0].mxu0
        %v867 = vadd.f32 %v632, %v866
        %v868 = vpop.f32.mrb[0].mxu0
        %v869 = vadd.f32 %v636, %v868
        %v870 = vpop.f32.mrb[0].mxu0
        %v871 = vadd.f32 %v632, %v870
        %v872 = vpop.f32.mrb[0].mxu0
        %v873 = vadd.f32 %v636, %v872
        %874 = vmatprep.mubr.bf16.mxu0 0
        %875 = vmatmul.mubr.bf16.gmra.mrb[0].mxu0 %v594
        %v876 = vpop.f32.mrb[0].mxu0
        %v877 = vadd.f32 %v632, %v876
        %v878 = vpop.f32.mrb[0].mxu0
        %v879 = vadd.f32 %v636, %v878
        %v880 = vpop.f32.mrb[0].mxu0
        %v881 = vadd.f32 %v632, %v880
        %v882 = vpop.f32.mrb[0].mxu0
        %v883 = vadd.f32 %v636, %v882
        %884 = vdwg.mxu0
        %885 = vmatprep.subr.bf16.mxu0 0
        %886 = vmatpush1.bf16.msra.mxu0 %v726
        %887 = vmatprep.subr.bf16.mxu0 0
        %888 = vmatpush1.bf16.msra.mxu0 %v729
        %889 = vmatprep.subr.bf16.mxu0 0
        %890 = vmatpush1.bf16.msra.mxu0 %v732
        %891 = vmatprep.subr.bf16.mxu0 0
        %892 = vmatpush1.bf16.msra.mxu0 %v735
        %893 = vmatprep.subr.bf16.mxu0 0
        %894 = vmatpush1.bf16.msra.mxu0 %v738
        %895 = vmatprep.subr.bf16.mxu0 0
        %896 = vmatpush1.bf16.msra.mxu0 %v741
        %897 = vmatprep.subr.bf16.mxu0 0
        %898 = vmatpush1.bf16.msra.mxu0 %v744
        %899 = vmatprep.subr.bf16.mxu0 0
        %900 = vmatpush1.bf16.msra.mxu0 %v747
        %901 = vmatprep.subr.bf16.mxu0 0
        %902 = vmatpush1.bf16.msra.mxu0 0
        %903 = vmatprep.subr.bf16.mxu0 0
        %904 = vmatpush1.bf16.msra.mxu0 0
        %905 = vmatprep.subr.bf16.mxu0 0
        %906 = vmatpush1.bf16.msra.mxu0 0
        %907 = vmatprep.subr.bf16.mxu0 0
        %908 = vmatpush1.bf16.msra.mxu0 0
        %909 = vmatprep.subr.bf16.mxu0 0
        %910 = vmatpush1.bf16.msra.mxu0 0
        %911 = vmatprep.subr.bf16.mxu0 0
        %912 = vmatpush1.bf16.msra.mxu0 0
        %913 = vmatprep.subr.bf16.mxu0 0
        %914 = vmatpush1.bf16.msra.mxu0 0
        %915 = vmatprep.subr.bf16.mxu0 0
        %916 = vmatpush1.bf16.msra.mxu0 0
        %917 = vmatprep.mubr.bf16.mxu0 0
        %918 = vmatmul.mubr.bf16.gmra.mrb[0].mxu0 %v587
        %v919 = vpop.f32.mrb[0].mxu0
        %v920 = vadd.f32 %v640, %v919
        %v921 = vpop.f32.mrb[0].mxu0
        %v922 = vpop.f32.mrb[0].mxu0
        %v923 = vadd.f32 %v640, %v922
        %v924 = vpop.f32.mrb[0].mxu0
        %925 = vmatprep.mubr.bf16.mxu0 0
        %926 = vmatmul.mubr.bf16.gmra.mrb[0].mxu0 %v588
        %v927 = vpop.f32.mrb[0].mxu0
        %v928 = vadd.f32 %v640, %v927
        %v929 = vpop.f32.mrb[0].mxu0
        %v930 = vpop.f32.mrb[0].mxu0
        %v931 = vadd.f32 %v640, %v930
        %v932 = vpop.f32.mrb[0].mxu0
        %933 = vmatprep.mubr.bf16.mxu0 0
        %934 = vmatmul.mubr.bf16.gmra.mrb[0].mxu0 %v589
        %v935 = vpop.f32.mrb[0].mxu0
        %v936 = vadd.f32 %v640, %v935
        %v937 = vpop.f32.mrb[0].mxu0
        %v938 = vpop.f32.mrb[0].mxu0
        %v939 = vadd.f32 %v640, %v938
        %v940 = vpop.f32.mrb[0].mxu0
        %941 = vmatprep.mubr.bf16.mxu0 0
        %942 = vmatmul.mubr.bf16.gmra.mrb[0].mxu0 %v590
        %v943 = vpop.f32.mrb[0].mxu0
        %v944 = vadd.f32 %v640, %v943
        %v945 = vpop.f32.mrb[0].mxu0
        %v946 = vpop.f32.mrb[0].mxu0
        %v947 = vadd.f32 %v640, %v946
        %v948 = vpop.f32.mrb[0].mxu0
        %949 = vmatprep.mubr.bf16.mxu0 0
        %950 = vmatmul.mubr.bf16.gmra.mrb[0].mxu0 %v591
        %v951 = vpop.f32.mrb[0].mxu0
        %v952 = vadd.f32 %v640, %v951
        %v953 = vpop.f32.mrb[0].mxu0
        %v954 = vpop.f32.mrb[0].mxu0
        %v955 = vadd.f32 %v640, %v954
        %v956 = vpop.f32.mrb[0].mxu0
        %957 = vmatprep.mubr.bf16.mxu0 0
        %958 = vmatmul.mubr.bf16.gmra.mrb[0].mxu0 %v592
        %v959 = vpop.f32.mrb[0].mxu0
        %v960 = vadd.f32 %v640, %v959
        %v961 = vpop.f32.mrb[0].mxu0
        %v962 = vpop.f32.mrb[0].mxu0
        %v963 = vadd.f32 %v640, %v962
        %v964 = vpop.f32.mrb[0].mxu0
        %965 = vmatprep.mubr.bf16.mxu0 0
        %966 = vmatmul.mubr.bf16.gmra.mrb[0].mxu0 %v593
        %v967 = vpop.f32.mrb[0].mxu0
        %v968 = vadd.f32 %v640, %v967
        %v969 = vpop.f32.mrb[0].mxu0
        %v970 = vpop.f32.mrb[0].mxu0
        %v971 = vadd.f32 %v640, %v970
        %v972 = vpop.f32.mrb[0].mxu0
        %973 = vmatprep.mubr.bf16.mxu0 0
        %974 = vmatmul.mubr.bf16.gmra.mrb[0].mxu0 %v594
        %v975 = vpop.f32.mrb[0].mxu0
        %v976 = vadd.f32 %v640, %v975
        %v977 = vpop.f32.mrb[0].mxu0
        %v978 = vpop.f32.mrb[0].mxu0
        %v979 = vadd.f32 %v640, %v978
        %v980 = vpop.f32.mrb[0].mxu0
        %981 = vdwg.mxu0
        %v982 = vpack.c.bf16 %v811, %v807
        %v983 = vpack.c.bf16 %v813, %v809
        %v984 = vpack.c.bf16 %v923, %v920
        %v985 = vpack.c.bf16 %v821, %v817
        %v986 = vpack.c.bf16 %v823, %v819
        %v987 = vpack.c.bf16 %v931, %v928
        %v988 = vpack.c.bf16 %v831, %v827
        %v989 = vpack.c.bf16 %v833, %v829
        %v990 = vpack.c.bf16 %v939, %v936
        %v991 = vpack.c.bf16 %v841, %v837
        %v992 = vpack.c.bf16 %v843, %v839
        %v993 = vpack.c.bf16 %v947, %v944
        %v994 = vpack.c.bf16 %v851, %v847
        %v995 = vpack.c.bf16 %v853, %v849
        %v996 = vpack.c.bf16 %v955, %v952
        %v997 = vpack.c.bf16 %v861, %v857
        %v998 = vpack.c.bf16 %v863, %v859
        %v999 = vpack.c.bf16 %v963, %v960
        %v1000 = vpack.c.bf16 %v871, %v867
        %v1001 = vpack.c.bf16 %v873, %v869
        %v1002 = vpack.c.bf16 %v971, %v968
        %v1003 = vpack.c.bf16 %v881, %v877
        %v1004 = vpack.c.bf16 %v883, %v879
        %v1005 = vpack.c.bf16 %v979, %v976
        %v1014 = vunpack.c.l.b16 %v982
        %v1015 = vunpack.c.h.b16 %v982
        %v1016 = vunpack.c.l.b16 %v985
        %v1017 = vunpack.c.h.b16 %v985
        %v1018 = vunpack.c.l.b16 %v988
        %v1019 = vunpack.c.h.b16 %v988
        %v1020 = vunpack.c.l.b16 %v991
        %v1021 = vunpack.c.h.b16 %v991
        %v1022 = vunpack.c.l.b16 %v994
        %v1023 = vunpack.c.h.b16 %v994
        %v1024 = vunpack.c.l.b16 %v997
        %v1025 = vunpack.c.h.b16 %v997
        %v1026 = vunpack.c.l.b16 %v1000
        %v1027 = vunpack.c.h.b16 %v1000
        %v1028 = vunpack.c.l.b16 %v1003
        %v1029 = vunpack.c.h.b16 %v1003
        %v1030 = vpack.c.b16 %v1014, %v1014
        %v1031 = vpack.c.b16 %v1015, %v1015
        %v1032 = vpack.c.b16 %v1016, %v1016
        %v1033 = vpack.c.b16 %v1017, %v1017
        %v1034 = vpack.c.b16 %v1018, %v1018
        %v1035 = vpack.c.b16 %v1019, %v1019
        %v1036 = vpack.c.b16 %v1020, %v1020
        %v1037 = vpack.c.b16 %v1021, %v1021
        %v1038 = vpack.c.b16 %v1022, %v1022
        %v1039 = vpack.c.b16 %v1023, %v1023
        %v1040 = vpack.c.b16 %v1024, %v1024
        %v1041 = vpack.c.b16 %v1025, %v1025
        %v1042 = vpack.c.b16 %v1026, %v1026
        %v1043 = vpack.c.b16 %v1027, %v1027
        %v1044 = vpack.c.b16 %v1028, %v1028
        %v1045 = vpack.c.b16 %v1029, %v1029
        %vm1062 = vcmask 257024
        %1063 = vst.msk [vmem:[%s330] sm:$0xf] %vm1062, %v1030
        %1064 = vst.msk [vmem:[%s330 + $0x4] sm:$0xf] %vm1062, %v1031
        %1065 = vst.msk [vmem:[%s330 + $0x8] sm:$0xf] %vm1062, %v1032
        %1066 = vst.msk [vmem:[%s330 + $0xc] sm:$0xf] %vm1062, %v1033
        %1067 = vst.msk [vmem:[%s330 + $0x10] sm:$0xf] %vm1062, %v1034
        %1068 = vst.msk [vmem:[%s330 + $0x14] sm:$0xf] %vm1062, %v1035
        %1069 = vst.msk [vmem:[%s330 + $0x18] sm:$0xf] %vm1062, %v1036
        %1070 = vst.msk [vmem:[%s330 + $0x1c] sm:$0xf] %vm1062, %v1037
        %1071 = vst.msk [vmem:[%s330 + $0x20] sm:$0xf] %vm1062, %v1038
        %1072 = vst.msk [vmem:[%s330 + $0x24] sm:$0xf] %vm1062, %v1039
        %1073 = vst.msk [vmem:[%s330 + $0x28] sm:$0xf] %vm1062, %v1040
        %1074 = vst.msk [vmem:[%s330 + $0x2c] sm:$0xf] %vm1062, %v1041
        %1075 = vst.msk [vmem:[%s330 + $0x30] sm:$0xf] %vm1062, %v1042
        %1076 = vst.msk [vmem:[%s330 + $0x34] sm:$0xf] %vm1062, %v1043
        %1077 = vst.msk [vmem:[%s330 + $0x38] sm:$0xf] %vm1062, %v1044
        %1078 = vst.msk [vmem:[%s330 + $0x3c] sm:$0xf] %vm1062, %v1045
        %v1087 = vunpack.c.l.b16 %v983
        %v1088 = vunpack.c.h.b16 %v983
        %v1089 = vunpack.c.l.b16 %v986
        %v1090 = vunpack.c.h.b16 %v986
        %v1091 = vunpack.c.l.b16 %v989
        %v1092 = vunpack.c.h.b16 %v989
        %v1093 = vunpack.c.l.b16 %v992
        %v1094 = vunpack.c.h.b16 %v992
        %v1095 = vunpack.c.l.b16 %v995
        %v1096 = vunpack.c.h.b16 %v995
        %v1097 = vunpack.c.l.b16 %v998
        %v1098 = vunpack.c.h.b16 %v998
        %v1099 = vunpack.c.l.b16 %v1001
        %v1100 = vunpack.c.h.b16 %v1001
        %v1101 = vunpack.c.l.b16 %v1004
        %v1102 = vunpack.c.h.b16 %v1004
        %v1103 = vpack.c.b16 %v1087, %v1087
        %v1104 = vpack.c.b16 %v1088, %v1088
        %v1105 = vpack.c.b16 %v1089, %v1089
        %v1106 = vpack.c.b16 %v1090, %v1090
        %v1107 = vpack.c.b16 %v1091, %v1091
        %v1108 = vpack.c.b16 %v1092, %v1092
        %v1109 = vpack.c.b16 %v1093, %v1093
        %v1110 = vpack.c.b16 %v1094, %v1094
        %v1111 = vpack.c.b16 %v1095, %v1095
        %v1112 = vpack.c.b16 %v1096, %v1096
        %v1113 = vpack.c.b16 %v1097, %v1097
        %v1114 = vpack.c.b16 %v1098, %v1098
        %v1115 = vpack.c.b16 %v1099, %v1099
        %v1116 = vpack.c.b16 %v1100, %v1100
        %v1117 = vpack.c.b16 %v1101, %v1101
        %v1118 = vpack.c.b16 %v1102, %v1102
        %1135 = vst.msk [vmem:[%s336] sm:$0xf] %vm1062, %v1103
        %1136 = vst.msk [vmem:[%s336 + $0x4] sm:$0xf] %vm1062, %v1104
        %1137 = vst.msk [vmem:[%s336 + $0x8] sm:$0xf] %vm1062, %v1105
        %1138 = vst.msk [vmem:[%s336 + $0xc] sm:$0xf] %vm1062, %v1106
        %1139 = vst.msk [vmem:[%s336 + $0x10] sm:$0xf] %vm1062, %v1107
        %1140 = vst.msk [vmem:[%s336 + $0x14] sm:$0xf] %vm1062, %v1108
        %1141 = vst.msk [vmem:[%s336 + $0x18] sm:$0xf] %vm1062, %v1109
        %1142 = vst.msk [vmem:[%s336 + $0x1c] sm:$0xf] %vm1062, %v1110
        %1143 = vst.msk [vmem:[%s336 + $0x20] sm:$0xf] %vm1062, %v1111
        %1144 = vst.msk [vmem:[%s336 + $0x24] sm:$0xf] %vm1062, %v1112
        %1145 = vst.msk [vmem:[%s336 + $0x28] sm:$0xf] %vm1062, %v1113
        %1146 = vst.msk [vmem:[%s336 + $0x2c] sm:$0xf] %vm1062, %v1114
        %1147 = vst.msk [vmem:[%s336 + $0x30] sm:$0xf] %vm1062, %v1115
        %1148 = vst.msk [vmem:[%s336 + $0x34] sm:$0xf] %vm1062, %v1116
        %1149 = vst.msk [vmem:[%s336 + $0x38] sm:$0xf] %vm1062, %v1117
        %1150 = vst.msk [vmem:[%s336 + $0x3c] sm:$0xf] %vm1062, %v1118
        %v1159 = vunpack.c.l.b16 %v984
        %v1160 = vunpack.c.h.b16 %v984
        %v1161 = vunpack.c.l.b16 %v987
        %v1162 = vunpack.c.h.b16 %v987
        %v1163 = vunpack.c.l.b16 %v990
        %v1164 = vunpack.c.h.b16 %v990
        %v1165 = vunpack.c.l.b16 %v993
        %v1166 = vunpack.c.h.b16 %v993
        %v1167 = vunpack.c.l.b16 %v996
        %v1168 = vunpack.c.h.b16 %v996
        %v1169 = vunpack.c.l.b16 %v999
        %v1170 = vunpack.c.h.b16 %v999
        %v1171 = vunpack.c.l.b16 %v1002
        %v1172 = vunpack.c.h.b16 %v1002
        %v1173 = vunpack.c.l.b16 %v1005
        %v1174 = vunpack.c.h.b16 %v1005
        %v1175 = vpack.c.b16 %v1159, %v1159
        %v1176 = vpack.c.b16 %v1160, %v1160
        %v1177 = vpack.c.b16 %v1161, %v1161
        %v1178 = vpack.c.b16 %v1162, %v1162
        %v1179 = vpack.c.b16 %v1163, %v1163
        %v1180 = vpack.c.b16 %v1164, %v1164
        %v1181 = vpack.c.b16 %v1165, %v1165
        %v1182 = vpack.c.b16 %v1166, %v1166
        %v1183 = vpack.c.b16 %v1167, %v1167
        %v1184 = vpack.c.b16 %v1168, %v1168
        %v1185 = vpack.c.b16 %v1169, %v1169
        %v1186 = vpack.c.b16 %v1170, %v1170
        %v1187 = vpack.c.b16 %v1171, %v1171
        %v1188 = vpack.c.b16 %v1172, %v1172
        %v1189 = vpack.c.b16 %v1173, %v1173
        %v1190 = vpack.c.b16 %v1174, %v1174
        %1207 = vst.msk [vmem:[%s342] sm:$0xf] %vm1062, %v1175
        %1208 = vst.msk [vmem:[%s342 + $0x4] sm:$0xf] %vm1062, %v1176
        %1209 = vst.msk [vmem:[%s342 + $0x8] sm:$0xf] %vm1062, %v1177
        %1210 = vst.msk [vmem:[%s342 + $0xc] sm:$0xf] %vm1062, %v1178
        %1211 = vst.msk [vmem:[%s342 + $0x10] sm:$0xf] %vm1062, %v1179
        %1212 = vst.msk [vmem:[%s342 + $0x14] sm:$0xf] %vm1062, %v1180
        %1213 = vst.msk [vmem:[%s342 + $0x18] sm:$0xf] %vm1062, %v1181
        %1214 = vst.msk [vmem:[%s342 + $0x1c] sm:$0xf] %vm1062, %v1182
        %1215 = vst.msk [vmem:[%s342 + $0x20] sm:$0xf] %vm1062, %v1183
        %1216 = vst.msk [vmem:[%s342 + $0x24] sm:$0xf] %vm1062, %v1184
        %1217 = vst.msk [vmem:[%s342 + $0x28] sm:$0xf] %vm1062, %v1185
        %1218 = vst.msk [vmem:[%s342 + $0x2c] sm:$0xf] %vm1062, %v1186
        %1219 = vst.msk [vmem:[%s342 + $0x30] sm:$0xf] %vm1062, %v1187
        %1220 = vst.msk [vmem:[%s342 + $0x34] sm:$0xf] %vm1062, %v1188
        %1221 = vst.msk [vmem:[%s342 + $0x38] sm:$0xf] %vm1062, %v1189
        %1222 = vst.msk [vmem:[%s342 + $0x3c] sm:$0xf] %vm1062, %v1190
        %1223 = vrot.lane.b32.xlu0 %v1030, 96
        %v1224 = vpop.permute.xlu0 %1223
        %1225 = vrot.lane.b32.xlu0 %v1031, 96
        %v1226 = vpop.permute.xlu0 %1225
        %1227 = vrot.lane.b32.xlu0 %v1032, 96
        %v1228 = vpop.permute.xlu0 %1227
        %1229 = vrot.lane.b32.xlu0 %v1033, 96
        %v1230 = vpop.permute.xlu0 %1229
        %1231 = vrot.lane.b32.xlu0 %v1034, 96
        %v1232 = vpop.permute.xlu0 %1231
        %1233 = vrot.lane.b32.xlu0 %v1035, 96
        %v1234 = vpop.permute.xlu0 %1233
        %1235 = vrot.lane.b32.xlu0 %v1036, 96
        %v1236 = vpop.permute.xlu0 %1235
        %1237 = vrot.lane.b32.xlu0 %v1037, 96
        %v1238 = vpop.permute.xlu0 %1237
        %1239 = vrot.lane.b32.xlu0 %v1038, 96
        %v1240 = vpop.permute.xlu0 %1239
        %1241 = vrot.lane.b32.xlu0 %v1039, 96
        %v1242 = vpop.permute.xlu0 %1241
        %1243 = vrot.lane.b32.xlu0 %v1040, 96
        %v1244 = vpop.permute.xlu0 %1243
        %1245 = vrot.lane.b32.xlu0 %v1041, 96
        %v1246 = vpop.permute.xlu0 %1245
        %1247 = vrot.lane.b32.xlu0 %v1042, 96
        %v1248 = vpop.permute.xlu0 %1247
        %1249 = vrot.lane.b32.xlu0 %v1043, 96
        %v1250 = vpop.permute.xlu0 %1249
        %1251 = vrot.lane.b32.xlu0 %v1044, 96
        %v1252 = vpop.permute.xlu0 %1251
        %1253 = vrot.lane.b32.xlu0 %v1045, 96
        %v1254 = vpop.permute.xlu0 %1253
        %s1271 = scalar_lea.vmem %s330, 64 [#allocation6]
        %1272 = vst.msk [vmem:[%s1271] sm:$0xf] %vm1062, %v1224
        %1273 = vst.msk [vmem:[%s1271 + $0x4] sm:$0xf] %vm1062, %v1226
        %1274 = vst.msk [vmem:[%s1271 + $0x8] sm:$0xf] %vm1062, %v1228
        %1275 = vst.msk [vmem:[%s1271 + $0xc] sm:$0xf] %vm1062, %v1230
        %1276 = vst.msk [vmem:[%s1271 + $0x10] sm:$0xf] %vm1062, %v1232
        %1277 = vst.msk [vmem:[%s1271 + $0x14] sm:$0xf] %vm1062, %v1234
        %1278 = vst.msk [vmem:[%s1271 + $0x18] sm:$0xf] %vm1062, %v1236
        %1279 = vst.msk [vmem:[%s1271 + $0x1c] sm:$0xf] %vm1062, %v1238
        %1280 = vst.msk [vmem:[%s1271 + $0x20] sm:$0xf] %vm1062, %v1240
        %1281 = vst.msk [vmem:[%s1271 + $0x24] sm:$0xf] %vm1062, %v1242
        %1282 = vst.msk [vmem:[%s1271 + $0x28] sm:$0xf] %vm1062, %v1244
        %1283 = vst.msk [vmem:[%s1271 + $0x2c] sm:$0xf] %vm1062, %v1246
        %1284 = vst.msk [vmem:[%s1271 + $0x30] sm:$0xf] %vm1062, %v1248
        %1285 = vst.msk [vmem:[%s1271 + $0x34] sm:$0xf] %vm1062, %v1250
        %1286 = vst.msk [vmem:[%s1271 + $0x38] sm:$0xf] %vm1062, %v1252
        %1287 = vst.msk [vmem:[%s1271 + $0x3c] sm:$0xf] %vm1062, %v1254
        %1288 = vrot.lane.b32.xlu0 %v1103, 96
        %v1289 = vpop.permute.xlu0 %1288
        %1290 = vrot.lane.b32.xlu0 %v1104, 96
        %v1291 = vpop.permute.xlu0 %1290
        %1292 = vrot.lane.b32.xlu0 %v1105, 96
        %v1293 = vpop.permute.xlu0 %1292
        %1294 = vrot.lane.b32.xlu0 %v1106, 96
        %v1295 = vpop.permute.xlu0 %1294
        %1296 = vrot.lane.b32.xlu0 %v1107, 96
        %v1297 = vpop.permute.xlu0 %1296
        %1298 = vrot.lane.b32.xlu0 %v1108, 96
        %v1299 = vpop.permute.xlu0 %1298
        %1300 = vrot.lane.b32.xlu0 %v1109, 96
        %v1301 = vpop.permute.xlu0 %1300
        %1302 = vrot.lane.b32.xlu0 %v1110, 96
        %v1303 = vpop.permute.xlu0 %1302
        %1304 = vrot.lane.b32.xlu0 %v1111, 96
        %v1305 = vpop.permute.xlu0 %1304
        %1306 = vrot.lane.b32.xlu0 %v1112, 96
        %v1307 = vpop.permute.xlu0 %1306
        %1308 = vrot.lane.b32.xlu0 %v1113, 96
        %v1309 = vpop.permute.xlu0 %1308
        %1310 = vrot.lane.b32.xlu0 %v1114, 96
        %v1311 = vpop.permute.xlu0 %1310
        %1312 = vrot.lane.b32.xlu0 %v1115, 96
        %v1313 = vpop.permute.xlu0 %1312
        %1314 = vrot.lane.b32.xlu0 %v1116, 96
        %v1315 = vpop.permute.xlu0 %1314
        %1316 = vrot.lane.b32.xlu0 %v1117, 96
        %v1317 = vpop.permute.xlu0 %1316
        %1318 = vrot.lane.b32.xlu0 %v1118, 96
        %v1319 = vpop.permute.xlu0 %1318
        %s1336 = scalar_lea.vmem %s336, 64 [#allocation7]
        %1337 = vst.msk [vmem:[%s1336] sm:$0xf] %vm1062, %v1289
        %1338 = vst.msk [vmem:[%s1336 + $0x4] sm:$0xf] %vm1062, %v1291
        %1339 = vst.msk [vmem:[%s1336 + $0x8] sm:$0xf] %vm1062, %v1293
        %1340 = vst.msk [vmem:[%s1336 + $0xc] sm:$0xf] %vm1062, %v1295
        %1341 = vst.msk [vmem:[%s1336 + $0x10] sm:$0xf] %vm1062, %v1297
        %1342 = vst.msk [vmem:[%s1336 + $0x14] sm:$0xf] %vm1062, %v1299
        %1343 = vst.msk [vmem:[%s1336 + $0x18] sm:$0xf] %vm1062, %v1301
        %1344 = vst.msk [vmem:[%s1336 + $0x1c] sm:$0xf] %vm1062, %v1303
        %1345 = vst.msk [vmem:[%s1336 + $0x20] sm:$0xf] %vm1062, %v1305
        %1346 = vst.msk [vmem:[%s1336 + $0x24] sm:$0xf] %vm1062, %v1307
        %1347 = vst.msk [vmem:[%s1336 + $0x28] sm:$0xf] %vm1062, %v1309
        %1348 = vst.msk [vmem:[%s1336 + $0x2c] sm:$0xf] %vm1062, %v1311
        %1349 = vst.msk [vmem:[%s1336 + $0x30] sm:$0xf] %vm1062, %v1313
        %1350 = vst.msk [vmem:[%s1336 + $0x34] sm:$0xf] %vm1062, %v1315
        %1351 = vst.msk [vmem:[%s1336 + $0x38] sm:$0xf] %vm1062, %v1317
        %1352 = vst.msk [vmem:[%s1336 + $0x3c] sm:$0xf] %vm1062, %v1319
        %1353 = vrot.lane.b32.xlu0 %v1175, 96
        %v1354 = vpop.permute.xlu0 %1353
        %1355 = vrot.lane.b32.xlu0 %v1176, 96
        %v1356 = vpop.permute.xlu0 %1355
        %1357 = vrot.lane.b32.xlu0 %v1177, 96
        %v1358 = vpop.permute.xlu0 %1357
        %1359 = vrot.lane.b32.xlu0 %v1178, 96
        %v1360 = vpop.permute.xlu0 %1359
        %1361 = vrot.lane.b32.xlu0 %v1179, 96
        %v1362 = vpop.permute.xlu0 %1361
        %1363 = vrot.lane.b32.xlu0 %v1180, 96
        %v1364 = vpop.permute.xlu0 %1363
        %1365 = vrot.lane.b32.xlu0 %v1181, 96
        %v1366 = vpop.permute.xlu0 %1365
        %1367 = vrot.lane.b32.xlu0 %v1182, 96
        %v1368 = vpop.permute.xlu0 %1367
        %1369 = vrot.lane.b32.xlu0 %v1183, 96
        %v1370 = vpop.permute.xlu0 %1369
        %1371 = vrot.lane.b32.xlu0 %v1184, 96
        %v1372 = vpop.permute.xlu0 %1371
        %1373 = vrot.lane.b32.xlu0 %v1185, 96
        %v1374 = vpop.permute.xlu0 %1373
        %1375 = vrot.lane.b32.xlu0 %v1186, 96
        %v1376 = vpop.permute.xlu0 %1375
        %1377 = vrot.lane.b32.xlu0 %v1187, 96
        %v1378 = vpop.permute.xlu0 %1377
        %1379 = vrot.lane.b32.xlu0 %v1188, 96
        %v1380 = vpop.permute.xlu0 %1379
        %1381 = vrot.lane.b32.xlu0 %v1189, 96
        %v1382 = vpop.permute.xlu0 %1381
        %1383 = vrot.lane.b32.xlu0 %v1190, 96
        %v1384 = vpop.permute.xlu0 %1383
        %s1401 = scalar_lea.vmem %s342, 64 [#allocation8]
        %1402 = vst.msk [vmem:[%s1401] sm:$0xf] %vm1062, %v1354
        %1403 = vst.msk [vmem:[%s1401 + $0x4] sm:$0xf] %vm1062, %v1356
        %1404 = vst.msk [vmem:[%s1401 + $0x8] sm:$0xf] %vm1062, %v1358
        %1405 = vst.msk [vmem:[%s1401 + $0xc] sm:$0xf] %vm1062, %v1360
        %1406 = vst.msk [vmem:[%s1401 + $0x10] sm:$0xf] %vm1062, %v1362
        %1407 = vst.msk [vmem:[%s1401 + $0x14] sm:$0xf] %vm1062, %v1364
        %1408 = vst.msk [vmem:[%s1401 + $0x18] sm:$0xf] %vm1062, %v1366
        %1409 = vst.msk [vmem:[%s1401 + $0x1c] sm:$0xf] %vm1062, %v1368
        %1410 = vst.msk [vmem:[%s1401 + $0x20] sm:$0xf] %vm1062, %v1370
        %1411 = vst.msk [vmem:[%s1401 + $0x24] sm:$0xf] %vm1062, %v1372
        %1412 = vst.msk [vmem:[%s1401 + $0x28] sm:$0xf] %vm1062, %v1374
        %1413 = vst.msk [vmem:[%s1401 + $0x2c] sm:$0xf] %vm1062, %v1376
        %1414 = vst.msk [vmem:[%s1401 + $0x30] sm:$0xf] %vm1062, %v1378
        %1415 = vst.msk [vmem:[%s1401 + $0x34] sm:$0xf] %vm1062, %v1380
        %1416 = vst.msk [vmem:[%s1401 + $0x38] sm:$0xf] %vm1062, %v1382
        %1417 = vst.msk [vmem:[%s1401 + $0x3c] sm:$0xf] %vm1062, %v1384
        %1418 = vrot.lane.b32.xlu0 %v1030, 64
        %v1419 = vpop.permute.xlu0 %1418
        %1420 = vrot.lane.b32.xlu0 %v1031, 64
        %v1421 = vpop.permute.xlu0 %1420
        %1422 = vrot.lane.b32.xlu0 %v1032, 64
        %v1423 = vpop.permute.xlu0 %1422
        %1424 = vrot.lane.b32.xlu0 %v1033, 64
        %v1425 = vpop.permute.xlu0 %1424
        %1426 = vrot.lane.b32.xlu0 %v1034, 64
        %v1427 = vpop.permute.xlu0 %1426
        %1428 = vrot.lane.b32.xlu0 %v1035, 64
        %v1429 = vpop.permute.xlu0 %1428
        %1430 = vrot.lane.b32.xlu0 %v1036, 64
        %v1431 = vpop.permute.xlu0 %1430
        %1432 = vrot.lane.b32.xlu0 %v1037, 64
        %v1433 = vpop.permute.xlu0 %1432
        %1434 = vrot.lane.b32.xlu0 %v1038, 64
        %v1435 = vpop.permute.xlu0 %1434
        %1436 = vrot.lane.b32.xlu0 %v1039, 64
        %v1437 = vpop.permute.xlu0 %1436
        %1438 = vrot.lane.b32.xlu0 %v1040, 64
        %v1439 = vpop.permute.xlu0 %1438
        %1440 = vrot.lane.b32.xlu0 %v1041, 64
        %v1441 = vpop.permute.xlu0 %1440
        %1442 = vrot.lane.b32.xlu0 %v1042, 64
        %v1443 = vpop.permute.xlu0 %1442
        %1444 = vrot.lane.b32.xlu0 %v1043, 64
        %v1445 = vpop.permute.xlu0 %1444
        %1446 = vrot.lane.b32.xlu0 %v1044, 64
        %v1447 = vpop.permute.xlu0 %1446
        %1448 = vrot.lane.b32.xlu0 %v1045, 64
        %v1449 = vpop.permute.xlu0 %1448
        %s1466 = scalar_lea.vmem %s330, 128 [#allocation6]
        %1467 = vst.msk [vmem:[%s1466] sm:$0xf] %vm1062, %v1419
        %1468 = vst.msk [vmem:[%s1466 + $0x4] sm:$0xf] %vm1062, %v1421
        %1469 = vst.msk [vmem:[%s1466 + $0x8] sm:$0xf] %vm1062, %v1423
        %1470 = vst.msk [vmem:[%s1466 + $0xc] sm:$0xf] %vm1062, %v1425
        %1471 = vst.msk [vmem:[%s1466 + $0x10] sm:$0xf] %vm1062, %v1427
        %1472 = vst.msk [vmem:[%s1466 + $0x14] sm:$0xf] %vm1062, %v1429
        %1473 = vst.msk [vmem:[%s1466 + $0x18] sm:$0xf] %vm1062, %v1431
        %1474 = vst.msk [vmem:[%s1466 + $0x1c] sm:$0xf] %vm1062, %v1433
        %1475 = vst.msk [vmem:[%s1466 + $0x20] sm:$0xf] %vm1062, %v1435
        %1476 = vst.msk [vmem:[%s1466 + $0x24] sm:$0xf] %vm1062, %v1437
        %1477 = vst.msk [vmem:[%s1466 + $0x28] sm:$0xf] %vm1062, %v1439
        %1478 = vst.msk [vmem:[%s1466 + $0x2c] sm:$0xf] %vm1062, %v1441
        %1479 = vst.msk [vmem:[%s1466 + $0x30] sm:$0xf] %vm1062, %v1443
        %1480 = vst.msk [vmem:[%s1466 + $0x34] sm:$0xf] %vm1062, %v1445
        %1481 = vst.msk [vmem:[%s1466 + $0x38] sm:$0xf] %vm1062, %v1447
        %1482 = vst.msk [vmem:[%s1466 + $0x3c] sm:$0xf] %vm1062, %v1449
        %1483 = vrot.lane.b32.xlu0 %v1103, 64
        %v1484 = vpop.permute.xlu0 %1483
        %1485 = vrot.lane.b32.xlu0 %v1104, 64
        %v1486 = vpop.permute.xlu0 %1485
        %1487 = vrot.lane.b32.xlu0 %v1105, 64
        %v1488 = vpop.permute.xlu0 %1487
        %1489 = vrot.lane.b32.xlu0 %v1106, 64
        %v1490 = vpop.permute.xlu0 %1489
        %1491 = vrot.lane.b32.xlu0 %v1107, 64
        %v1492 = vpop.permute.xlu0 %1491
        %1493 = vrot.lane.b32.xlu0 %v1108, 64
        %v1494 = vpop.permute.xlu0 %1493
        %1495 = vrot.lane.b32.xlu0 %v1109, 64
        %v1496 = vpop.permute.xlu0 %1495
        %1497 = vrot.lane.b32.xlu0 %v1110, 64
        %v1498 = vpop.permute.xlu0 %1497
        %1499 = vrot.lane.b32.xlu0 %v1111, 64
        %v1500 = vpop.permute.xlu0 %1499
        %1501 = vrot.lane.b32.xlu0 %v1112, 64
        %v1502 = vpop.permute.xlu0 %1501
        %1503 = vrot.lane.b32.xlu0 %v1113, 64
        %v1504 = vpop.permute.xlu0 %1503
        %1505 = vrot.lane.b32.xlu0 %v1114, 64
        %v1506 = vpop.permute.xlu0 %1505
        %1507 = vrot.lane.b32.xlu0 %v1115, 64
        %v1508 = vpop.permute.xlu0 %1507
        %1509 = vrot.lane.b32.xlu0 %v1116, 64
        %v1510 = vpop.permute.xlu0 %1509
        %1511 = vrot.lane.b32.xlu0 %v1117, 64
        %v1512 = vpop.permute.xlu0 %1511
        %1513 = vrot.lane.b32.xlu0 %v1118, 64
        %v1514 = vpop.permute.xlu0 %1513
        %s1531 = scalar_lea.vmem %s336, 128 [#allocation7]
        %1532 = vst.msk [vmem:[%s1531] sm:$0xf] %vm1062, %v1484
        %1533 = vst.msk [vmem:[%s1531 + $0x4] sm:$0xf] %vm1062, %v1486
        %1534 = vst.msk [vmem:[%s1531 + $0x8] sm:$0xf] %vm1062, %v1488
        %1535 = vst.msk [vmem:[%s1531 + $0xc] sm:$0xf] %vm1062, %v1490
        %1536 = vst.msk [vmem:[%s1531 + $0x10] sm:$0xf] %vm1062, %v1492
        %1537 = vst.msk [vmem:[%s1531 + $0x14] sm:$0xf] %vm1062, %v1494
        %1538 = vst.msk [vmem:[%s1531 + $0x18] sm:$0xf] %vm1062, %v1496
        %1539 = vst.msk [vmem:[%s1531 + $0x1c] sm:$0xf] %vm1062, %v1498
        %1540 = vst.msk [vmem:[%s1531 + $0x20] sm:$0xf] %vm1062, %v1500
        %1541 = vst.msk [vmem:[%s1531 + $0x24] sm:$0xf] %vm1062, %v1502
        %1542 = vst.msk [vmem:[%s1531 + $0x28] sm:$0xf] %vm1062, %v1504
        %1543 = vst.msk [vmem:[%s1531 + $0x2c] sm:$0xf] %vm1062, %v1506
        %1544 = vst.msk [vmem:[%s1531 + $0x30] sm:$0xf] %vm1062, %v1508
        %1545 = vst.msk [vmem:[%s1531 + $0x34] sm:$0xf] %vm1062, %v1510
        %1546 = vst.msk [vmem:[%s1531 + $0x38] sm:$0xf] %vm1062, %v1512
        %1547 = vst.msk [vmem:[%s1531 + $0x3c] sm:$0xf] %vm1062, %v1514
        %1548 = vrot.lane.b32.xlu0 %v1175, 64
        %v1549 = vpop.permute.xlu0 %1548
        %1550 = vrot.lane.b32.xlu0 %v1176, 64
        %v1551 = vpop.permute.xlu0 %1550
        %1552 = vrot.lane.b32.xlu0 %v1177, 64
        %v1553 = vpop.permute.xlu0 %1552
        %1554 = vrot.lane.b32.xlu0 %v1178, 64
        %v1555 = vpop.permute.xlu0 %1554
        %1556 = vrot.lane.b32.xlu0 %v1179, 64
        %v1557 = vpop.permute.xlu0 %1556
        %1558 = vrot.lane.b32.xlu0 %v1180, 64
        %v1559 = vpop.permute.xlu0 %1558
        %1560 = vrot.lane.b32.xlu0 %v1181, 64
        %v1561 = vpop.permute.xlu0 %1560
        %1562 = vrot.lane.b32.xlu0 %v1182, 64
        %v1563 = vpop.permute.xlu0 %1562
        %1564 = vrot.lane.b32.xlu0 %v1183, 64
        %v1565 = vpop.permute.xlu0 %1564
        %1566 = vrot.lane.b32.xlu0 %v1184, 64
        %v1567 = vpop.permute.xlu0 %1566
        %1568 = vrot.lane.b32.xlu0 %v1185, 64
        %v1569 = vpop.permute.xlu0 %1568
        %1570 = vrot.lane.b32.xlu0 %v1186, 64
        %v1571 = vpop.permute.xlu0 %1570
        %1572 = vrot.lane.b32.xlu0 %v1187, 64
        %v1573 = vpop.permute.xlu0 %1572
        %1574 = vrot.lane.b32.xlu0 %v1188, 64
        %v1575 = vpop.permute.xlu0 %1574
        %1576 = vrot.lane.b32.xlu0 %v1189, 64
        %v1577 = vpop.permute.xlu0 %1576
        %1578 = vrot.lane.b32.xlu0 %v1190, 64
        %v1579 = vpop.permute.xlu0 %1578
        %s1596 = scalar_lea.vmem %s342, 128 [#allocation8]
        %1597 = vst.msk [vmem:[%s1596] sm:$0xf] %vm1062, %v1549
        %1598 = vst.msk [vmem:[%s1596 + $0x4] sm:$0xf] %vm1062, %v1551
        %1599 = vst.msk [vmem:[%s1596 + $0x8] sm:$0xf] %vm1062, %v1553
        %1600 = vst.msk [vmem:[%s1596 + $0xc] sm:$0xf] %vm1062, %v1555
        %1601 = vst.msk [vmem:[%s1596 + $0x10] sm:$0xf] %vm1062, %v1557
        %1602 = vst.msk [vmem:[%s1596 + $0x14] sm:$0xf] %vm1062, %v1559
        %1603 = vst.msk [vmem:[%s1596 + $0x18] sm:$0xf] %vm1062, %v1561
        %1604 = vst.msk [vmem:[%s1596 + $0x1c] sm:$0xf] %vm1062, %v1563
        %1605 = vst.msk [vmem:[%s1596 + $0x20] sm:$0xf] %vm1062, %v1565
        %1606 = vst.msk [vmem:[%s1596 + $0x24] sm:$0xf] %vm1062, %v1567
        %1607 = vst.msk [vmem:[%s1596 + $0x28] sm:$0xf] %vm1062, %v1569
        %1608 = vst.msk [vmem:[%s1596 + $0x2c] sm:$0xf] %vm1062, %v1571
        %1609 = vst.msk [vmem:[%s1596 + $0x30] sm:$0xf] %vm1062, %v1573
        %1610 = vst.msk [vmem:[%s1596 + $0x34] sm:$0xf] %vm1062, %v1575
        %1611 = vst.msk [vmem:[%s1596 + $0x38] sm:$0xf] %vm1062, %v1577
        %1612 = vst.msk [vmem:[%s1596 + $0x3c] sm:$0xf] %vm1062, %v1579
        %1613 = vrot.lane.b32.xlu0 %v1030, 32
        %v1614 = vpop.permute.xlu0 %1613
        %1615 = vrot.lane.b32.xlu0 %v1031, 32
        %v1616 = vpop.permute.xlu0 %1615
        %1617 = vrot.lane.b32.xlu0 %v1032, 32
        %v1618 = vpop.permute.xlu0 %1617
        %1619 = vrot.lane.b32.xlu0 %v1033, 32
        %v1620 = vpop.permute.xlu0 %1619
        %1621 = vrot.lane.b32.xlu0 %v1034, 32
        %v1622 = vpop.permute.xlu0 %1621
        %1623 = vrot.lane.b32.xlu0 %v1035, 32
        %v1624 = vpop.permute.xlu0 %1623
        %1625 = vrot.lane.b32.xlu0 %v1036, 32
        %v1626 = vpop.permute.xlu0 %1625
        %1627 = vrot.lane.b32.xlu0 %v1037, 32
        %v1628 = vpop.permute.xlu0 %1627
        %1629 = vrot.lane.b32.xlu0 %v1038, 32
        %v1630 = vpop.permute.xlu0 %1629
        %1631 = vrot.lane.b32.xlu0 %v1039, 32
        %v1632 = vpop.permute.xlu0 %1631
        %1633 = vrot.lane.b32.xlu0 %v1040, 32
        %v1634 = vpop.permute.xlu0 %1633
        %1635 = vrot.lane.b32.xlu0 %v1041, 32
        %v1636 = vpop.permute.xlu0 %1635
        %1637 = vrot.lane.b32.xlu0 %v1042, 32
        %v1638 = vpop.permute.xlu0 %1637
        %1639 = vrot.lane.b32.xlu0 %v1043, 32
        %v1640 = vpop.permute.xlu0 %1639
        %1641 = vrot.lane.b32.xlu0 %v1044, 32
        %v1642 = vpop.permute.xlu0 %1641
        %1643 = vrot.lane.b32.xlu0 %v1045, 32
        %v1644 = vpop.permute.xlu0 %1643
        %s1661 = scalar_lea.vmem %s330, 192 [#allocation6]
        %1662 = vst.msk [vmem:[%s1661] sm:$0xf] %vm1062, %v1614
        %1663 = vst.msk [vmem:[%s1661 + $0x4] sm:$0xf] %vm1062, %v1616
        %1664 = vst.msk [vmem:[%s1661 + $0x8] sm:$0xf] %vm1062, %v1618
        %1665 = vst.msk [vmem:[%s1661 + $0xc] sm:$0xf] %vm1062, %v1620
        %1666 = vst.msk [vmem:[%s1661 + $0x10] sm:$0xf] %vm1062, %v1622
        %1667 = vst.msk [vmem:[%s1661 + $0x14] sm:$0xf] %vm1062, %v1624
        %1668 = vst.msk [vmem:[%s1661 + $0x18] sm:$0xf] %vm1062, %v1626
        %1669 = vst.msk [vmem:[%s1661 + $0x1c] sm:$0xf] %vm1062, %v1628
        %1670 = vst.msk [vmem:[%s1661 + $0x20] sm:$0xf] %vm1062, %v1630
        %1671 = vst.msk [vmem:[%s1661 + $0x24] sm:$0xf] %vm1062, %v1632
        %1672 = vst.msk [vmem:[%s1661 + $0x28] sm:$0xf] %vm1062, %v1634
        %1673 = vst.msk [vmem:[%s1661 + $0x2c] sm:$0xf] %vm1062, %v1636
        %1674 = vst.msk [vmem:[%s1661 + $0x30] sm:$0xf] %vm1062, %v1638
        %1675 = vst.msk [vmem:[%s1661 + $0x34] sm:$0xf] %vm1062, %v1640
        %1676 = vst.msk [vmem:[%s1661 + $0x38] sm:$0xf] %vm1062, %v1642
        %1677 = vst.msk [vmem:[%s1661 + $0x3c] sm:$0xf] %vm1062, %v1644
        %1678 = vrot.lane.b32.xlu0 %v1103, 32
        %v1679 = vpop.permute.xlu0 %1678
        %1680 = vrot.lane.b32.xlu0 %v1104, 32
        %v1681 = vpop.permute.xlu0 %1680
        %1682 = vrot.lane.b32.xlu0 %v1105, 32
        %v1683 = vpop.permute.xlu0 %1682
        %1684 = vrot.lane.b32.xlu0 %v1106, 32
        %v1685 = vpop.permute.xlu0 %1684
        %1686 = vrot.lane.b32.xlu0 %v1107, 32
        %v1687 = vpop.permute.xlu0 %1686
        %1688 = vrot.lane.b32.xlu0 %v1108, 32
        %v1689 = vpop.permute.xlu0 %1688
        %1690 = vrot.lane.b32.xlu0 %v1109, 32
        %v1691 = vpop.permute.xlu0 %1690
        %1692 = vrot.lane.b32.xlu0 %v1110, 32
        %v1693 = vpop.permute.xlu0 %1692
        %1694 = vrot.lane.b32.xlu0 %v1111, 32
        %v1695 = vpop.permute.xlu0 %1694
        %1696 = vrot.lane.b32.xlu0 %v1112, 32
        %v1697 = vpop.permute.xlu0 %1696
        %1698 = vrot.lane.b32.xlu0 %v1113, 32
        %v1699 = vpop.permute.xlu0 %1698
        %1700 = vrot.lane.b32.xlu0 %v1114, 32
        %v1701 = vpop.permute.xlu0 %1700
        %1702 = vrot.lane.b32.xlu0 %v1115, 32
        %v1703 = vpop.permute.xlu0 %1702
        %1704 = vrot.lane.b32.xlu0 %v1116, 32
        %v1705 = vpop.permute.xlu0 %1704
        %1706 = vrot.lane.b32.xlu0 %v1117, 32
        %v1707 = vpop.permute.xlu0 %1706
        %1708 = vrot.lane.b32.xlu0 %v1118, 32
        %v1709 = vpop.permute.xlu0 %1708
        %s1726 = scalar_lea.vmem %s336, 192 [#allocation7]
        %1727 = vst.msk [vmem:[%s1726] sm:$0xf] %vm1062, %v1679
        %1728 = vst.msk [vmem:[%s1726 + $0x4] sm:$0xf] %vm1062, %v1681
        %1729 = vst.msk [vmem:[%s1726 + $0x8] sm:$0xf] %vm1062, %v1683
        %1730 = vst.msk [vmem:[%s1726 + $0xc] sm:$0xf] %vm1062, %v1685
        %1731 = vst.msk [vmem:[%s1726 + $0x10] sm:$0xf] %vm1062, %v1687
        %1732 = vst.msk [vmem:[%s1726 + $0x14] sm:$0xf] %vm1062, %v1689
        %1733 = vst.msk [vmem:[%s1726 + $0x18] sm:$0xf] %vm1062, %v1691
        %1734 = vst.msk [vmem:[%s1726 + $0x1c] sm:$0xf] %vm1062, %v1693
        %1735 = vst.msk [vmem:[%s1726 + $0x20] sm:$0xf] %vm1062, %v1695
        %1736 = vst.msk [vmem:[%s1726 + $0x24] sm:$0xf] %vm1062, %v1697
        %1737 = vst.msk [vmem:[%s1726 + $0x28] sm:$0xf] %vm1062, %v1699
        %1738 = vst.msk [vmem:[%s1726 + $0x2c] sm:$0xf] %vm1062, %v1701
        %1739 = vst.msk [vmem:[%s1726 + $0x30] sm:$0xf] %vm1062, %v1703
        %1740 = vst.msk [vmem:[%s1726 + $0x34] sm:$0xf] %vm1062, %v1705
        %1741 = vst.msk [vmem:[%s1726 + $0x38] sm:$0xf] %vm1062, %v1707
        %1742 = vst.msk [vmem:[%s1726 + $0x3c] sm:$0xf] %vm1062, %v1709
        %1743 = vrot.lane.b32.xlu0 %v1175, 32
        %v1744 = vpop.permute.xlu0 %1743
        %1745 = vrot.lane.b32.xlu0 %v1176, 32
        %v1746 = vpop.permute.xlu0 %1745
        %1747 = vrot.lane.b32.xlu0 %v1177, 32
        %v1748 = vpop.permute.xlu0 %1747
        %1749 = vrot.lane.b32.xlu0 %v1178, 32
        %v1750 = vpop.permute.xlu0 %1749
        %1751 = vrot.lane.b32.xlu0 %v1179, 32
        %v1752 = vpop.permute.xlu0 %1751
        %1753 = vrot.lane.b32.xlu0 %v1180, 32
        %v1754 = vpop.permute.xlu0 %1753
        %1755 = vrot.lane.b32.xlu0 %v1181, 32
        %v1756 = vpop.permute.xlu0 %1755
        %1757 = vrot.lane.b32.xlu0 %v1182, 32
        %v1758 = vpop.permute.xlu0 %1757
        %1759 = vrot.lane.b32.xlu0 %v1183, 32
        %v1760 = vpop.permute.xlu0 %1759
        %1761 = vrot.lane.b32.xlu0 %v1184, 32
        %v1762 = vpop.permute.xlu0 %1761
        %1763 = vrot.lane.b32.xlu0 %v1185, 32
        %v1764 = vpop.permute.xlu0 %1763
        %1765 = vrot.lane.b32.xlu0 %v1186, 32
        %v1766 = vpop.permute.xlu0 %1765
        %1767 = vrot.lane.b32.xlu0 %v1187, 32
        %v1768 = vpop.permute.xlu0 %1767
        %1769 = vrot.lane.b32.xlu0 %v1188, 32
        %v1770 = vpop.permute.xlu0 %1769
        %1771 = vrot.lane.b32.xlu0 %v1189, 32
        %v1772 = vpop.permute.xlu0 %1771
        %1773 = vrot.lane.b32.xlu0 %v1190, 32
        %v1774 = vpop.permute.xlu0 %1773
        %s1791 = scalar_lea.vmem %s342, 192 [#allocation8]
        %1792 = vst.msk [vmem:[%s1791] sm:$0xf] %vm1062, %v1744
        %1793 = vst.msk [vmem:[%s1791 + $0x4] sm:$0xf] %vm1062, %v1746
        %1794 = vst.msk [vmem:[%s1791 + $0x8] sm:$0xf] %vm1062, %v1748
        %1795 = vst.msk [vmem:[%s1791 + $0xc] sm:$0xf] %vm1062, %v1750
        %1796 = vst.msk [vmem:[%s1791 + $0x10] sm:$0xf] %vm1062, %v1752
        %1797 = vst.msk [vmem:[%s1791 + $0x14] sm:$0xf] %vm1062, %v1754
        %1798 = vst.msk [vmem:[%s1791 + $0x18] sm:$0xf] %vm1062, %v1756
        %1799 = vst.msk [vmem:[%s1791 + $0x1c] sm:$0xf] %vm1062, %v1758
        %1800 = vst.msk [vmem:[%s1791 + $0x20] sm:$0xf] %vm1062, %v1760
        %1801 = vst.msk [vmem:[%s1791 + $0x24] sm:$0xf] %vm1062, %v1762
        %1802 = vst.msk [vmem:[%s1791 + $0x28] sm:$0xf] %vm1062, %v1764
        %1803 = vst.msk [vmem:[%s1791 + $0x2c] sm:$0xf] %vm1062, %v1766
        %1804 = vst.msk [vmem:[%s1791 + $0x30] sm:$0xf] %vm1062, %v1768
        %1805 = vst.msk [vmem:[%s1791 + $0x34] sm:$0xf] %vm1062, %v1770
        %1806 = vst.msk [vmem:[%s1791 + $0x38] sm:$0xf] %vm1062, %v1772
        %1807 = vst.msk [vmem:[%s1791 + $0x3c] sm:$0xf] %vm1062, %v1774
        %s1808 = sand.u32 %s157, 1
        %s1809 = sand.u32 %s157, 1
        %s1810 = smul.addr %s1809, 256
        %s1811 = scalar_lea.vmem [#allocation6], %s1810
        %s1812 = sand.u32 %s185, 1
        %s1813 = sand.u32 %s185, 1
        %s1814 = smul.addr %s1813, 256
        %s1815 = scalar_lea.vmem [#allocation7], %s1814
        %s1816 = sand.u32 %s213, 1
        %s1817 = sand.u32 %s213, 1
        %s1818 = smul.addr %s1817, 256
        %s1819 = scalar_lea.vmem [#allocation8], %s1818
        // Predicated region
        $region49: #{tpu_custom_call.1} parent=39 // pred_check
          %p1820 = pneg %p167
        $region50: #{tpu_custom_call.1} parent=39 // pred_check_branch
          %1822 = sbr.rel (%p1820) target = $region52
        $region51: #{tpu_custom_call.1} parent=39 // pred_region
          %s1823 = smul.u32 16, %s28
          %s1824 = smul.addr %s27, 128
          %s1825 = sadd.s32 %s1823, %s1824
          %s1826 = smul.addr %s1825, 4
          %s1827 = scalar_lea.vmem %s5, %s1826
          // Predicated region
          $region53: #{tpu_custom_call.1} parent=51 // pred_check
            _
          $region54: #{tpu_custom_call.1} parent=51 // pred_check_branch
            %1829 = sbr.rel (0) target = $region56
          $region55: #{tpu_custom_call.1} parent=51 // pred_region
            // Predicated region
            $region57: #{tpu_custom_call.1} parent=55 // pred_check
              _
            $region58: #{tpu_custom_call.1} parent=55 // pred_check_branch
              %1831 = sbr.rel target = $region60
            $region59: #{tpu_custom_call.1} parent=55 // pred_region
              // Predicated region
              $region72: #{tpu_custom_call.1} parent=59 // pred_check
                _
              $region73: #{tpu_custom_call.1} parent=59 // pred_check_branch
                %1972 = sbr.rel (0) target = $region75
              $region74: #{tpu_custom_call.1} parent=59 // pred_region
                loop: start=0, step=1, limit=1
                $region76: #{tpu_custom_call.1} parent=74 // loop_pre_header
                  _
                $region77: #{tpu_custom_call.1} parent=74 // loop_header
                  %s1974 = sphi 0, %s1978
                  %p1975 = scmp.ge.s32.totalorder %s1974, 1
                  %s1979 = sphi %s1811, %s1811
                  %s1980 = sphi %s1827, %s1827
                $region78: #{tpu_custom_call.1} parent=74 // loop_header_branch
                  %1977 = sbr.rel (%p1975) target = $region82
                $region79: #{tpu_custom_call.1} parent=74 // loop_body
                  _
                $region80: #{tpu_custom_call.1} parent=74 // loop_footer
                  %s1978 = sadd.s32 1, %s1974
                $region81: #{tpu_custom_call.1} parent=74 // loop_footer_branch
                  %1973 = sbr.rel target = $region77
                $region82: #{tpu_custom_call.1} parent=74 // loop_exit
                  _
                loop: start=0, step=1, limit=1
                $region83: #{tpu_custom_call.1} parent=74 // loop_pre_header
                  _
                $region84: #{tpu_custom_call.1} parent=74 // loop_header
                  %s1983 = sphi 0, %s1987
                  %p1984 = scmp.ge.s32.totalorder %s1983, 1
                  %s1988 = sphi %s1811, %s1811
                  %s1989 = sphi %s1827, %s1827
                $region85: #{tpu_custom_call.1} parent=74 // loop_header_branch
                  %1986 = sbr.rel (%p1984) target = $region89
                $region86: #{tpu_custom_call.1} parent=74 // loop_body
                  %v1990 = vld [vmem:[%s1988] sm:$0xf]
                  %1991 = vst [vmem:[%s1989] sm:$0xf] %v1990
                  %v1992 = vld [vmem:[%s1988 + $0x4] sm:$0xf]
                  %1993 = vst [vmem:[%s1989 + $0x4] sm:$0xf] %v1992
                  %v1994 = vld [vmem:[%s1988 + $0x8] sm:$0xf]
                  %1995 = vst [vmem:[%s1989 + $0x8] sm:$0xf] %v1994
                  %v1996 = vld [vmem:[%s1988 + $0xc] sm:$0xf]
                  %1997 = vst [vmem:[%s1989 + $0xc] sm:$0xf] %v1996
                  %v1998 = vld [vmem:[%s1988 + $0x10] sm:$0xf]
                  %1999 = vst [vmem:[%s1989 + $0x10] sm:$0xf] %v1998
                  %v2000 = vld [vmem:[%s1988 + $0x14] sm:$0xf]
                  %2001 = vst [vmem:[%s1989 + $0x14] sm:$0xf] %v2000
                  %v2002 = vld [vmem:[%s1988 + $0x18] sm:$0xf]
                  %2003 = vst [vmem:[%s1989 + $0x18] sm:$0xf] %v2002
                  %v2004 = vld [vmem:[%s1988 + $0x1c] sm:$0xf]
                  %2005 = vst [vmem:[%s1989 + $0x1c] sm:$0xf] %v2004
                  %v2006 = vld [vmem:[%s1988 + $0x20] sm:$0xf]
                  %2007 = vst [vmem:[%s1989 + $0x20] sm:$0xf] %v2006
                  %v2008 = vld [vmem:[%s1988 + $0x24] sm:$0xf]
                  %2009 = vst [vmem:[%s1989 + $0x24] sm:$0xf] %v2008
                  %v2010 = vld [vmem:[%s1988 + $0x28] sm:$0xf]
                  %2011 = vst [vmem:[%s1989 + $0x28] sm:$0xf] %v2010
                  %v2012 = vld [vmem:[%s1988 + $0x2c] sm:$0xf]
                  %2013 = vst [vmem:[%s1989 + $0x2c] sm:$0xf] %v2012
                  %v2014 = vld [vmem:[%s1988 + $0x30] sm:$0xf]
                  %2015 = vst [vmem:[%s1989 + $0x30] sm:$0xf] %v2014
                  %v2016 = vld [vmem:[%s1988 + $0x34] sm:$0xf]
                  %2017 = vst [vmem:[%s1989 + $0x34] sm:$0xf] %v2016
                  %v2018 = vld [vmem:[%s1988 + $0x38] sm:$0xf]
                  %2019 = vst [vmem:[%s1989 + $0x38] sm:$0xf] %v2018
                  %v2020 = vld [vmem:[%s1988 + $0x3c] sm:$0xf]
                  %2021 = vst [vmem:[%s1989 + $0x3c] sm:$0xf] %v2020
                  %v2022 = vld [vmem:[%s1988 + $0x40] sm:$0xf]
                  %2023 = vst [vmem:[%s1989 + $0x80] sm:$0xf] %v2022
                  %v2024 = vld [vmem:[%s1988 + $0x44] sm:$0xf]
                  %2025 = vst [vmem:[%s1989 + $0x84] sm:$0xf] %v2024
                  %v2026 = vld [vmem:[%s1988 + $0x48] sm:$0xf]
                  %2027 = vst [vmem:[%s1989 + $0x88] sm:$0xf] %v2026
                  %v2028 = vld [vmem:[%s1988 + $0x4c] sm:$0xf]
                  %2029 = vst [vmem:[%s1989 + $0x8c] sm:$0xf] %v2028
                  %v2030 = vld [vmem:[%s1988 + $0x50] sm:$0xf]
                  %2031 = vst [vmem:[%s1989 + $0x90] sm:$0xf] %v2030
                  %v2032 = vld [vmem:[%s1988 + $0x54] sm:$0xf]
                  %2033 = vst [vmem:[%s1989 + $0x94] sm:$0xf] %v2032
                  %v2034 = vld [vmem:[%s1988 + $0x58] sm:$0xf]
                  %2035 = vst [vmem:[%s1989 + $0x98] sm:$0xf] %v2034
                  %v2036 = vld [vmem:[%s1988 + $0x5c] sm:$0xf]
                  %2037 = vst [vmem:[%s1989 + $0x9c] sm:$0xf] %v2036
                  %v2038 = vld [vmem:[%s1988 + $0x60] sm:$0xf]
                  %2039 = vst [vmem:[%s1989 + $0xa0] sm:$0xf] %v2038
                  %v2040 = vld [vmem:[%s1988 + $0x64] sm:$0xf]
                  %2041 = vst [vmem:[%s1989 + $0xa4] sm:$0xf] %v2040
                  %v2042 = vld [vmem:[%s1988 + $0x68] sm:$0xf]
                  %2043 = vst [vmem:[%s1989 + $0xa8] sm:$0xf] %v2042
                  %v2044 = vld [vmem:[%s1988 + $0x6c] sm:$0xf]
                  %2045 = vst [vmem:[%s1989 + $0xac] sm:$0xf] %v2044
                  %v2046 = vld [vmem:[%s1988 + $0x70] sm:$0xf]
                  %2047 = vst [vmem:[%s1989 + $0xb0] sm:$0xf] %v2046
                  %v2048 = vld [vmem:[%s1988 + $0x74] sm:$0xf]
                  %2049 = vst [vmem:[%s1989 + $0xb4] sm:$0xf] %v2048
                  %v2050 = vld [vmem:[%s1988 + $0x78] sm:$0xf]
                  %2051 = vst [vmem:[%s1989 + $0xb8] sm:$0xf] %v2050
                  %v2052 = vld [vmem:[%s1988 + $0x7c] sm:$0xf]
                  %2053 = vst [vmem:[%s1989 + $0xbc] sm:$0xf] %v2052
                  %v2054 = vld [vmem:[%s1988 + $0x80] sm:$0xf]
                  %2055 = vst [vmem:[%s1989 + $0x100] sm:$0xf] %v2054
                  %v2056 = vld [vmem:[%s1988 + $0x84] sm:$0xf]
                  %2057 = vst [vmem:[%s1989 + $0x104] sm:$0xf] %v2056
                  %v2058 = vld [vmem:[%s1988 + $0x88] sm:$0xf]
                  %2059 = vst [vmem:[%s1989 + $0x108] sm:$0xf] %v2058
                  %v2060 = vld [vmem:[%s1988 + $0x8c] sm:$0xf]
                  %2061 = vst [vmem:[%s1989 + $0x10c] sm:$0xf] %v2060
                  %v2062 = vld [vmem:[%s1988 + $0x90] sm:$0xf]
                  %2063 = vst [vmem:[%s1989 + $0x110] sm:$0xf] %v2062
                  %v2064 = vld [vmem:[%s1988 + $0x94] sm:$0xf]
                  %2065 = vst [vmem:[%s1989 + $0x114] sm:$0xf] %v2064
                  %v2066 = vld [vmem:[%s1988 + $0x98] sm:$0xf]
                  %2067 = vst [vmem:[%s1989 + $0x118] sm:$0xf] %v2066
                  %v2068 = vld [vmem:[%s1988 + $0x9c] sm:$0xf]
                  %2069 = vst [vmem:[%s1989 + $0x11c] sm:$0xf] %v2068
                  %v2070 = vld [vmem:[%s1988 + $0xa0] sm:$0xf]
                  %2071 = vst [vmem:[%s1989 + $0x120] sm:$0xf] %v2070
                  %v2072 = vld [vmem:[%s1988 + $0xa4] sm:$0xf]
                  %2073 = vst [vmem:[%s1989 + $0x124] sm:$0xf] %v2072
                  %v2074 = vld [vmem:[%s1988 + $0xa8] sm:$0xf]
                  %2075 = vst [vmem:[%s1989 + $0x128] sm:$0xf] %v2074
                  %v2076 = vld [vmem:[%s1988 + $0xac] sm:$0xf]
                  %2077 = vst [vmem:[%s1989 + $0x12c] sm:$0xf] %v2076
                  %v2078 = vld [vmem:[%s1988 + $0xb0] sm:$0xf]
                  %2079 = vst [vmem:[%s1989 + $0x130] sm:$0xf] %v2078
                  %v2080 = vld [vmem:[%s1988 + $0xb4] sm:$0xf]
                  %2081 = vst [vmem:[%s1989 + $0x134] sm:$0xf] %v2080
                  %v2082 = vld [vmem:[%s1988 + $0xb8] sm:$0xf]
                  %2083 = vst [vmem:[%s1989 + $0x138] sm:$0xf] %v2082
                  %v2084 = vld [vmem:[%s1988 + $0xbc] sm:$0xf]
                  %2085 = vst [vmem:[%s1989 + $0x13c] sm:$0xf] %v2084
                  %v2086 = vld [vmem:[%s1988 + $0xc0] sm:$0xf]
                  %2087 = vst [vmem:[%s1989 + $0x180] sm:$0xf] %v2086
                  %v2088 = vld [vmem:[%s1988 + $0xc4] sm:$0xf]
                  %2089 = vst [vmem:[%s1989 + $0x184] sm:$0xf] %v2088
                  %v2090 = vld [vmem:[%s1988 + $0xc8] sm:$0xf]
                  %2091 = vst [vmem:[%s1989 + $0x188] sm:$0xf] %v2090
                  %v2092 = vld [vmem:[%s1988 + $0xcc] sm:$0xf]
                  %2093 = vst [vmem:[%s1989 + $0x18c] sm:$0xf] %v2092
                  %v2094 = vld [vmem:[%s1988 + $0xd0] sm:$0xf]
                  %2095 = vst [vmem:[%s1989 + $0x190] sm:$0xf] %v2094
                  %v2096 = vld [vmem:[%s1988 + $0xd4] sm:$0xf]
                  %2097 = vst [vmem:[%s1989 + $0x194] sm:$0xf] %v2096
                  %v2098 = vld [vmem:[%s1988 + $0xd8] sm:$0xf]
                  %2099 = vst [vmem:[%s1989 + $0x198] sm:$0xf] %v2098
                  %v2100 = vld [vmem:[%s1988 + $0xdc] sm:$0xf]
                  %2101 = vst [vmem:[%s1989 + $0x19c] sm:$0xf] %v2100
                  %v2102 = vld [vmem:[%s1988 + $0xe0] sm:$0xf]
                  %2103 = vst [vmem:[%s1989 + $0x1a0] sm:$0xf] %v2102
                  %v2104 = vld [vmem:[%s1988 + $0xe4] sm:$0xf]
                  %2105 = vst [vmem:[%s1989 + $0x1a4] sm:$0xf] %v2104
                  %v2106 = vld [vmem:[%s1988 + $0xe8] sm:$0xf]
                  %2107 = vst [vmem:[%s1989 + $0x1a8] sm:$0xf] %v2106
                  %v2108 = vld [vmem:[%s1988 + $0xec] sm:$0xf]
                  %2109 = vst [vmem:[%s1989 + $0x1ac] sm:$0xf] %v2108
                  %v2110 = vld [vmem:[%s1988 + $0xf0] sm:$0xf]
                  %2111 = vst [vmem:[%s1989 + $0x1b0] sm:$0xf] %v2110
                  %v2112 = vld [vmem:[%s1988 + $0xf4] sm:$0xf]
                  %2113 = vst [vmem:[%s1989 + $0x1b4] sm:$0xf] %v2112
                  %v2114 = vld [vmem:[%s1988 + $0xf8] sm:$0xf]
                  %2115 = vst [vmem:[%s1989 + $0x1b8] sm:$0xf] %v2114
                  %v2116 = vld [vmem:[%s1988 + $0xfc] sm:$0xf]
                  %2117 = vst [vmem:[%s1989 + $0x1bc] sm:$0xf] %v2116
                $region87: #{tpu_custom_call.1} parent=74 // loop_footer
                  %s1987 = sadd.s32 1, %s1983
                $region88: #{tpu_custom_call.1} parent=74 // loop_footer_branch
                  %1982 = sbr.rel target = $region84
                $region89: #{tpu_custom_call.1} parent=74 // loop_exit
                  _
              $region75: #{tpu_custom_call.1} parent=59 // pred_fallthru
                _
            $region60: #{tpu_custom_call.1} parent=55 // pred_fallthru
              _
            // Predicated region
            $region61: #{tpu_custom_call.1} parent=55 // pred_check
              _
            $region62: #{tpu_custom_call.1} parent=55 // pred_check_branch
              %1833 = sbr.rel (0) target = $region64
            $region63: #{tpu_custom_call.1} parent=55 // pred_region
              loop: start=0, step=1, limit=1
              $region65: #{tpu_custom_call.1} parent=63 // loop_pre_header
                _
              $region66: #{tpu_custom_call.1} parent=63 // loop_header
                %s1836 = sphi 0, %s1840
                %p1837 = scmp.ge.s32.totalorder %s1836, 1
                %s1841 = sphi %s1811, %s1811
                %s1842 = sphi %s1827, %s1827
              $region67: #{tpu_custom_call.1} parent=63 // loop_header_branch
                %1839 = sbr.rel (%p1837) target = $region71
              $region68: #{tpu_custom_call.1} parent=63 // loop_body
                %v1843 = vld [vmem:[%s1841] sm:$0xf]
                %1844 = vst [vmem:[%s1842] sm:$0xf] %v1843
                %v1845 = vld [vmem:[%s1841 + $0x4] sm:$0xf]
                %1846 = vst [vmem:[%s1842 + $0x4] sm:$0xf] %v1845
                %v1847 = vld [vmem:[%s1841 + $0x8] sm:$0xf]
                %1848 = vst [vmem:[%s1842 + $0x8] sm:$0xf] %v1847
                %v1849 = vld [vmem:[%s1841 + $0xc] sm:$0xf]
                %1850 = vst [vmem:[%s1842 + $0xc] sm:$0xf] %v1849
                %v1851 = vld [vmem:[%s1841 + $0x10] sm:$0xf]
                %1852 = vst [vmem:[%s1842 + $0x10] sm:$0xf] %v1851
                %v1853 = vld [vmem:[%s1841 + $0x14] sm:$0xf]
                %1854 = vst [vmem:[%s1842 + $0x14] sm:$0xf] %v1853
                %v1855 = vld [vmem:[%s1841 + $0x18] sm:$0xf]
                %1856 = vst [vmem:[%s1842 + $0x18] sm:$0xf] %v1855
                %v1857 = vld [vmem:[%s1841 + $0x1c] sm:$0xf]
                %1858 = vst [vmem:[%s1842 + $0x1c] sm:$0xf] %v1857
                %v1859 = vld [vmem:[%s1841 + $0x20] sm:$0xf]
                %1860 = vst [vmem:[%s1842 + $0x20] sm:$0xf] %v1859
                %v1861 = vld [vmem:[%s1841 + $0x24] sm:$0xf]
                %1862 = vst [vmem:[%s1842 + $0x24] sm:$0xf] %v1861
                %v1863 = vld [vmem:[%s1841 + $0x28] sm:$0xf]
                %1864 = vst [vmem:[%s1842 + $0x28] sm:$0xf] %v1863
                %v1865 = vld [vmem:[%s1841 + $0x2c] sm:$0xf]
                %1866 = vst [vmem:[%s1842 + $0x2c] sm:$0xf] %v1865
                %v1867 = vld [vmem:[%s1841 + $0x30] sm:$0xf]
                %1868 = vst [vmem:[%s1842 + $0x30] sm:$0xf] %v1867
                %v1869 = vld [vmem:[%s1841 + $0x34] sm:$0xf]
                %1870 = vst [vmem:[%s1842 + $0x34] sm:$0xf] %v1869
                %v1871 = vld [vmem:[%s1841 + $0x38] sm:$0xf]
                %1872 = vst [vmem:[%s1842 + $0x38] sm:$0xf] %v1871
                %v1873 = vld [vmem:[%s1841 + $0x3c] sm:$0xf]
                %1874 = vst [vmem:[%s1842 + $0x3c] sm:$0xf] %v1873
                %v1875 = vld [vmem:[%s1841 + $0x40] sm:$0xf]
                %1876 = vst [vmem:[%s1842 + $0x80] sm:$0xf] %v1875
                %v1877 = vld [vmem:[%s1841 + $0x44] sm:$0xf]
                %1878 = vst [vmem:[%s1842 + $0x84] sm:$0xf] %v1877
                %v1879 = vld [vmem:[%s1841 + $0x48] sm:$0xf]
                %1880 = vst [vmem:[%s1842 + $0x88] sm:$0xf] %v1879
                %v1881 = vld [vmem:[%s1841 + $0x4c] sm:$0xf]
                %1882 = vst [vmem:[%s1842 + $0x8c] sm:$0xf] %v1881
                %v1883 = vld [vmem:[%s1841 + $0x50] sm:$0xf]
                %1884 = vst [vmem:[%s1842 + $0x90] sm:$0xf] %v1883
                %v1885 = vld [vmem:[%s1841 + $0x54] sm:$0xf]
                %1886 = vst [vmem:[%s1842 + $0x94] sm:$0xf] %v1885
                %v1887 = vld [vmem:[%s1841 + $0x58] sm:$0xf]
                %1888 = vst [vmem:[%s1842 + $0x98] sm:$0xf] %v1887
                %v1889 = vld [vmem:[%s1841 + $0x5c] sm:$0xf]
                %1890 = vst [vmem:[%s1842 + $0x9c] sm:$0xf] %v1889
                %v1891 = vld [vmem:[%s1841 + $0x60] sm:$0xf]
                %1892 = vst [vmem:[%s1842 + $0xa0] sm:$0xf] %v1891
                %v1893 = vld [vmem:[%s1841 + $0x64] sm:$0xf]
                %1894 = vst [vmem:[%s1842 + $0xa4] sm:$0xf] %v1893
                %v1895 = vld [vmem:[%s1841 + $0x68] sm:$0xf]
                %1896 = vst [vmem:[%s1842 + $0xa8] sm:$0xf] %v1895
                %v1897 = vld [vmem:[%s1841 + $0x6c] sm:$0xf]
                %1898 = vst [vmem:[%s1842 + $0xac] sm:$0xf] %v1897
                %v1899 = vld [vmem:[%s1841 + $0x70] sm:$0xf]
                %1900 = vst [vmem:[%s1842 + $0xb0] sm:$0xf] %v1899
                %v1901 = vld [vmem:[%s1841 + $0x74] sm:$0xf]
                %1902 = vst [vmem:[%s1842 + $0xb4] sm:$0xf] %v1901
                %v1903 = vld [vmem:[%s1841 + $0x78] sm:$0xf]
                %1904 = vst [vmem:[%s1842 + $0xb8] sm:$0xf] %v1903
                %v1905 = vld [vmem:[%s1841 + $0x7c] sm:$0xf]
                %1906 = vst [vmem:[%s1842 + $0xbc] sm:$0xf] %v1905
                %v1907 = vld [vmem:[%s1841 + $0x80] sm:$0xf]
                %1908 = vst [vmem:[%s1842 + $0x100] sm:$0xf] %v1907
                %v1909 = vld [vmem:[%s1841 + $0x84] sm:$0xf]
                %1910 = vst [vmem:[%s1842 + $0x104] sm:$0xf] %v1909
                %v1911 = vld [vmem:[%s1841 + $0x88] sm:$0xf]
                %1912 = vst [vmem:[%s1842 + $0x108] sm:$0xf] %v1911
                %v1913 = vld [vmem:[%s1841 + $0x8c] sm:$0xf]
                %1914 = vst [vmem:[%s1842 + $0x10c] sm:$0xf] %v1913
                %v1915 = vld [vmem:[%s1841 + $0x90] sm:$0xf]
                %1916 = vst [vmem:[%s1842 + $0x110] sm:$0xf] %v1915
                %v1917 = vld [vmem:[%s1841 + $0x94] sm:$0xf]
                %1918 = vst [vmem:[%s1842 + $0x114] sm:$0xf] %v1917
                %v1919 = vld [vmem:[%s1841 + $0x98] sm:$0xf]
                %1920 = vst [vmem:[%s1842 + $0x118] sm:$0xf] %v1919
                %v1921 = vld [vmem:[%s1841 + $0x9c] sm:$0xf]
                %1922 = vst [vmem:[%s1842 + $0x11c] sm:$0xf] %v1921
                %v1923 = vld [vmem:[%s1841 + $0xa0] sm:$0xf]
                %1924 = vst [vmem:[%s1842 + $0x120] sm:$0xf] %v1923
                %v1925 = vld [vmem:[%s1841 + $0xa4] sm:$0xf]
                %1926 = vst [vmem:[%s1842 + $0x124] sm:$0xf] %v1925
                %v1927 = vld [vmem:[%s1841 + $0xa8] sm:$0xf]
                %1928 = vst [vmem:[%s1842 + $0x128] sm:$0xf] %v1927
                %v1929 = vld [vmem:[%s1841 + $0xac] sm:$0xf]
                %1930 = vst [vmem:[%s1842 + $0x12c] sm:$0xf] %v1929
                %v1931 = vld [vmem:[%s1841 + $0xb0] sm:$0xf]
                %1932 = vst [vmem:[%s1842 + $0x130] sm:$0xf] %v1931
                %v1933 = vld [vmem:[%s1841 + $0xb4] sm:$0xf]
                %1934 = vst [vmem:[%s1842 + $0x134] sm:$0xf] %v1933
                %v1935 = vld [vmem:[%s1841 + $0xb8] sm:$0xf]
                %1936 = vst [vmem:[%s1842 + $0x138] sm:$0xf] %v1935
                %v1937 = vld [vmem:[%s1841 + $0xbc] sm:$0xf]
                %1938 = vst [vmem:[%s1842 + $0x13c] sm:$0xf] %v1937
                %v1939 = vld [vmem:[%s1841 + $0xc0] sm:$0xf]
                %1940 = vst [vmem:[%s1842 + $0x180] sm:$0xf] %v1939
                %v1941 = vld [vmem:[%s1841 + $0xc4] sm:$0xf]
                %1942 = vst [vmem:[%s1842 + $0x184] sm:$0xf] %v1941
                %v1943 = vld [vmem:[%s1841 + $0xc8] sm:$0xf]
                %1944 = vst [vmem:[%s1842 + $0x188] sm:$0xf] %v1943
                %v1945 = vld [vmem:[%s1841 + $0xcc] sm:$0xf]
                %1946 = vst [vmem:[%s1842 + $0x18c] sm:$0xf] %v1945
                %v1947 = vld [vmem:[%s1841 + $0xd0] sm:$0xf]
                %1948 = vst [vmem:[%s1842 + $0x190] sm:$0xf] %v1947
                %v1949 = vld [vmem:[%s1841 + $0xd4] sm:$0xf]
                %1950 = vst [vmem:[%s1842 + $0x194] sm:$0xf] %v1949
                %v1951 = vld [vmem:[%s1841 + $0xd8] sm:$0xf]
                %1952 = vst [vmem:[%s1842 + $0x198] sm:$0xf] %v1951
                %v1953 = vld [vmem:[%s1841 + $0xdc] sm:$0xf]
                %1954 = vst [vmem:[%s1842 + $0x19c] sm:$0xf] %v1953
                %v1955 = vld [vmem:[%s1841 + $0xe0] sm:$0xf]
                %1956 = vst [vmem:[%s1842 + $0x1a0] sm:$0xf] %v1955
                %v1957 = vld [vmem:[%s1841 + $0xe4] sm:$0xf]
                %1958 = vst [vmem:[%s1842 + $0x1a4] sm:$0xf] %v1957
                %v1959 = vld [vmem:[%s1841 + $0xe8] sm:$0xf]
                %1960 = vst [vmem:[%s1842 + $0x1a8] sm:$0xf] %v1959
                %v1961 = vld [vmem:[%s1841 + $0xec] sm:$0xf]
                %1962 = vst [vmem:[%s1842 + $0x1ac] sm:$0xf] %v1961
                %v1963 = vld [vmem:[%s1841 + $0xf0] sm:$0xf]
                %1964 = vst [vmem:[%s1842 + $0x1b0] sm:$0xf] %v1963
                %v1965 = vld [vmem:[%s1841 + $0xf4] sm:$0xf]
                %1966 = vst [vmem:[%s1842 + $0x1b4] sm:$0xf] %v1965
                %v1967 = vld [vmem:[%s1841 + $0xf8] sm:$0xf]
                %1968 = vst [vmem:[%s1842 + $0x1b8] sm:$0xf] %v1967
                %v1969 = vld [vmem:[%s1841 + $0xfc] sm:$0xf]
                %1970 = vst [vmem:[%s1842 + $0x1bc] sm:$0xf] %v1969
              $region69: #{tpu_custom_call.1} parent=63 // loop_footer
                %s1840 = sadd.s32 1, %s1836
              $region70: #{tpu_custom_call.1} parent=63 // loop_footer_branch
                %1835 = sbr.rel target = $region66
              $region71: #{tpu_custom_call.1} parent=63 // loop_exit
                _
            $region64: #{tpu_custom_call.1} parent=55 // pred_fallthru
              _
          $region56: #{tpu_custom_call.1} parent=51 // pred_fallthru
            _
          %2118 = vnop
        $region52: #{tpu_custom_call.1} parent=39 // pred_fallthru
          _
        // Predicated region
        $region90: #{tpu_custom_call.1} parent=39 // pred_check
          %p2119 = pneg %p195
        $region91: #{tpu_custom_call.1} parent=39 // pred_check_branch
          %2121 = sbr.rel (%p2119) target = $region93
        $region92: #{tpu_custom_call.1} parent=39 // pred_region
          %s2122 = smul.u32 16, %s28
          %s2123 = smul.addr %s27, 128
          %s2124 = sadd.s32 %s2122, %s2123
          %s2125 = smul.addr %s2124, 4
          %s2126 = scalar_lea.vmem %s6, %s2125
          // Predicated region
          $region94: #{tpu_custom_call.1} parent=92 // pred_check
            _
          $region95: #{tpu_custom_call.1} parent=92 // pred_check_branch
            %2128 = sbr.rel (0) target = $region97
          $region96: #{tpu_custom_call.1} parent=92 // pred_region
            // Predicated region
            $region98: #{tpu_custom_call.1} parent=96 // pred_check
              _
            $region99: #{tpu_custom_call.1} parent=96 // pred_check_branch
              %2130 = sbr.rel target = $region101
            $region100: #{tpu_custom_call.1} parent=96 // pred_region
              // Predicated region
              $region113: #{tpu_custom_call.1} parent=100 // pred_check
                _
              $region114: #{tpu_custom_call.1} parent=100 // pred_check_branch
                %2271 = sbr.rel (0) target = $region116
              $region115: #{tpu_custom_call.1} parent=100 // pred_region
                loop: start=0, step=1, limit=1
                $region117: #{tpu_custom_call.1} parent=115 // loop_pre_header
                  _
                $region118: #{tpu_custom_call.1} parent=115 // loop_header
                  %s2273 = sphi 0, %s2277
                  %p2274 = scmp.ge.s32.totalorder %s2273, 1
                  %s2278 = sphi %s1815, %s1815
                  %s2279 = sphi %s2126, %s2126
                $region119: #{tpu_custom_call.1} parent=115 // loop_header_branch
                  %2276 = sbr.rel (%p2274) target = $region123
                $region120: #{tpu_custom_call.1} parent=115 // loop_body
                  _
                $region121: #{tpu_custom_call.1} parent=115 // loop_footer
                  %s2277 = sadd.s32 1, %s2273
                $region122: #{tpu_custom_call.1} parent=115 // loop_footer_branch
                  %2272 = sbr.rel target = $region118
                $region123: #{tpu_custom_call.1} parent=115 // loop_exit
                  _
                loop: start=0, step=1, limit=1
                $region124: #{tpu_custom_call.1} parent=115 // loop_pre_header
                  _
                $region125: #{tpu_custom_call.1} parent=115 // loop_header
                  %s2282 = sphi 0, %s2286
                  %p2283 = scmp.ge.s32.totalorder %s2282, 1
                  %s2287 = sphi %s1815, %s1815
                  %s2288 = sphi %s2126, %s2126
                $region126: #{tpu_custom_call.1} parent=115 // loop_header_branch
                  %2285 = sbr.rel (%p2283) target = $region130
                $region127: #{tpu_custom_call.1} parent=115 // loop_body
                  %v2289 = vld [vmem:[%s2287] sm:$0xf]
                  %2290 = vst [vmem:[%s2288] sm:$0xf] %v2289
                  %v2291 = vld [vmem:[%s2287 + $0x4] sm:$0xf]
                  %2292 = vst [vmem:[%s2288 + $0x4] sm:$0xf] %v2291
                  %v2293 = vld [vmem:[%s2287 + $0x8] sm:$0xf]
                  %2294 = vst [vmem:[%s2288 + $0x8] sm:$0xf] %v2293
                  %v2295 = vld [vmem:[%s2287 + $0xc] sm:$0xf]
                  %2296 = vst [vmem:[%s2288 + $0xc] sm:$0xf] %v2295
                  %v2297 = vld [vmem:[%s2287 + $0x10] sm:$0xf]
                  %2298 = vst [vmem:[%s2288 + $0x10] sm:$0xf] %v2297
                  %v2299 = vld [vmem:[%s2287 + $0x14] sm:$0xf]
                  %2300 = vst [vmem:[%s2288 + $0x14] sm:$0xf] %v2299
                  %v2301 = vld [vmem:[%s2287 + $0x18] sm:$0xf]
                  %2302 = vst [vmem:[%s2288 + $0x18] sm:$0xf] %v2301
                  %v2303 = vld [vmem:[%s2287 + $0x1c] sm:$0xf]
                  %2304 = vst [vmem:[%s2288 + $0x1c] sm:$0xf] %v2303
                  %v2305 = vld [vmem:[%s2287 + $0x20] sm:$0xf]
                  %2306 = vst [vmem:[%s2288 + $0x20] sm:$0xf] %v2305
                  %v2307 = vld [vmem:[%s2287 + $0x24] sm:$0xf]
                  %2308 = vst [vmem:[%s2288 + $0x24] sm:$0xf] %v2307
                  %v2309 = vld [vmem:[%s2287 + $0x28] sm:$0xf]
                  %2310 = vst [vmem:[%s2288 + $0x28] sm:$0xf] %v2309
                  %v2311 = vld [vmem:[%s2287 + $0x2c] sm:$0xf]
                  %2312 = vst [vmem:[%s2288 + $0x2c] sm:$0xf] %v2311
                  %v2313 = vld [vmem:[%s2287 + $0x30] sm:$0xf]
                  %2314 = vst [vmem:[%s2288 + $0x30] sm:$0xf] %v2313
                  %v2315 = vld [vmem:[%s2287 + $0x34] sm:$0xf]
                  %2316 = vst [vmem:[%s2288 + $0x34] sm:$0xf] %v2315
                  %v2317 = vld [vmem:[%s2287 + $0x38] sm:$0xf]
                  %2318 = vst [vmem:[%s2288 + $0x38] sm:$0xf] %v2317
                  %v2319 = vld [vmem:[%s2287 + $0x3c] sm:$0xf]
                  %2320 = vst [vmem:[%s2288 + $0x3c] sm:$0xf] %v2319
                  %v2321 = vld [vmem:[%s2287 + $0x40] sm:$0xf]
                  %2322 = vst [vmem:[%s2288 + $0x80] sm:$0xf] %v2321
                  %v2323 = vld [vmem:[%s2287 + $0x44] sm:$0xf]
                  %2324 = vst [vmem:[%s2288 + $0x84] sm:$0xf] %v2323
                  %v2325 = vld [vmem:[%s2287 + $0x48] sm:$0xf]
                  %2326 = vst [vmem:[%s2288 + $0x88] sm:$0xf] %v2325
                  %v2327 = vld [vmem:[%s2287 + $0x4c] sm:$0xf]
                  %2328 = vst [vmem:[%s2288 + $0x8c] sm:$0xf] %v2327
                  %v2329 = vld [vmem:[%s2287 + $0x50] sm:$0xf]
                  %2330 = vst [vmem:[%s2288 + $0x90] sm:$0xf] %v2329
                  %v2331 = vld [vmem:[%s2287 + $0x54] sm:$0xf]
                  %2332 = vst [vmem:[%s2288 + $0x94] sm:$0xf] %v2331
                  %v2333 = vld [vmem:[%s2287 + $0x58] sm:$0xf]
                  %2334 = vst [vmem:[%s2288 + $0x98] sm:$0xf] %v2333
                  %v2335 = vld [vmem:[%s2287 + $0x5c] sm:$0xf]
                  %2336 = vst [vmem:[%s2288 + $0x9c] sm:$0xf] %v2335
                  %v2337 = vld [vmem:[%s2287 + $0x60] sm:$0xf]
                  %2338 = vst [vmem:[%s2288 + $0xa0] sm:$0xf] %v2337
                  %v2339 = vld [vmem:[%s2287 + $0x64] sm:$0xf]
                  %2340 = vst [vmem:[%s2288 + $0xa4] sm:$0xf] %v2339
                  %v2341 = vld [vmem:[%s2287 + $0x68] sm:$0xf]
                  %2342 = vst [vmem:[%s2288 + $0xa8] sm:$0xf] %v2341
                  %v2343 = vld [vmem:[%s2287 + $0x6c] sm:$0xf]
                  %2344 = vst [vmem:[%s2288 + $0xac] sm:$0xf] %v2343
                  %v2345 = vld [vmem:[%s2287 + $0x70] sm:$0xf]
                  %2346 = vst [vmem:[%s2288 + $0xb0] sm:$0xf] %v2345
                  %v2347 = vld [vmem:[%s2287 + $0x74] sm:$0xf]
                  %2348 = vst [vmem:[%s2288 + $0xb4] sm:$0xf] %v2347
                  %v2349 = vld [vmem:[%s2287 + $0x78] sm:$0xf]
                  %2350 = vst [vmem:[%s2288 + $0xb8] sm:$0xf] %v2349
                  %v2351 = vld [vmem:[%s2287 + $0x7c] sm:$0xf]
                  %2352 = vst [vmem:[%s2288 + $0xbc] sm:$0xf] %v2351
                  %v2353 = vld [vmem:[%s2287 + $0x80] sm:$0xf]
                  %2354 = vst [vmem:[%s2288 + $0x100] sm:$0xf] %v2353
                  %v2355 = vld [vmem:[%s2287 + $0x84] sm:$0xf]
                  %2356 = vst [vmem:[%s2288 + $0x104] sm:$0xf] %v2355
                  %v2357 = vld [vmem:[%s2287 + $0x88] sm:$0xf]
                  %2358 = vst [vmem:[%s2288 + $0x108] sm:$0xf] %v2357
                  %v2359 = vld [vmem:[%s2287 + $0x8c] sm:$0xf]
                  %2360 = vst [vmem:[%s2288 + $0x10c] sm:$0xf] %v2359
                  %v2361 = vld [vmem:[%s2287 + $0x90] sm:$0xf]
                  %2362 = vst [vmem:[%s2288 + $0x110] sm:$0xf] %v2361
                  %v2363 = vld [vmem:[%s2287 + $0x94] sm:$0xf]
                  %2364 = vst [vmem:[%s2288 + $0x114] sm:$0xf] %v2363
                  %v2365 = vld [vmem:[%s2287 + $0x98] sm:$0xf]
                  %2366 = vst [vmem:[%s2288 + $0x118] sm:$0xf] %v2365
                  %v2367 = vld [vmem:[%s2287 + $0x9c] sm:$0xf]
                  %2368 = vst [vmem:[%s2288 + $0x11c] sm:$0xf] %v2367
                  %v2369 = vld [vmem:[%s2287 + $0xa0] sm:$0xf]
                  %2370 = vst [vmem:[%s2288 + $0x120] sm:$0xf] %v2369
                  %v2371 = vld [vmem:[%s2287 + $0xa4] sm:$0xf]
                  %2372 = vst [vmem:[%s2288 + $0x124] sm:$0xf] %v2371
                  %v2373 = vld [vmem:[%s2287 + $0xa8] sm:$0xf]
                  %2374 = vst [vmem:[%s2288 + $0x128] sm:$0xf] %v2373
                  %v2375 = vld [vmem:[%s2287 + $0xac] sm:$0xf]
                  %2376 = vst [vmem:[%s2288 + $0x12c] sm:$0xf] %v2375
                  %v2377 = vld [vmem:[%s2287 + $0xb0] sm:$0xf]
                  %2378 = vst [vmem:[%s2288 + $0x130] sm:$0xf] %v2377
                  %v2379 = vld [vmem:[%s2287 + $0xb4] sm:$0xf]
                  %2380 = vst [vmem:[%s2288 + $0x134] sm:$0xf] %v2379
                  %v2381 = vld [vmem:[%s2287 + $0xb8] sm:$0xf]
                  %2382 = vst [vmem:[%s2288 + $0x138] sm:$0xf] %v2381
                  %v2383 = vld [vmem:[%s2287 + $0xbc] sm:$0xf]
                  %2384 = vst [vmem:[%s2288 + $0x13c] sm:$0xf] %v2383
                  %v2385 = vld [vmem:[%s2287 + $0xc0] sm:$0xf]
                  %2386 = vst [vmem:[%s2288 + $0x180] sm:$0xf] %v2385
                  %v2387 = vld [vmem:[%s2287 + $0xc4] sm:$0xf]
                  %2388 = vst [vmem:[%s2288 + $0x184] sm:$0xf] %v2387
                  %v2389 = vld [vmem:[%s2287 + $0xc8] sm:$0xf]
                  %2390 = vst [vmem:[%s2288 + $0x188] sm:$0xf] %v2389
                  %v2391 = vld [vmem:[%s2287 + $0xcc] sm:$0xf]
                  %2392 = vst [vmem:[%s2288 + $0x18c] sm:$0xf] %v2391
                  %v2393 = vld [vmem:[%s2287 + $0xd0] sm:$0xf]
                  %2394 = vst [vmem:[%s2288 + $0x190] sm:$0xf] %v2393
                  %v2395 = vld [vmem:[%s2287 + $0xd4] sm:$0xf]
                  %2396 = vst [vmem:[%s2288 + $0x194] sm:$0xf] %v2395
                  %v2397 = vld [vmem:[%s2287 + $0xd8] sm:$0xf]
                  %2398 = vst [vmem:[%s2288 + $0x198] sm:$0xf] %v2397
                  %v2399 = vld [vmem:[%s2287 + $0xdc] sm:$0xf]
                  %2400 = vst [vmem:[%s2288 + $0x19c] sm:$0xf] %v2399
                  %v2401 = vld [vmem:[%s2287 + $0xe0] sm:$0xf]
                  %2402 = vst [vmem:[%s2288 + $0x1a0] sm:$0xf] %v2401
                  %v2403 = vld [vmem:[%s2287 + $0xe4] sm:$0xf]
                  %2404 = vst [vmem:[%s2288 + $0x1a4] sm:$0xf] %v2403
                  %v2405 = vld [vmem:[%s2287 + $0xe8] sm:$0xf]
                  %2406 = vst [vmem:[%s2288 + $0x1a8] sm:$0xf] %v2405
                  %v2407 = vld [vmem:[%s2287 + $0xec] sm:$0xf]
                  %2408 = vst [vmem:[%s2288 + $0x1ac] sm:$0xf] %v2407
                  %v2409 = vld [vmem:[%s2287 + $0xf0] sm:$0xf]
                  %2410 = vst [vmem:[%s2288 + $0x1b0] sm:$0xf] %v2409
                  %v2411 = vld [vmem:[%s2287 + $0xf4] sm:$0xf]
                  %2412 = vst [vmem:[%s2288 + $0x1b4] sm:$0xf] %v2411
                  %v2413 = vld [vmem:[%s2287 + $0xf8] sm:$0xf]
                  %2414 = vst [vmem:[%s2288 + $0x1b8] sm:$0xf] %v2413
                  %v2415 = vld [vmem:[%s2287 + $0xfc] sm:$0xf]
                  %2416 = vst [vmem:[%s2288 + $0x1bc] sm:$0xf] %v2415
                $region128: #{tpu_custom_call.1} parent=115 // loop_footer
                  %s2286 = sadd.s32 1, %s2282
                $region129: #{tpu_custom_call.1} parent=115 // loop_footer_branch
                  %2281 = sbr.rel target = $region125
                $region130: #{tpu_custom_call.1} parent=115 // loop_exit
                  _
              $region116: #{tpu_custom_call.1} parent=100 // pred_fallthru
                _
            $region101: #{tpu_custom_call.1} parent=96 // pred_fallthru
              _
            // Predicated region
            $region102: #{tpu_custom_call.1} parent=96 // pred_check
              _
            $region103: #{tpu_custom_call.1} parent=96 // pred_check_branch
              %2132 = sbr.rel (0) target = $region105
            $region104: #{tpu_custom_call.1} parent=96 // pred_region
              loop: start=0, step=1, limit=1
              $region106: #{tpu_custom_call.1} parent=104 // loop_pre_header
                _
              $region107: #{tpu_custom_call.1} parent=104 // loop_header
                %s2135 = sphi 0, %s2139
                %p2136 = scmp.ge.s32.totalorder %s2135, 1
                %s2140 = sphi %s1815, %s1815
                %s2141 = sphi %s2126, %s2126
              $region108: #{tpu_custom_call.1} parent=104 // loop_header_branch
                %2138 = sbr.rel (%p2136) target = $region112
              $region109: #{tpu_custom_call.1} parent=104 // loop_body
                %v2142 = vld [vmem:[%s2140] sm:$0xf]
                %2143 = vst [vmem:[%s2141] sm:$0xf] %v2142
                %v2144 = vld [vmem:[%s2140 + $0x4] sm:$0xf]
                %2145 = vst [vmem:[%s2141 + $0x4] sm:$0xf] %v2144
                %v2146 = vld [vmem:[%s2140 + $0x8] sm:$0xf]
                %2147 = vst [vmem:[%s2141 + $0x8] sm:$0xf] %v2146
                %v2148 = vld [vmem:[%s2140 + $0xc] sm:$0xf]
                %2149 = vst [vmem:[%s2141 + $0xc] sm:$0xf] %v2148
                %v2150 = vld [vmem:[%s2140 + $0x10] sm:$0xf]
                %2151 = vst [vmem:[%s2141 + $0x10] sm:$0xf] %v2150
                %v2152 = vld [vmem:[%s2140 + $0x14] sm:$0xf]
                %2153 = vst [vmem:[%s2141 + $0x14] sm:$0xf] %v2152
                %v2154 = vld [vmem:[%s2140 + $0x18] sm:$0xf]
                %2155 = vst [vmem:[%s2141 + $0x18] sm:$0xf] %v2154
                %v2156 = vld [vmem:[%s2140 + $0x1c] sm:$0xf]
                %2157 = vst [vmem:[%s2141 + $0x1c] sm:$0xf] %v2156
                %v2158 = vld [vmem:[%s2140 + $0x20] sm:$0xf]
                %2159 = vst [vmem:[%s2141 + $0x20] sm:$0xf] %v2158
                %v2160 = vld [vmem:[%s2140 + $0x24] sm:$0xf]
                %2161 = vst [vmem:[%s2141 + $0x24] sm:$0xf] %v2160
                %v2162 = vld [vmem:[%s2140 + $0x28] sm:$0xf]
                %2163 = vst [vmem:[%s2141 + $0x28] sm:$0xf] %v2162
                %v2164 = vld [vmem:[%s2140 + $0x2c] sm:$0xf]
                %2165 = vst [vmem:[%s2141 + $0x2c] sm:$0xf] %v2164
                %v2166 = vld [vmem:[%s2140 + $0x30] sm:$0xf]
                %2167 = vst [vmem:[%s2141 + $0x30] sm:$0xf] %v2166
                %v2168 = vld [vmem:[%s2140 + $0x34] sm:$0xf]
                %2169 = vst [vmem:[%s2141 + $0x34] sm:$0xf] %v2168
                %v2170 = vld [vmem:[%s2140 + $0x38] sm:$0xf]
                %2171 = vst [vmem:[%s2141 + $0x38] sm:$0xf] %v2170
                %v2172 = vld [vmem:[%s2140 + $0x3c] sm:$0xf]
                %2173 = vst [vmem:[%s2141 + $0x3c] sm:$0xf] %v2172
                %v2174 = vld [vmem:[%s2140 + $0x40] sm:$0xf]
                %2175 = vst [vmem:[%s2141 + $0x80] sm:$0xf] %v2174
                %v2176 = vld [vmem:[%s2140 + $0x44] sm:$0xf]
                %2177 = vst [vmem:[%s2141 + $0x84] sm:$0xf] %v2176
                %v2178 = vld [vmem:[%s2140 + $0x48] sm:$0xf]
                %2179 = vst [vmem:[%s2141 + $0x88] sm:$0xf] %v2178
                %v2180 = vld [vmem:[%s2140 + $0x4c] sm:$0xf]
                %2181 = vst [vmem:[%s2141 + $0x8c] sm:$0xf] %v2180
                %v2182 = vld [vmem:[%s2140 + $0x50] sm:$0xf]
                %2183 = vst [vmem:[%s2141 + $0x90] sm:$0xf] %v2182
                %v2184 = vld [vmem:[%s2140 + $0x54] sm:$0xf]
                %2185 = vst [vmem:[%s2141 + $0x94] sm:$0xf] %v2184
                %v2186 = vld [vmem:[%s2140 + $0x58] sm:$0xf]
                %2187 = vst [vmem:[%s2141 + $0x98] sm:$0xf] %v2186
                %v2188 = vld [vmem:[%s2140 + $0x5c] sm:$0xf]
                %2189 = vst [vmem:[%s2141 + $0x9c] sm:$0xf] %v2188
                %v2190 = vld [vmem:[%s2140 + $0x60] sm:$0xf]
                %2191 = vst [vmem:[%s2141 + $0xa0] sm:$0xf] %v2190
                %v2192 = vld [vmem:[%s2140 + $0x64] sm:$0xf]
                %2193 = vst [vmem:[%s2141 + $0xa4] sm:$0xf] %v2192
                %v2194 = vld [vmem:[%s2140 + $0x68] sm:$0xf]
                %2195 = vst [vmem:[%s2141 + $0xa8] sm:$0xf] %v2194
                %v2196 = vld [vmem:[%s2140 + $0x6c] sm:$0xf]
                %2197 = vst [vmem:[%s2141 + $0xac] sm:$0xf] %v2196
                %v2198 = vld [vmem:[%s2140 + $0x70] sm:$0xf]
                %2199 = vst [vmem:[%s2141 + $0xb0] sm:$0xf] %v2198
                %v2200 = vld [vmem:[%s2140 + $0x74] sm:$0xf]
                %2201 = vst [vmem:[%s2141 + $0xb4] sm:$0xf] %v2200
                %v2202 = vld [vmem:[%s2140 + $0x78] sm:$0xf]
                %2203 = vst [vmem:[%s2141 + $0xb8] sm:$0xf] %v2202
                %v2204 = vld [vmem:[%s2140 + $0x7c] sm:$0xf]
                %2205 = vst [vmem:[%s2141 + $0xbc] sm:$0xf] %v2204
                %v2206 = vld [vmem:[%s2140 + $0x80] sm:$0xf]
                %2207 = vst [vmem:[%s2141 + $0x100] sm:$0xf] %v2206
                %v2208 = vld [vmem:[%s2140 + $0x84] sm:$0xf]
                %2209 = vst [vmem:[%s2141 + $0x104] sm:$0xf] %v2208
                %v2210 = vld [vmem:[%s2140 + $0x88] sm:$0xf]
                %2211 = vst [vmem:[%s2141 + $0x108] sm:$0xf] %v2210
                %v2212 = vld [vmem:[%s2140 + $0x8c] sm:$0xf]
                %2213 = vst [vmem:[%s2141 + $0x10c] sm:$0xf] %v2212
                %v2214 = vld [vmem:[%s2140 + $0x90] sm:$0xf]
                %2215 = vst [vmem:[%s2141 + $0x110] sm:$0xf] %v2214
                %v2216 = vld [vmem:[%s2140 + $0x94] sm:$0xf]
                %2217 = vst [vmem:[%s2141 + $0x114] sm:$0xf] %v2216
                %v2218 = vld [vmem:[%s2140 + $0x98] sm:$0xf]
                %2219 = vst [vmem:[%s2141 + $0x118] sm:$0xf] %v2218
                %v2220 = vld [vmem:[%s2140 + $0x9c] sm:$0xf]
                %2221 = vst [vmem:[%s2141 + $0x11c] sm:$0xf] %v2220
                %v2222 = vld [vmem:[%s2140 + $0xa0] sm:$0xf]
                %2223 = vst [vmem:[%s2141 + $0x120] sm:$0xf] %v2222
                %v2224 = vld [vmem:[%s2140 + $0xa4] sm:$0xf]
                %2225 = vst [vmem:[%s2141 + $0x124] sm:$0xf] %v2224
                %v2226 = vld [vmem:[%s2140 + $0xa8] sm:$0xf]
                %2227 = vst [vmem:[%s2141 + $0x128] sm:$0xf] %v2226
                %v2228 = vld [vmem:[%s2140 + $0xac] sm:$0xf]
                %2229 = vst [vmem:[%s2141 + $0x12c] sm:$0xf] %v2228
                %v2230 = vld [vmem:[%s2140 + $0xb0] sm:$0xf]
                %2231 = vst [vmem:[%s2141 + $0x130] sm:$0xf] %v2230
                %v2232 = vld [vmem:[%s2140 + $0xb4] sm:$0xf]
                %2233 = vst [vmem:[%s2141 + $0x134] sm:$0xf] %v2232
                %v2234 = vld [vmem:[%s2140 + $0xb8] sm:$0xf]
                %2235 = vst [vmem:[%s2141 + $0x138] sm:$0xf] %v2234
                %v2236 = vld [vmem:[%s2140 + $0xbc] sm:$0xf]
                %2237 = vst [vmem:[%s2141 + $0x13c] sm:$0xf] %v2236
                %v2238 = vld [vmem:[%s2140 + $0xc0] sm:$0xf]
                %2239 = vst [vmem:[%s2141 + $0x180] sm:$0xf] %v2238
                %v2240 = vld [vmem:[%s2140 + $0xc4] sm:$0xf]
                %2241 = vst [vmem:[%s2141 + $0x184] sm:$0xf] %v2240
                %v2242 = vld [vmem:[%s2140 + $0xc8] sm:$0xf]
                %2243 = vst [vmem:[%s2141 + $0x188] sm:$0xf] %v2242
                %v2244 = vld [vmem:[%s2140 + $0xcc] sm:$0xf]
                %2245 = vst [vmem:[%s2141 + $0x18c] sm:$0xf] %v2244
                %v2246 = vld [vmem:[%s2140 + $0xd0] sm:$0xf]
                %2247 = vst [vmem:[%s2141 + $0x190] sm:$0xf] %v2246
                %v2248 = vld [vmem:[%s2140 + $0xd4] sm:$0xf]
                %2249 = vst [vmem:[%s2141 + $0x194] sm:$0xf] %v2248
                %v2250 = vld [vmem:[%s2140 + $0xd8] sm:$0xf]
                %2251 = vst [vmem:[%s2141 + $0x198] sm:$0xf] %v2250
                %v2252 = vld [vmem:[%s2140 + $0xdc] sm:$0xf]
                %2253 = vst [vmem:[%s2141 + $0x19c] sm:$0xf] %v2252
                %v2254 = vld [vmem:[%s2140 + $0xe0] sm:$0xf]
                %2255 = vst [vmem:[%s2141 + $0x1a0] sm:$0xf] %v2254
                %v2256 = vld [vmem:[%s2140 + $0xe4] sm:$0xf]
                %2257 = vst [vmem:[%s2141 + $0x1a4] sm:$0xf] %v2256
                %v2258 = vld [vmem:[%s2140 + $0xe8] sm:$0xf]
                %2259 = vst [vmem:[%s2141 + $0x1a8] sm:$0xf] %v2258
                %v2260 = vld [vmem:[%s2140 + $0xec] sm:$0xf]
                %2261 = vst [vmem:[%s2141 + $0x1ac] sm:$0xf] %v2260
                %v2262 = vld [vmem:[%s2140 + $0xf0] sm:$0xf]
                %2263 = vst [vmem:[%s2141 + $0x1b0] sm:$0xf] %v2262
                %v2264 = vld [vmem:[%s2140 + $0xf4] sm:$0xf]
                %2265 = vst [vmem:[%s2141 + $0x1b4] sm:$0xf] %v2264
                %v2266 = vld [vmem:[%s2140 + $0xf8] sm:$0xf]
                %2267 = vst [vmem:[%s2141 + $0x1b8] sm:$0xf] %v2266
                %v2268 = vld [vmem:[%s2140 + $0xfc] sm:$0xf]
                %2269 = vst [vmem:[%s2141 + $0x1bc] sm:$0xf] %v2268
              $region110: #{tpu_custom_call.1} parent=104 // loop_footer
                %s2139 = sadd.s32 1, %s2135
              $region111: #{tpu_custom_call.1} parent=104 // loop_footer_branch
                %2134 = sbr.rel target = $region107
              $region112: #{tpu_custom_call.1} parent=104 // loop_exit
                _
            $region105: #{tpu_custom_call.1} parent=96 // pred_fallthru
              _
          $region97: #{tpu_custom_call.1} parent=92 // pred_fallthru
            _
          %2417 = vnop
        $region93: #{tpu_custom_call.1} parent=39 // pred_fallthru
          _
        // Predicated region
        $region131: #{tpu_custom_call.1} parent=39 // pred_check
          %p2418 = pneg %p223
        $region132: #{tpu_custom_call.1} parent=39 // pred_check_branch
          %2420 = sbr.rel (%p2418) target = $region134
        $region133: #{tpu_custom_call.1} parent=39 // pred_region
          %s2421 = smul.u32 16, %s28
          %s2422 = smul.addr %s27, 128
          %s2423 = sadd.s32 %s2421, %s2422
          %s2424 = smul.addr %s2423, 4
          %s2425 = scalar_lea.vmem %s7, %s2424
          // Predicated region
          $region135: #{tpu_custom_call.1} parent=133 // pred_check
            _
          $region136: #{tpu_custom_call.1} parent=133 // pred_check_branch
            %2427 = sbr.rel (0) target = $region138
          $region137: #{tpu_custom_call.1} parent=133 // pred_region
            // Predicated region
            $region139: #{tpu_custom_call.1} parent=137 // pred_check
              _
            $region140: #{tpu_custom_call.1} parent=137 // pred_check_branch
              %2429 = sbr.rel target = $region142
            $region141: #{tpu_custom_call.1} parent=137 // pred_region
              // Predicated region
              $region154: #{tpu_custom_call.1} parent=141 // pred_check
                _
              $region155: #{tpu_custom_call.1} parent=141 // pred_check_branch
                %2570 = sbr.rel (0) target = $region157
              $region156: #{tpu_custom_call.1} parent=141 // pred_region
                loop: start=0, step=1, limit=1
                $region158: #{tpu_custom_call.1} parent=156 // loop_pre_header
                  _
                $region159: #{tpu_custom_call.1} parent=156 // loop_header
                  %s2572 = sphi 0, %s2576
                  %p2573 = scmp.ge.s32.totalorder %s2572, 1
                  %s2577 = sphi %s1819, %s1819
                  %s2578 = sphi %s2425, %s2425
                $region160: #{tpu_custom_call.1} parent=156 // loop_header_branch
                  %2575 = sbr.rel (%p2573) target = $region164
                $region161: #{tpu_custom_call.1} parent=156 // loop_body
                  _
                $region162: #{tpu_custom_call.1} parent=156 // loop_footer
                  %s2576 = sadd.s32 1, %s2572
                $region163: #{tpu_custom_call.1} parent=156 // loop_footer_branch
                  %2571 = sbr.rel target = $region159
                $region164: #{tpu_custom_call.1} parent=156 // loop_exit
                  _
                loop: start=0, step=1, limit=1
                $region165: #{tpu_custom_call.1} parent=156 // loop_pre_header
                  _
                $region166: #{tpu_custom_call.1} parent=156 // loop_header
                  %s2581 = sphi 0, %s2585
                  %p2582 = scmp.ge.s32.totalorder %s2581, 1
                  %s2586 = sphi %s1819, %s1819
                  %s2587 = sphi %s2425, %s2425
                $region167: #{tpu_custom_call.1} parent=156 // loop_header_branch
                  %2584 = sbr.rel (%p2582) target = $region171
                $region168: #{tpu_custom_call.1} parent=156 // loop_body
                  %v2588 = vld [vmem:[%s2586] sm:$0xf]
                  %2589 = vst [vmem:[%s2587] sm:$0xf] %v2588
                  %v2590 = vld [vmem:[%s2586 + $0x4] sm:$0xf]
                  %2591 = vst [vmem:[%s2587 + $0x4] sm:$0xf] %v2590
                  %v2592 = vld [vmem:[%s2586 + $0x8] sm:$0xf]
                  %2593 = vst [vmem:[%s2587 + $0x8] sm:$0xf] %v2592
                  %v2594 = vld [vmem:[%s2586 + $0xc] sm:$0xf]
                  %2595 = vst [vmem:[%s2587 + $0xc] sm:$0xf] %v2594
                  %v2596 = vld [vmem:[%s2586 + $0x10] sm:$0xf]
                  %2597 = vst [vmem:[%s2587 + $0x10] sm:$0xf] %v2596
                  %v2598 = vld [vmem:[%s2586 + $0x14] sm:$0xf]
                  %2599 = vst [vmem:[%s2587 + $0x14] sm:$0xf] %v2598
                  %v2600 = vld [vmem:[%s2586 + $0x18] sm:$0xf]
                  %2601 = vst [vmem:[%s2587 + $0x18] sm:$0xf] %v2600
                  %v2602 = vld [vmem:[%s2586 + $0x1c] sm:$0xf]
                  %2603 = vst [vmem:[%s2587 + $0x1c] sm:$0xf] %v2602
                  %v2604 = vld [vmem:[%s2586 + $0x20] sm:$0xf]
                  %2605 = vst [vmem:[%s2587 + $0x20] sm:$0xf] %v2604
                  %v2606 = vld [vmem:[%s2586 + $0x24] sm:$0xf]
                  %2607 = vst [vmem:[%s2587 + $0x24] sm:$0xf] %v2606
                  %v2608 = vld [vmem:[%s2586 + $0x28] sm:$0xf]
                  %2609 = vst [vmem:[%s2587 + $0x28] sm:$0xf] %v2608
                  %v2610 = vld [vmem:[%s2586 + $0x2c] sm:$0xf]
                  %2611 = vst [vmem:[%s2587 + $0x2c] sm:$0xf] %v2610
                  %v2612 = vld [vmem:[%s2586 + $0x30] sm:$0xf]
                  %2613 = vst [vmem:[%s2587 + $0x30] sm:$0xf] %v2612
                  %v2614 = vld [vmem:[%s2586 + $0x34] sm:$0xf]
                  %2615 = vst [vmem:[%s2587 + $0x34] sm:$0xf] %v2614
                  %v2616 = vld [vmem:[%s2586 + $0x38] sm:$0xf]
                  %2617 = vst [vmem:[%s2587 + $0x38] sm:$0xf] %v2616
                  %v2618 = vld [vmem:[%s2586 + $0x3c] sm:$0xf]
                  %2619 = vst [vmem:[%s2587 + $0x3c] sm:$0xf] %v2618
                  %v2620 = vld [vmem:[%s2586 + $0x40] sm:$0xf]
                  %2621 = vst [vmem:[%s2587 + $0x80] sm:$0xf] %v2620
                  %v2622 = vld [vmem:[%s2586 + $0x44] sm:$0xf]
                  %2623 = vst [vmem:[%s2587 + $0x84] sm:$0xf] %v2622
                  %v2624 = vld [vmem:[%s2586 + $0x48] sm:$0xf]
                  %2625 = vst [vmem:[%s2587 + $0x88] sm:$0xf] %v2624
                  %v2626 = vld [vmem:[%s2586 + $0x4c] sm:$0xf]
                  %2627 = vst [vmem:[%s2587 + $0x8c] sm:$0xf] %v2626
                  %v2628 = vld [vmem:[%s2586 + $0x50] sm:$0xf]
                  %2629 = vst [vmem:[%s2587 + $0x90] sm:$0xf] %v2628
                  %v2630 = vld [vmem:[%s2586 + $0x54] sm:$0xf]
                  %2631 = vst [vmem:[%s2587 + $0x94] sm:$0xf] %v2630
                  %v2632 = vld [vmem:[%s2586 + $0x58] sm:$0xf]
                  %2633 = vst [vmem:[%s2587 + $0x98] sm:$0xf] %v2632
                  %v2634 = vld [vmem:[%s2586 + $0x5c] sm:$0xf]
                  %2635 = vst [vmem:[%s2587 + $0x9c] sm:$0xf] %v2634
                  %v2636 = vld [vmem:[%s2586 + $0x60] sm:$0xf]
                  %2637 = vst [vmem:[%s2587 + $0xa0] sm:$0xf] %v2636
                  %v2638 = vld [vmem:[%s2586 + $0x64] sm:$0xf]
                  %2639 = vst [vmem:[%s2587 + $0xa4] sm:$0xf] %v2638
                  %v2640 = vld [vmem:[%s2586 + $0x68] sm:$0xf]
                  %2641 = vst [vmem:[%s2587 + $0xa8] sm:$0xf] %v2640
                  %v2642 = vld [vmem:[%s2586 + $0x6c] sm:$0xf]
                  %2643 = vst [vmem:[%s2587 + $0xac] sm:$0xf] %v2642
                  %v2644 = vld [vmem:[%s2586 + $0x70] sm:$0xf]
                  %2645 = vst [vmem:[%s2587 + $0xb0] sm:$0xf] %v2644
                  %v2646 = vld [vmem:[%s2586 + $0x74] sm:$0xf]
                  %2647 = vst [vmem:[%s2587 + $0xb4] sm:$0xf] %v2646
                  %v2648 = vld [vmem:[%s2586 + $0x78] sm:$0xf]
                  %2649 = vst [vmem:[%s2587 + $0xb8] sm:$0xf] %v2648
                  %v2650 = vld [vmem:[%s2586 + $0x7c] sm:$0xf]
                  %2651 = vst [vmem:[%s2587 + $0xbc] sm:$0xf] %v2650
                  %v2652 = vld [vmem:[%s2586 + $0x80] sm:$0xf]
                  %2653 = vst [vmem:[%s2587 + $0x100] sm:$0xf] %v2652
                  %v2654 = vld [vmem:[%s2586 + $0x84] sm:$0xf]
                  %2655 = vst [vmem:[%s2587 + $0x104] sm:$0xf] %v2654
                  %v2656 = vld [vmem:[%s2586 + $0x88] sm:$0xf]
                  %2657 = vst [vmem:[%s2587 + $0x108] sm:$0xf] %v2656
                  %v2658 = vld [vmem:[%s2586 + $0x8c] sm:$0xf]
                  %2659 = vst [vmem:[%s2587 + $0x10c] sm:$0xf] %v2658
                  %v2660 = vld [vmem:[%s2586 + $0x90] sm:$0xf]
                  %2661 = vst [vmem:[%s2587 + $0x110] sm:$0xf] %v2660
                  %v2662 = vld [vmem:[%s2586 + $0x94] sm:$0xf]
                  %2663 = vst [vmem:[%s2587 + $0x114] sm:$0xf] %v2662
                  %v2664 = vld [vmem:[%s2586 + $0x98] sm:$0xf]
                  %2665 = vst [vmem:[%s2587 + $0x118] sm:$0xf] %v2664
                  %v2666 = vld [vmem:[%s2586 + $0x9c] sm:$0xf]
                  %2667 = vst [vmem:[%s2587 + $0x11c] sm:$0xf] %v2666
                  %v2668 = vld [vmem:[%s2586 + $0xa0] sm:$0xf]
                  %2669 = vst [vmem:[%s2587 + $0x120] sm:$0xf] %v2668
                  %v2670 = vld [vmem:[%s2586 + $0xa4] sm:$0xf]
                  %2671 = vst [vmem:[%s2587 + $0x124] sm:$0xf] %v2670
                  %v2672 = vld [vmem:[%s2586 + $0xa8] sm:$0xf]
                  %2673 = vst [vmem:[%s2587 + $0x128] sm:$0xf] %v2672
                  %v2674 = vld [vmem:[%s2586 + $0xac] sm:$0xf]
                  %2675 = vst [vmem:[%s2587 + $0x12c] sm:$0xf] %v2674
                  %v2676 = vld [vmem:[%s2586 + $0xb0] sm:$0xf]
                  %2677 = vst [vmem:[%s2587 + $0x130] sm:$0xf] %v2676
                  %v2678 = vld [vmem:[%s2586 + $0xb4] sm:$0xf]
                  %2679 = vst [vmem:[%s2587 + $0x134] sm:$0xf] %v2678
                  %v2680 = vld [vmem:[%s2586 + $0xb8] sm:$0xf]
                  %2681 = vst [vmem:[%s2587 + $0x138] sm:$0xf] %v2680
                  %v2682 = vld [vmem:[%s2586 + $0xbc] sm:$0xf]
                  %2683 = vst [vmem:[%s2587 + $0x13c] sm:$0xf] %v2682
                  %v2684 = vld [vmem:[%s2586 + $0xc0] sm:$0xf]
                  %2685 = vst [vmem:[%s2587 + $0x180] sm:$0xf] %v2684
                  %v2686 = vld [vmem:[%s2586 + $0xc4] sm:$0xf]
                  %2687 = vst [vmem:[%s2587 + $0x184] sm:$0xf] %v2686
                  %v2688 = vld [vmem:[%s2586 + $0xc8] sm:$0xf]
                  %2689 = vst [vmem:[%s2587 + $0x188] sm:$0xf] %v2688
                  %v2690 = vld [vmem:[%s2586 + $0xcc] sm:$0xf]
                  %2691 = vst [vmem:[%s2587 + $0x18c] sm:$0xf] %v2690
                  %v2692 = vld [vmem:[%s2586 + $0xd0] sm:$0xf]
                  %2693 = vst [vmem:[%s2587 + $0x190] sm:$0xf] %v2692
                  %v2694 = vld [vmem:[%s2586 + $0xd4] sm:$0xf]
                  %2695 = vst [vmem:[%s2587 + $0x194] sm:$0xf] %v2694
                  %v2696 = vld [vmem:[%s2586 + $0xd8] sm:$0xf]
                  %2697 = vst [vmem:[%s2587 + $0x198] sm:$0xf] %v2696
                  %v2698 = vld [vmem:[%s2586 + $0xdc] sm:$0xf]
                  %2699 = vst [vmem:[%s2587 + $0x19c] sm:$0xf] %v2698
                  %v2700 = vld [vmem:[%s2586 + $0xe0] sm:$0xf]
                  %2701 = vst [vmem:[%s2587 + $0x1a0] sm:$0xf] %v2700
                  %v2702 = vld [vmem:[%s2586 + $0xe4] sm:$0xf]
                  %2703 = vst [vmem:[%s2587 + $0x1a4] sm:$0xf] %v2702
                  %v2704 = vld [vmem:[%s2586 + $0xe8] sm:$0xf]
                  %2705 = vst [vmem:[%s2587 + $0x1a8] sm:$0xf] %v2704
                  %v2706 = vld [vmem:[%s2586 + $0xec] sm:$0xf]
                  %2707 = vst [vmem:[%s2587 + $0x1ac] sm:$0xf] %v2706
                  %v2708 = vld [vmem:[%s2586 + $0xf0] sm:$0xf]
                  %2709 = vst [vmem:[%s2587 + $0x1b0] sm:$0xf] %v2708
                  %v2710 = vld [vmem:[%s2586 + $0xf4] sm:$0xf]
                  %2711 = vst [vmem:[%s2587 + $0x1b4] sm:$0xf] %v2710
                  %v2712 = vld [vmem:[%s2586 + $0xf8] sm:$0xf]
                  %2713 = vst [vmem:[%s2587 + $0x1b8] sm:$0xf] %v2712
                  %v2714 = vld [vmem:[%s2586 + $0xfc] sm:$0xf]
                  %2715 = vst [vmem:[%s2587 + $0x1bc] sm:$0xf] %v2714
                $region169: #{tpu_custom_call.1} parent=156 // loop_footer
                  %s2585 = sadd.s32 1, %s2581
                $region170: #{tpu_custom_call.1} parent=156 // loop_footer_branch
                  %2580 = sbr.rel target = $region166
                $region171: #{tpu_custom_call.1} parent=156 // loop_exit
                  _
              $region157: #{tpu_custom_call.1} parent=141 // pred_fallthru
                _
            $region142: #{tpu_custom_call.1} parent=137 // pred_fallthru
              _
            // Predicated region
            $region143: #{tpu_custom_call.1} parent=137 // pred_check
              _
            $region144: #{tpu_custom_call.1} parent=137 // pred_check_branch
              %2431 = sbr.rel (0) target = $region146
            $region145: #{tpu_custom_call.1} parent=137 // pred_region
              loop: start=0, step=1, limit=1
              $region147: #{tpu_custom_call.1} parent=145 // loop_pre_header
                _
              $region148: #{tpu_custom_call.1} parent=145 // loop_header
                %s2434 = sphi 0, %s2438
                %p2435 = scmp.ge.s32.totalorder %s2434, 1
                %s2439 = sphi %s1819, %s1819
                %s2440 = sphi %s2425, %s2425
              $region149: #{tpu_custom_call.1} parent=145 // loop_header_branch
                %2437 = sbr.rel (%p2435) target = $region153
              $region150: #{tpu_custom_call.1} parent=145 // loop_body
                %v2441 = vld [vmem:[%s2439] sm:$0xf]
                %2442 = vst [vmem:[%s2440] sm:$0xf] %v2441
                %v2443 = vld [vmem:[%s2439 + $0x4] sm:$0xf]
                %2444 = vst [vmem:[%s2440 + $0x4] sm:$0xf] %v2443
                %v2445 = vld [vmem:[%s2439 + $0x8] sm:$0xf]
                %2446 = vst [vmem:[%s2440 + $0x8] sm:$0xf] %v2445
                %v2447 = vld [vmem:[%s2439 + $0xc] sm:$0xf]
                %2448 = vst [vmem:[%s2440 + $0xc] sm:$0xf] %v2447
                %v2449 = vld [vmem:[%s2439 + $0x10] sm:$0xf]
                %2450 = vst [vmem:[%s2440 + $0x10] sm:$0xf] %v2449
                %v2451 = vld [vmem:[%s2439 + $0x14] sm:$0xf]
                %2452 = vst [vmem:[%s2440 + $0x14] sm:$0xf] %v2451
                %v2453 = vld [vmem:[%s2439 + $0x18] sm:$0xf]
                %2454 = vst [vmem:[%s2440 + $0x18] sm:$0xf] %v2453
                %v2455 = vld [vmem:[%s2439 + $0x1c] sm:$0xf]
                %2456 = vst [vmem:[%s2440 + $0x1c] sm:$0xf] %v2455
                %v2457 = vld [vmem:[%s2439 + $0x20] sm:$0xf]
                %2458 = vst [vmem:[%s2440 + $0x20] sm:$0xf] %v2457
                %v2459 = vld [vmem:[%s2439 + $0x24] sm:$0xf]
                %2460 = vst [vmem:[%s2440 + $0x24] sm:$0xf] %v2459
                %v2461 = vld [vmem:[%s2439 + $0x28] sm:$0xf]
                %2462 = vst [vmem:[%s2440 + $0x28] sm:$0xf] %v2461
                %v2463 = vld [vmem:[%s2439 + $0x2c] sm:$0xf]
                %2464 = vst [vmem:[%s2440 + $0x2c] sm:$0xf] %v2463
                %v2465 = vld [vmem:[%s2439 + $0x30] sm:$0xf]
                %2466 = vst [vmem:[%s2440 + $0x30] sm:$0xf] %v2465
                %v2467 = vld [vmem:[%s2439 + $0x34] sm:$0xf]
                %2468 = vst [vmem:[%s2440 + $0x34] sm:$0xf] %v2467
                %v2469 = vld [vmem:[%s2439 + $0x38] sm:$0xf]
                %2470 = vst [vmem:[%s2440 + $0x38] sm:$0xf] %v2469
                %v2471 = vld [vmem:[%s2439 + $0x3c] sm:$0xf]
                %2472 = vst [vmem:[%s2440 + $0x3c] sm:$0xf] %v2471
                %v2473 = vld [vmem:[%s2439 + $0x40] sm:$0xf]
                %2474 = vst [vmem:[%s2440 + $0x80] sm:$0xf] %v2473
                %v2475 = vld [vmem:[%s2439 + $0x44] sm:$0xf]
                %2476 = vst [vmem:[%s2440 + $0x84] sm:$0xf] %v2475
                %v2477 = vld [vmem:[%s2439 + $0x48] sm:$0xf]
                %2478 = vst [vmem:[%s2440 + $0x88] sm:$0xf] %v2477
                %v2479 = vld [vmem:[%s2439 + $0x4c] sm:$0xf]
                %2480 = vst [vmem:[%s2440 + $0x8c] sm:$0xf] %v2479
                %v2481 = vld [vmem:[%s2439 + $0x50] sm:$0xf]
                %2482 = vst [vmem:[%s2440 + $0x90] sm:$0xf] %v2481
                %v2483 = vld [vmem:[%s2439 + $0x54] sm:$0xf]
                %2484 = vst [vmem:[%s2440 + $0x94] sm:$0xf] %v2483
                %v2485 = vld [vmem:[%s2439 + $0x58] sm:$0xf]
                %2486 = vst [vmem:[%s2440 + $0x98] sm:$0xf] %v2485
                %v2487 = vld [vmem:[%s2439 + $0x5c] sm:$0xf]
                %2488 = vst [vmem:[%s2440 + $0x9c] sm:$0xf] %v2487
                %v2489 = vld [vmem:[%s2439 + $0x60] sm:$0xf]
                %2490 = vst [vmem:[%s2440 + $0xa0] sm:$0xf] %v2489
                %v2491 = vld [vmem:[%s2439 + $0x64] sm:$0xf]
                %2492 = vst [vmem:[%s2440 + $0xa4] sm:$0xf] %v2491
                %v2493 = vld [vmem:[%s2439 + $0x68] sm:$0xf]
                %2494 = vst [vmem:[%s2440 + $0xa8] sm:$0xf] %v2493
                %v2495 = vld [vmem:[%s2439 + $0x6c] sm:$0xf]
                %2496 = vst [vmem:[%s2440 + $0xac] sm:$0xf] %v2495
                %v2497 = vld [vmem:[%s2439 + $0x70] sm:$0xf]
                %2498 = vst [vmem:[%s2440 + $0xb0] sm:$0xf] %v2497
                %v2499 = vld [vmem:[%s2439 + $0x74] sm:$0xf]
                %2500 = vst [vmem:[%s2440 + $0xb4] sm:$0xf] %v2499
                %v2501 = vld [vmem:[%s2439 + $0x78] sm:$0xf]
                %2502 = vst [vmem:[%s2440 + $0xb8] sm:$0xf] %v2501
                %v2503 = vld [vmem:[%s2439 + $0x7c] sm:$0xf]
                %2504 = vst [vmem:[%s2440 + $0xbc] sm:$0xf] %v2503
                %v2505 = vld [vmem:[%s2439 + $0x80] sm:$0xf]
                %2506 = vst [vmem:[%s2440 + $0x100] sm:$0xf] %v2505
                %v2507 = vld [vmem:[%s2439 + $0x84] sm:$0xf]
                %2508 = vst [vmem:[%s2440 + $0x104] sm:$0xf] %v2507
                %v2509 = vld [vmem:[%s2439 + $0x88] sm:$0xf]
                %2510 = vst [vmem:[%s2440 + $0x108] sm:$0xf] %v2509
                %v2511 = vld [vmem:[%s2439 + $0x8c] sm:$0xf]
                %2512 = vst [vmem:[%s2440 + $0x10c] sm:$0xf] %v2511
                %v2513 = vld [vmem:[%s2439 + $0x90] sm:$0xf]
                %2514 = vst [vmem:[%s2440 + $0x110] sm:$0xf] %v2513
                %v2515 = vld [vmem:[%s2439 + $0x94] sm:$0xf]
                %2516 = vst [vmem:[%s2440 + $0x114] sm:$0xf] %v2515
                %v2517 = vld [vmem:[%s2439 + $0x98] sm:$0xf]
                %2518 = vst [vmem:[%s2440 + $0x118] sm:$0xf] %v2517
                %v2519 = vld [vmem:[%s2439 + $0x9c] sm:$0xf]
                %2520 = vst [vmem:[%s2440 + $0x11c] sm:$0xf] %v2519
                %v2521 = vld [vmem:[%s2439 + $0xa0] sm:$0xf]
                %2522 = vst [vmem:[%s2440 + $0x120] sm:$0xf] %v2521
                %v2523 = vld [vmem:[%s2439 + $0xa4] sm:$0xf]
                %2524 = vst [vmem:[%s2440 + $0x124] sm:$0xf] %v2523
                %v2525 = vld [vmem:[%s2439 + $0xa8] sm:$0xf]
                %2526 = vst [vmem:[%s2440 + $0x128] sm:$0xf] %v2525
                %v2527 = vld [vmem:[%s2439 + $0xac] sm:$0xf]
                %2528 = vst [vmem:[%s2440 + $0x12c] sm:$0xf] %v2527
                %v2529 = vld [vmem:[%s2439 + $0xb0] sm:$0xf]
                %2530 = vst [vmem:[%s2440 + $0x130] sm:$0xf] %v2529
                %v2531 = vld [vmem:[%s2439 + $0xb4] sm:$0xf]
                %2532 = vst [vmem:[%s2440 + $0x134] sm:$0xf] %v2531
                %v2533 = vld [vmem:[%s2439 + $0xb8] sm:$0xf]
                %2534 = vst [vmem:[%s2440 + $0x138] sm:$0xf] %v2533
                %v2535 = vld [vmem:[%s2439 + $0xbc] sm:$0xf]
                %2536 = vst [vmem:[%s2440 + $0x13c] sm:$0xf] %v2535
                %v2537 = vld [vmem:[%s2439 + $0xc0] sm:$0xf]
                %2538 = vst [vmem:[%s2440 + $0x180] sm:$0xf] %v2537
                %v2539 = vld [vmem:[%s2439 + $0xc4] sm:$0xf]
                %2540 = vst [vmem:[%s2440 + $0x184] sm:$0xf] %v2539
                %v2541 = vld [vmem:[%s2439 + $0xc8] sm:$0xf]
                %2542 = vst [vmem:[%s2440 + $0x188] sm:$0xf] %v2541
                %v2543 = vld [vmem:[%s2439 + $0xcc] sm:$0xf]
                %2544 = vst [vmem:[%s2440 + $0x18c] sm:$0xf] %v2543
                %v2545 = vld [vmem:[%s2439 + $0xd0] sm:$0xf]
                %2546 = vst [vmem:[%s2440 + $0x190] sm:$0xf] %v2545
                %v2547 = vld [vmem:[%s2439 + $0xd4] sm:$0xf]
                %2548 = vst [vmem:[%s2440 + $0x194] sm:$0xf] %v2547
                %v2549 = vld [vmem:[%s2439 + $0xd8] sm:$0xf]
                %2550 = vst [vmem:[%s2440 + $0x198] sm:$0xf] %v2549
                %v2551 = vld [vmem:[%s2439 + $0xdc] sm:$0xf]
                %2552 = vst [vmem:[%s2440 + $0x19c] sm:$0xf] %v2551
                %v2553 = vld [vmem:[%s2439 + $0xe0] sm:$0xf]
                %2554 = vst [vmem:[%s2440 + $0x1a0] sm:$0xf] %v2553
                %v2555 = vld [vmem:[%s2439 + $0xe4] sm:$0xf]
                %2556 = vst [vmem:[%s2440 + $0x1a4] sm:$0xf] %v2555
                %v2557 = vld [vmem:[%s2439 + $0xe8] sm:$0xf]
                %2558 = vst [vmem:[%s2440 + $0x1a8] sm:$0xf] %v2557
                %v2559 = vld [vmem:[%s2439 + $0xec] sm:$0xf]
                %2560 = vst [vmem:[%s2440 + $0x1ac] sm:$0xf] %v2559
                %v2561 = vld [vmem:[%s2439 + $0xf0] sm:$0xf]
                %2562 = vst [vmem:[%s2440 + $0x1b0] sm:$0xf] %v2561
                %v2563 = vld [vmem:[%s2439 + $0xf4] sm:$0xf]
                %2564 = vst [vmem:[%s2440 + $0x1b4] sm:$0xf] %v2563
                %v2565 = vld [vmem:[%s2439 + $0xf8] sm:$0xf]
                %2566 = vst [vmem:[%s2440 + $0x1b8] sm:$0xf] %v2565
                %v2567 = vld [vmem:[%s2439 + $0xfc] sm:$0xf]
                %2568 = vst [vmem:[%s2440 + $0x1bc] sm:$0xf] %v2567
              $region151: #{tpu_custom_call.1} parent=145 // loop_footer
                %s2438 = sadd.s32 1, %s2434
              $region152: #{tpu_custom_call.1} parent=145 // loop_footer_branch
                %2433 = sbr.rel target = $region148
              $region153: #{tpu_custom_call.1} parent=145 // loop_exit
                _
            $region146: #{tpu_custom_call.1} parent=137 // pred_fallthru
              _
          $region138: #{tpu_custom_call.1} parent=133 // pred_fallthru
            _
          %2716 = vnop
        $region134: #{tpu_custom_call.1} parent=39 // pred_fallthru
          _
      $region40: #{tpu_custom_call.1} parent=5 // pred_fallthru
        _
      %p2717 = scmp.le.s32.totalorder 2, %s18
      // Predicated region
      $region172: #{tpu_custom_call.1} parent=5 // pred_check
        %p2718 = pneg %p2717
      $region173: #{tpu_custom_call.1} parent=5 // pred_check_branch
        %2720 = sbr.rel (%p2718) target = $region175
      $region174: #{tpu_custom_call.1} parent=5 // pred_region
        %s2721 = ssub.s32 %s18, 2
        // Predicated region
        $region176: #{tpu_custom_call.1} parent=174 // pred_check
          %p2722 = pneg %p173
        $region177: #{tpu_custom_call.1} parent=174 // pred_check_branch
          %2724 = sbr.rel (%p2722) target = $region179
        $region178: #{tpu_custom_call.1} parent=174 // pred_region
          %s2725 = sand.u32 %s158, 1
          %s2726 = sand.u32 %s158, 1
          %s2727 = smul.addr %s2726, 256
          %s2728 = scalar_lea.vmem [#allocation6], %s2727
        $region179: #{tpu_custom_call.1} parent=174 // pred_fallthru
          _
        // Predicated region
        $region180: #{tpu_custom_call.1} parent=174 // pred_check
          %p2729 = pneg %p201
        $region181: #{tpu_custom_call.1} parent=174 // pred_check_branch
          %2731 = sbr.rel (%p2729) target = $region183
        $region182: #{tpu_custom_call.1} parent=174 // pred_region
          %s2732 = sand.u32 %s186, 1
          %s2733 = sand.u32 %s186, 1
          %s2734 = smul.addr %s2733, 256
          %s2735 = scalar_lea.vmem [#allocation7], %s2734
        $region183: #{tpu_custom_call.1} parent=174 // pred_fallthru
          _
        // Predicated region
        $region184: #{tpu_custom_call.1} parent=174 // pred_check
          %p2736 = pneg %p229
        $region185: #{tpu_custom_call.1} parent=174 // pred_check_branch
          %2738 = sbr.rel (%p2736) target = $region187
        $region186: #{tpu_custom_call.1} parent=174 // pred_region
          %s2739 = sand.u32 %s214, 1
          %s2740 = sand.u32 %s214, 1
          %s2741 = smul.addr %s2740, 256
          %s2742 = scalar_lea.vmem [#allocation8], %s2741
        $region187: #{tpu_custom_call.1} parent=174 // pred_fallthru
          _
      $region175: #{tpu_custom_call.1} parent=5 // pred_fallthru
        _
    $region6: #{tpu_custom_call.1} parent=1 // loop_footer
      %s22 = sadd.s32 1, %s18
    $region7: #{tpu_custom_call.1} parent=1 // loop_footer_branch
      %17 = sbr.rel target = $region3
    $region8: #{tpu_custom_call.1} parent=1 // loop_exit
      _
    %2743 = vsyncpa [#allocation3], 1
    %s2744 = scalar_lea.sflag [#allocation3], 1
    %2745 = vsyncpa %s2744, 1
    %2746 = vsyncpa [#allocation5], 1

</llo_original>
